<compile_context>
chip_gen: v6e
topology: v6e:2x2x1
jax: 0.10.0
libtpu: 0.0.40
codegen_flags: <defaults>
</compile_context>

<pallas_src>
import functools

import numpy as np
import jax
import jax.numpy as jnp
from jax.experimental import pallas as pl
from jax.experimental.pallas import tpu as pltpu

_NEG = np.float32(-1e30)   # additive mask value (exp() underflows cleanly to 0)


# ----------------------------------------------------------------------------
# small in-kernel helpers
# ----------------------------------------------------------------------------
def _gelu(x):
    # TODO(synk): torch nn.GELU defaults to exact erf; tanh approximation used for a
    # guaranteed TPU lowering (used consistently everywhere in this file).
    return jax.nn.gelu(x, approximate=True)


def _layernorm(x, g, b, eps):
    mu = jnp.mean(x, axis=-1, keepdims=True)
    xc = x - mu
    var = jnp.mean(xc * xc, axis=-1, keepdims=True)
    return xc * jax.lax.rsqrt(var + eps) * g + b


def _softmax(s):
    s = s - jnp.max(s, axis=-1, keepdims=True)
    p = jnp.exp(s)
    return p / jnp.sum(p, axis=-1, keepdims=True)


def _mm(a, b):
    """a @ b with bf16/f32 operands and f32 accumulation."""
    return jax.lax.dot_general(a.astype(b.dtype), b, (((1,), (0,)), ((), ())),
                               preferred_element_type=jnp.float32)


def _mm_nt(a, b):
    """a @ b^T (contract last dims of both) with f32 accumulation."""
    return jax.lax.dot_general(a, b, (((1,), (1,)), ((), ())),
                               preferred_element_type=jnp.float32)


def _mha_masked(qkv, mask, heads, dh, scale):
    """Masked full-token multi-head attention.

    qkv: (T, 3C) f32 with columns [q | k | v], each head-major.  mask: (T, T) additive
    (0 for "same group", -1e30 otherwise).  Returns (T, C) f32, head-major columns.
    Everything stays in VMEM/vregs; the group masks realize the axial / per-window
    batching without any transposes or gathers.
    """
    C = heads * dh
    outs = []
    for h in range(heads):
        q = qkv[:, h * dh:(h + 1) * dh]
        k = qkv[:, C + h * dh:C + (h + 1) * dh]
        v = qkv[:, 2 * C + h * dh:2 * C + (h + 1) * dh]
        s = _mm_nt(q, k) * scale + mask
        p = _softmax(s)
        outs.append(_mm(p, v))
    return jnp.concatenate(outs, axis=-1)


# ----------------------------------------------------------------------------
# the fused MultiAttBlock kernel (one grid step = one batch element)
# ----------------------------------------------------------------------------
def _multi_att_block_kernel(*refs, heads, dh, scale, eps, use_win, nwin):
    if use_win:
        (x_ref, ag_ref, ab_ref, wbig_ref, bbig_ref,
         md_ref, mw_ref, mh_ref,
         wtqkv_ref, wmask_ref, e_ref, et_ref, offeq_ref,
         wtg_ref, wtb_ref, wqk_ref, bqk_ref,
         wo_ref, bo_ref, cband_ref,
         fg_ref, fb_ref, w1_ref, b1_ref, w2_ref, b2_ref,
         o_ref) = refs
    else:
        (x_ref, ag_ref, ab_ref, wbig_ref, bbig_ref,
         md_ref, mw_ref, mh_ref,
         wo_ref, bo_ref, cband_ref,
         fg_ref, fb_ref, w1_ref, b1_ref, w2_ref, b2_ref,
         o_ref) = refs

    C = heads * dh
    C3 = 3 * C
    x = x_ref[...].astype(jnp.float32)                      # (N, C) residual stream
    N = x.shape[0]

    # --- attention_norm fused with the packed q/k/v projection of all branches -----
    xn = _layernorm(x, ag_ref[...], ab_ref[...], eps)       # (N, C) f32
    proj = _mm(xn, wbig_ref[...]) + bbig_ref[...]           # (N, 12C) f32, lane-dense

    # --- three axial self-attentions (d / w / h) as masked full-token attention -----
    o_d = _mha_masked(proj[:, 0 * C3:1 * C3], md_ref[...], heads, dh, scale)
    o_w = _mha_masked(proj[:, 1 * C3:2 * C3], mw_ref[...], heads, dh, scale)
    o_h = _mha_masked(proj[:, 2 * C3:3 * C3], mh_ref[...], heads, dh, scale)
    o_cat = jnp.concatenate([o_d, o_w, o_h], axis=-1)       # (N, 3C), never leaves VMEM

    # --- ChannelAttn: spatial mean-pool -> 3-tap conv over channels -> sigmoid gate --
    pooled = jnp.mean(xn, axis=0, keepdims=True)            # AdaptiveAvgPool3d(1): (1, C)
    gate = jax.nn.sigmoid(_mm(pooled, cband_ref[...]))      # (1, C)
    extra = x + xn * gate                                   # residual + channel branch

    # --- SepViT window-attention branch (only when D > 1) ---------------------------
    if use_win:
        qkv_win = proj[:, 3 * C3:4 * C3]                    # (N, 3C)
        wt_rows = jnp.broadcast_to(wtqkv_ref[...], (nwin, C3))
        full_qkv = jnp.concatenate([qkv_win, wt_rows], axis=0)      # (N+nwin, 3C)
        out_full = _mha_masked(full_qkv, wmask_ref[...], heads, dh, scale)
        fmap = out_full[:N, :]                              # (N, C) windowed fmaps (token order)
        wtoks = out_full[N:, :]                             # (nwin, C) per-window tokens

        # window_tokens_to_qk: per-head LayerNorm(dh, eps=1e-5) -> GELU -> Linear(C, 2C)
        wtg = wtg_ref[...]
        wtb = wtb_ref[...]
        parts = []
        for h in range(heads):
            seg = wtoks[:, h * dh:(h + 1) * dh]
            mu = jnp.mean(seg, axis=-1, keepdims=True)
            var = jnp.mean((seg - mu) ** 2, axis=-1, keepdims=True)
            segn = (seg - mu) * jax.lax.rsqrt(var + 1e-5)
            parts.append(segn * wtg[:, h * dh:(h + 1) * dh] + wtb[:, h * dh:(h + 1) * dh])
        wtn = _gelu(jnp.concatenate(parts, axis=-1))        # (nwin, C)
        qk = _mm(wtn, wqk_ref[...]) + bqk_ref[...]          # (nwin, 2C)

        e_mat = e_ref[...]                                  # (N, nwin) token -> window one-hot
        et_mat = et_ref[...]                                # (nwin, N)
        off_eq = offeq_ref[...]                             # (N, N) same within-window offset
        win_parts = []
        for h in range(heads):
            wq = qk[:, h * 2 * dh:h * 2 * dh + dh] * scale
            wk = qk[:, h * 2 * dh + dh:(h + 1) * 2 * dh]
            wattn = _softmax(_mm_nt(wq, wk))                # (nwin, nwin)
            # token-level mixing M[t,t'] = wattn[win(t), win(t')] * [off(t)==off(t')]
            mix = _mm(_mm(e_mat, wattn), et_mat) * off_eq   # (N, N)
            win_parts.append(_mm(mix, fmap[:, h * dh:(h + 1) * dh]))
        extra = extra + jnp.concatenate(win_parts, axis=-1)

    # --- packed out-projection of the three axial branches + all residual adds ------
    xs = _mm(o_cat, wo_ref[...]) + bo_ref[...] + extra      # (N, C)

    # --- ffn_norm + Mlp + residual ---------------------------------------------------
    xsn = _layernorm(xs, fg_ref[...], fb_ref[...], eps)
    h1 = _gelu(_mm(xsn, w1_ref[...]) + b1_ref[...])
    out = _mm(h1, w2_ref[...]) + b2_ref[...] + xs
    o_ref[...] = out.astype(o_ref.dtype)


# ----------------------------------------------------------------------------
# patch-embedding kernel (Conv3d with 1x1x1 patches == per-voxel linear) + pos-emb
# ----------------------------------------------------------------------------
def _embed_kernel(x_ref, w_ref, b_ref, pos_ref, o_ref):
    y = jax.lax.dot_general(x_ref[...], w_ref[...], (((1,), (0,)), ((), ())),
                            preferred_element_type=jnp.float32)
    o_ref[...] = (y + b_ref[...] + pos_ref[...]).astype(o_ref.dtype)


# ----------------------------------------------------------------------------
# trace-time constants (group masks & window expansion matrices), built with numpy
# ----------------------------------------------------------------------------
def _build_constants(D, W, H, wsz=2):
    N = D * W * H
    t = np.arange(N)
    d = t // (W * H)
    w = (t // H) % W
    h = t % H

    def addmask(same):
        return np.where(same, np.float32(0.0), _NEG).astype(np.float32)

    out = dict(
        mask_d=jnp.asarray(addmask((w[:, None] == w[None, :]) & (h[:, None] == h[None, :]))),
        mask_w=jnp.asarray(addmask((d[:, None] == d[None, :]) & (h[:, None] == h[None, :]))),
        mask_h=jnp.asarray(addmask((d[:, None] == d[None, :]) & (w[:, None] == w[None, :]))),
    )
    if D > 1:
        nD, nW, nH = D // wsz, W // wsz, H // wsz
        nwin = nD * nW * nH
        g = (d // wsz) * (nW * nH) + (w // wsz) * nH + (h // wsz)      # window id per token
        off = (d % wsz) * (wsz * wsz) + (w % wsz) * wsz + (h % wsz)    # within-window offset
        gid = np.concatenate([g, np.arange(nwin)])                     # +window-token rows
        e_mat = (g[:, None] == np.arange(nwin)[None, :]).astype(np.float32)
        out['win'] = dict(
            nwin=nwin,
            win_mask=jnp.asarray(addmask(gid[:, None] == gid[None, :])),
            E=jnp.asarray(e_mat),
            ET=jnp.asarray(np.ascontiguousarray(e_mat.T)),
            off_eq=jnp.asarray((off[:, None] == off[None, :]).astype(np.float32)),
        )
    return out


# ----------------------------------------------------------------------------
# wrappers
# ----------------------------------------------------------------------------
def embeddings(x, p, cfg):
    """Embeddings: Conv3d(in, hidden, patch=1) + learned positional embedding."""
    B, Cin, D, W, H = x.shape
    C = cfg['hidden_size']
    N = D * W * H
    x_t = jnp.transpose(x, (0, 2, 3, 4, 1)).reshape(B * N, Cin)   # channels-last voxels
    return pl.pallas_call(
        _embed_kernel,
        grid=(B,),
        in_specs=[pl.BlockSpec((N, Cin), lambda b: (b, 0)),
                  pl.BlockSpec((Cin, C), lambda b: (0, 0)),
                  pl.BlockSpec((1, C), lambda b: (0, 0)),
                  pl.BlockSpec((N, C), lambda b: (0, 0))],
        out_specs=pl.BlockSpec((N, C), lambda b: (b, 0)),
        out_shape=jax.ShapeDtypeStruct((B * N, C), jnp.float32),
        compiler_params=pltpu.CompilerParams(dimension_semantics=("parallel",)),
    )(x_t, p['patch_w'], p['patch_b'].reshape(1, C), p['pos_emb'])


def multi_att_block(x_tok, p, consts, cfg):
    """One fused MultiAttBlock.  x_tok: (B*N, C) f32 residual stream."""
    D, W, H = cfg['img_size']
    C = cfg['hidden_size']
    F = cfg['mlp_dim']
    heads = cfg['num_heads']
    dh = C // heads
    scale = dh ** -0.5
    N = D * W * H
    M = x_tok.shape[0]
    B = M // N
    use_win = D > 1
    sp = p['spatial']

    # ChannelAttn's 3-tap zero-padded bias-free conv over channels as a banded matmul
    cw = p['channel']['conv_w']
    cband = (cw[0] * jnp.eye(C, k=1) + cw[1] * jnp.eye(C) +
             cw[2] * jnp.eye(C, k=-1)).astype(jnp.float32)

    def _const(shape):
        nd = len(shape)
        return pl.BlockSpec(shape, lambda b, _n=nd: (0,) * _n)

    args = [x_tok,
            p['attn_ln_g'].reshape(1, C), p['attn_ln_b'].reshape(1, C),
            sp['w_big'].astype(jnp.bfloat16), sp['b_big'].reshape(1, 12 * C),
            consts['mask_d'], consts['mask_w'], consts['mask_h']]
    in_specs = [pl.BlockSpec((N, C), lambda b: (b, 0)),
                _const((1, C)), _const((1, C)),
                _const((C, 12 * C)), _const((1, 12 * C)),
                _const((N, N)), _const((N, N)), _const((N, N))]

    nwin = 0
    if use_win:
        wp = sp['win']
        wc = consts['win']
        nwin = wc['nwin']
        # window token (raw parameter, NOT layer-normed) through the bias-free to_qkv
        wt_qkv = jnp.dot(wp['window_tokens'], sp['w_big'][:, 9 * C:]).reshape(1, 3 * C)
        args += [wt_qkv.astype(jnp.float32),
                 wc['win_mask'], wc['E'], wc['ET'], wc['off_eq'],
                 jnp.tile(wp['wt_ln_g'], heads).reshape(1, C),
                 jnp.tile(wp['wt_ln_b'], heads).reshape(1, C),
                 wp['w_qk'].astype(jnp.bfloat16), wp['b_qk'].reshape(1, 2 * C)]
        in_specs += [_const((1, 3 * C)),
                     _const((N + nwin, N + nwin)), _const((N, nwin)),
                     _const((nwin, N)), _const((N, N)),
                     _const((1, C)), _const((1, C)),
                     _const((C, 2 * C)), _const((1, 2 * C))]

    args += [sp['wo_big'].astype(jnp.bfloat16), sp['bo_big'].reshape(1, C),
             cband,
             p['ffn_ln_g'].reshape(1, C), p['ffn_ln_b'].reshape(1, C),
             p['mlp']['w1'].astype(jnp.bfloat16), p['mlp']['b1'].reshape(1, F),
             p['mlp']['w2'].astype(jnp.bfloat16), p['mlp']['b2'].reshape(1, C)]
    in_specs += [_const((3 * C, C)), _const((1, C)),
                 _const((C, C)),
                 _const((1, C)), _const((1, C)),
                 _const((C, F)), _const((1, F)),
                 _const((F, C)), _const((1, C))]

    kernel = functools.partial(_multi_att_block_kernel, heads=heads, dh=dh, scale=scale,
                               eps=1e-6, use_win=use_win, nwin=nwin)

    # advisory cost estimate so XLA schedules around the custom call
    flops = 2 * M * C * (12 * C + 3 * C + 2 * F) + 3 * 4 * M * N * C
    if use_win:
        flops += 4 * M * (N + nwin) * C + 4 * M * N * C
    bytes_acc = int(sum(int(np.prod(a.shape)) * a.dtype.itemsize for a in args) + M * C * 4)
    transc = int(M * (3 * N + F + 4 * C))

    return pl.pallas_call(
        kernel,
        grid=(B,),
        in_specs=in_specs,
        out_specs=pl.BlockSpec((N, C), lambda b: (b, 0)),
        out_shape=jax.ShapeDtypeStruct((M, C), jnp.float32),
        compiler_params=pltpu.CompilerParams(dimension_semantics=("parallel",)),
        cost_estimate=pl.CostEstimate(flops=int(flops), transcendentals=transc,
                                      bytes_accessed=bytes_acc),
    )(*args)


def multi_attention_fusion(x, params, cfg):
    """x: (B, Cin, D, W, H) NCDHW (same layout as the torch module)."""
    B, _, D, W, H = x.shape
    C = cfg['hidden_size']
    consts = _build_constants(D, W, H, wsz=2)
    y = embeddings(x, params['embeddings'], cfg)            # (B*N, C) f32
    for blk in params['blocks']:
        y = multi_att_block(y, blk, consts, cfg)
    return y.reshape(B, D, W, H, C).transpose(0, 4, 1, 2, 3)  # back to (B, C, D, W, H)


# ----------------------------------------------------------------------------
# deterministic parameter initialization (weights pre-packed for the fused kernel)
# ----------------------------------------------------------------------------
def init_params(key, cfg):
    C = cfg['hidden_size']
    Cin = cfg['in_channels']
    D, W, H = cfg['img_size']
    F = cfg['mlp_dim']
    heads = cfg['num_heads']
    dh = C // heads
    N = D * W * H

    keys = iter(jax.random.split(key, 16 + 32 * cfg['num_layers']))

    def w_init(shape, std=0.02):
        return jax.random.normal(next(keys), shape, jnp.float32) * std

    def zeros(*s):
        return jnp.zeros(s, jnp.float32)

    def ones(*s):
        return jnp.ones(s, jnp.float32)

    def block_params():
        # packed post-attention_norm projection:
        # [d-Attn q|k|v, w-Attn q|k|v, h-Attn q|k|v, WinAttn to_qkv (bias=False)]
        w_big = jnp.concatenate([w_init((C, 3 * C)) for _ in range(4)], axis=1)
        b_big = jnp.concatenate([w_init((9 * C,), std=0.02), zeros(3 * C)], axis=0)
        wo_big = jnp.concatenate([w_init((C, C)) for _ in range(3)], axis=0)   # (3C, C)
        return dict(
            attn_ln_g=ones(C), attn_ln_b=zeros(C),
            ffn_ln_g=ones(C), ffn_ln_b=zeros(C),
            spatial=dict(
                w_big=w_big, b_big=b_big, wo_big=wo_big,
                bo_big=w_init((C,), std=0.02),
                win=dict(
                    window_tokens=w_init((C,), std=1.0),
                    wt_ln_g=ones(dh), wt_ln_b=zeros(dh),
                    w_qk=w_init((C, 2 * C)), b_qk=w_init((2 * C,), std=0.02),
                ),
            ),
            channel=dict(conv_w=w_init((3,), std=0.5)),
            mlp=dict(w1=w_init((C, F)), b1=w_init((F,), std=0.02),
                     w2=w_init((F, C)), b2=w_init((C,), std=0.02)),
        )

    return dict(
        embeddings=dict(patch_w=w_init((Cin, C)), patch_b=zeros(C),
                        pos_emb=w_init((N, C))),
        blocks=[block_params() for _ in range(cfg['num_layers'])],
    )


# ----------------------------------------------------------------------------
if __name__ == "__main__":
    cfg = dict(
        in_channels=8,
        hidden_size=32,
        img_size=(4, 4, 4),
        num_heads=4,
        mlp_dim=64,
        num_layers=2,
        patch_size=(1, 1, 1),
    )
    key = jax.random.PRNGKey(0)
    kx, kp = jax.random.split(key)
    x = jax.random.normal(kx, (2, cfg['in_channels'], *cfg['img_size']), jnp.float32)
    params = init_params(kp, cfg)

    fwd = jax.jit(functools.partial(multi_attention_fusion, cfg=cfg))
    out = fwd(x, params)
    jax.block_until_ready(out)
    assert out.shape == (2, cfg['hidden_size'], *cfg['img_size']), out.shape
    assert bool(jnp.all(jnp.isfinite(out)))
    print("KERNEL_OK")
</pallas_src>

<mosaic_0001>
module attributes {stable_mosaic.version = 11 : i64} {
  func.func @_embed_kernel(%arg0: i32, %arg1: memref<64x8xf32, #tpu.memory_space<vmem>>, %arg2: memref<8x32xf32, #tpu.memory_space<vmem>>, %arg3: memref<1x32xf32, #tpu.memory_space<vmem>>, %arg4: memref<64x32xf32, #tpu.memory_space<vmem>>, %arg5: memref<64x32xf32, #tpu.memory_space<vmem>>) attributes {dimension_semantics = [#tpu.dimension_semantics<parallel>], iteration_bounds = array<i64: 2>, scalar_prefetch = 0 : i64, scratch_operands = 0 : i64, tpu.core_type = #tpu.core_type<tc>, window_params = [{transform_indices = @transform_0, window_bounds = array<i64: 64, 8>}, {pipeline_mode = #tpu.pipeline_mode<synchronous>, transform_indices = @transform_1, window_bounds = array<i64: 8, 32>}, {pipeline_mode = #tpu.pipeline_mode<synchronous>, transform_indices = @transform_2, window_bounds = array<i64: 1, 32>}, {pipeline_mode = #tpu.pipeline_mode<synchronous>, transform_indices = @transform_3, window_bounds = array<i64: 64, 32>}, {transform_indices = @transform_4, window_bounds = array<i64: 64, 32>}]} {
    %c0 = arith.constant 0 : index
    %c0_0 = arith.constant 0 : index
    %0 = vector.load %arg1[%c0, %c0_0] : memref<64x8xf32, #tpu.memory_space<vmem>>, vector<64x8xf32>
    %c0_1 = arith.constant 0 : index
    %c0_2 = arith.constant 0 : index
    %1 = vector.load %arg2[%c0_1, %c0_2] : memref<8x32xf32, #tpu.memory_space<vmem>>, vector<8x32xf32>
    %cst = arith.constant dense<0.000000e+00> : vector<64x32xf32>
    %2 = tpu.matmul %0, %1, %cst {dimension_numbers = #tpu.dot_dimension_numbers<[1], [0], [0], [1], [0, 0, 1, 1], [], []>} : vector<64x8xf32>, vector<8x32xf32>, vector<64x32xf32> -> vector<64x32xf32>
    %c0_3 = arith.constant 0 : index
    %c0_4 = arith.constant 0 : index
    %3 = vector.load %arg3[%c0_3, %c0_4] : memref<1x32xf32, #tpu.memory_space<vmem>>, vector<1x32xf32>
    %4 = vector.broadcast %3 : vector<1x32xf32> to vector<64x32xf32>
    %5 = arith.addf %2, %4 : vector<64x32xf32>
    %c0_5 = arith.constant 0 : index
    %c0_6 = arith.constant 0 : index
    %6 = vector.load %arg4[%c0_5, %c0_6] : memref<64x32xf32, #tpu.memory_space<vmem>>, vector<64x32xf32>
    %7 = arith.addf %5, %6 : vector<64x32xf32>
    %c0_7 = arith.constant 0 : index
    %c0_8 = arith.constant 0 : index
    %8 = vector.load %arg5[%c0_7, %c0_8] : memref<64x32xf32, #tpu.memory_space<vmem>>, vector<64x32xf32>
    tpu.vector_store %arg5[%c0_7, %c0_8], %7 {strides = array<i32>} : memref<64x32xf32, #tpu.memory_space<vmem>>, vector<64x32xf32>,
    return
  }
  func.func @transform_0(%arg0: i32) -> (i32, i32) {
    %c0_i32 = arith.constant 0 : i32
    %c0_i32_0 = arith.constant 0 : i32
    return %arg0, %c0_i32 : i32, i32
  }
  func.func @transform_1(%arg0: i32) -> (i32, i32) {
    %c0_i32 = arith.constant 0 : i32
    %c0_i32_0 = arith.constant 0 : i32
    %c0_i32_1 = arith.constant 0 : i32
    return %c0_i32, %c0_i32_0 : i32, i32
  }
  func.func @transform_2(%arg0: i32) -> (i32, i32) {
    %c0_i32 = arith.constant 0 : i32
    %c0_i32_0 = arith.constant 0 : i32
    %c0_i32_1 = arith.constant 0 : i32
    return %c0_i32, %c0_i32_0 : i32, i32
  }
  func.func @transform_3(%arg0: i32) -> (i32, i32) {
    %c0_i32 = arith.constant 0 : i32
    %c0_i32_0 = arith.constant 0 : i32
    %c0_i32_1 = arith.constant 0 : i32
    return %c0_i32, %c0_i32_0 : i32, i32
  }
  func.func @transform_4(%arg0: i32) -> (i32, i32) {
    %c0_i32 = arith.constant 0 : i32
    %c0_i32_0 = arith.constant 0 : i32
    return %arg0, %c0_i32 : i32, i32
  }
}

module attributes {stable_mosaic.version = 11 : i64} {
  func.func @_multi_att_block_kernel(%arg0: i32, %arg1: memref<64x32xf32, #tpu.memory_space<vmem>>, %arg2: memref<1x32xf32, #tpu.memory_space<vmem>>, %arg3: memref<1x32xf32, #tpu.memory_space<vmem>>, %arg4: memref<32x384xbf16, #tpu.memory_space<vmem>>, %arg5: memref<1x384xf32, #tpu.memory_space<vmem>>, %arg6: memref<64x64xf32, #tpu.memory_space<vmem>>, %arg7: memref<64x64xf32, #tpu.memory_space<vmem>>, %arg8: memref<64x64xf32, #tpu.memory_space<vmem>>, %arg9: memref<1x96xf32, #tpu.memory_space<vmem>>, %arg10: memref<72x72xf32, #tpu.memory_space<vmem>>, %arg11: memref<64x8xf32, #tpu.memory_space<vmem>>, %arg12: memref<8x64xf32, #tpu.memory_space<vmem>>, %arg13: memref<64x64xf32, #tpu.memory_space<vmem>>, %arg14: memref<1x32xf32, #tpu.memory_space<vmem>>, %arg15: memref<1x32xf32, #tpu.memory_space<vmem>>, %arg16: memref<32x64xbf16, #tpu.memory_space<vmem>>, %arg17: memref<1x64xf32, #tpu.memory_space<vmem>>, %arg18: memref<96x32xbf16, #tpu.memory_space<vmem>>, %arg19: memref<1x32xf32, #tpu.memory_space<vmem>>, %arg20: memref<32x32xf32, #tpu.memory_space<vmem>>, %arg21: memref<1x32xf32, #tpu.memory_space<vmem>>, %arg22: memref<1x32xf32, #tpu.memory_space<vmem>>, %arg23: memref<32x64xbf16, #tpu.memory_space<vmem>>, %arg24: memref<1x64xf32, #tpu.memory_space<vmem>>, %arg25: memref<64x32xbf16, #tpu.memory_space<vmem>>, %arg26: memref<1x32xf32, #tpu.memory_space<vmem>>, %arg27: memref<64x32xf32, #tpu.memory_space<vmem>>) attributes {dimension_semantics = [#tpu.dimension_semantics<parallel>], iteration_bounds = array<i64: 2>, scalar_prefetch = 0 : i64, scratch_operands = 0 : i64, tpu.core_type = #tpu.core_type<tc>, window_params = [{transform_indices = @transform_0, window_bounds = array<i64: 64, 32>}, {pipeline_mode = #tpu.pipeline_mode<synchronous>, transform_indices = @transform_1, window_bounds = array<i64: 1, 32>}, {pipeline_mode = #tpu.pipeline_mode<synchronous>, transform_indices = @transform_2, window_bounds = array<i64: 1, 32>}, {pipeline_mode = #tpu.pipeline_mode<synchronous>, transform_indices = @transform_3, window_bounds = array<i64: 32, 384>}, {pipeline_mode = #tpu.pipeline_mode<synchronous>, transform_indices = @transform_4, window_bounds = array<i64: 1, 384>}, {pipeline_mode = #tpu.pipeline_mode<synchronous>, transform_indices = @transform_5, window_bounds = array<i64: 64, 64>}, {pipeline_mode = #tpu.pipeline_mode<synchronous>, transform_indices = @transform_6, window_bounds = array<i64: 64, 64>}, {pipeline_mode = #tpu.pipeline_mode<synchronous>, transform_indices = @transform_7, window_bounds = array<i64: 64, 64>}, {pipeline_mode = #tpu.pipeline_mode<synchronous>, transform_indices = @transform_8, window_bounds = array<i64: 1, 96>}, {pipeline_mode = #tpu.pipeline_mode<synchronous>, transform_indices = @transform_9, window_bounds = array<i64: 72, 72>}, {pipeline_mode = #tpu.pipeline_mode<synchronous>, transform_indices = @transform_10, window_bounds = array<i64: 64, 8>}, {pipeline_mode = #tpu.pipeline_mode<synchronous>, transform_indices = @transform_11, window_bounds = array<i64: 8, 64>}, {pipeline_mode = #tpu.pipeline_mode<synchronous>, transform_indices = @transform_12, window_bounds = array<i64: 64, 64>}, {pipeline_mode = #tpu.pipeline_mode<synchronous>, transform_indices = @transform_13, window_bounds = array<i64: 1, 32>}, {pipeline_mode = #tpu.pipeline_mode<synchronous>, transform_indices = @transform_14, window_bounds = array<i64: 1, 32>}, {pipeline_mode = #tpu.pipeline_mode<synchronous>, transform_indices = @transform_15, window_bounds = array<i64: 32, 64>}, {pipeline_mode = #tpu.pipeline_mode<synchronous>, transform_indices = @transform_16, window_bounds = array<i64: 1, 64>}, {pipeline_mode = #tpu.pipeline_mode<synchronous>, transform_indices = @transform_17, window_bounds = array<i64: 96, 32>}, {pipeline_mode = #tpu.pipeline_mode<synchronous>, transform_indices = @transform_18, window_bounds = array<i64: 1, 32>}, {pipeline_mode = #tpu.pipeline_mode<synchronous>, transform_indices = @transform_19, window_bounds = array<i64: 32, 32>}, {pipeline_mode = #tpu.pipeline_mode<synchronous>, transform_indices = @transform_20, window_bounds = array<i64: 1, 32>}, {pipeline_mode = #tpu.pipeline_mode<synchronous>, transform_indices = @transform_21, window_bounds = array<i64: 1, 32>}, {pipeline_mode = #tpu.pipeline_mode<synchronous>, transform_indices = @transform_22, window_bounds = array<i64: 32, 64>}, {pipeline_mode = #tpu.pipeline_mode<synchronous>, transform_indices = @transform_23, window_bounds = array<i64: 1, 64>}, {pipeline_mode = #tpu.pipeline_mode<synchronous>, transform_indices = @transform_24, window_bounds = array<i64: 64, 32>}, {pipeline_mode = #tpu.pipeline_mode<synchronous>, transform_indices = @transform_25, window_bounds = array<i64: 1, 32>}, {transform_indices = @transform_26, window_bounds = array<i64: 64, 32>}]} {
    %c0 = arith.constant 0 : index
    %c0_0 = arith.constant 0 : index
    %0 = vector.load %arg1[%c0, %c0_0] : memref<64x32xf32, #tpu.memory_space<vmem>>, vector<64x32xf32>
    %c0_1 = arith.constant 0 : index
    %c0_2 = arith.constant 0 : index
    %1 = vector.load %arg2[%c0_1, %c0_2] : memref<1x32xf32, #tpu.memory_space<vmem>>, vector<1x32xf32>
    %c0_3 = arith.constant 0 : index
    %c0_4 = arith.constant 0 : index
    %2 = vector.load %arg3[%c0_3, %c0_4] : memref<1x32xf32, #tpu.memory_space<vmem>>, vector<1x32xf32>
    %cst = arith.constant dense<0.000000e+00> : vector<64xf32>
    %3 = vector.multi_reduction <add>, %0, %cst [1] : vector<64x32xf32> to vector<64xf32>
    %4 = vector.shape_cast %3 : vector<64xf32> to vector<64x1xf32>
    %cst_5 = arith.constant 3.200000e+01 : f32
    %5 = vector.broadcast %cst_5 : f32 to vector<64x1xf32>
    %6 = arith.divf %4, %5 : vector<64x1xf32>
    %7 = vector.broadcast %6 : vector<64x1xf32> to vector<64x32xf32>
    %8 = arith.subf %0, %7 : vector<64x32xf32>
    %9 = arith.mulf %8, %8 : vector<64x32xf32>
    %cst_6 = arith.constant dense<0.000000e+00> : vector<64xf32>
    %10 = vector.multi_reduction <add>, %9, %cst_6 [1] : vector<64x32xf32> to vector<64xf32>
    %11 = vector.shape_cast %10 : vector<64xf32> to vector<64x1xf32>
    %cst_7 = arith.constant 3.200000e+01 : f32
    %12 = vector.broadcast %cst_7 : f32 to vector<64x1xf32>
    %13 = arith.divf %11, %12 : vector<64x1xf32>
    %cst_8 = arith.constant 9.99999997E-7 : f32
    %14 = vector.broadcast %cst_8 : f32 to vector<64x1xf32>
    %15 = arith.addf %13, %14 : vector<64x1xf32>
    %16 = math.rsqrt %15 : vector<64x1xf32>
    %17 = vector.broadcast %16 : vector<64x1xf32> to vector<64x32xf32>
    %18 = arith.mulf %8, %17 : vector<64x32xf32>
    %19 = vector.broadcast %1 : vector<1x32xf32> to vector<64x32xf32>
    %20 = arith.mulf %18, %19 : vector<64x32xf32>
    %21 = vector.broadcast %2 : vector<1x32xf32> to vector<64x32xf32>
    %22 = arith.addf %20, %21 : vector<64x32xf32>
    %c0_9 = arith.constant 0 : index
    %c0_10 = arith.constant 0 : index
    %23 = vector.load %arg4[%c0_9, %c0_10] : memref<32x384xbf16, #tpu.memory_space<vmem>>, vector<32x384xbf16>
    %24 = arith.truncf %22 : vector<64x32xf32> to vector<64x32xbf16>
    %cst_11 = arith.constant dense<0.000000e+00> : vector<64x384xf32>
    %25 = tpu.matmul %24, %23, %cst_11 {dimension_numbers = #tpu.dot_dimension_numbers<[1], [0], [0], [1], [0, 0, 1, 1], [], []>} : vector<64x32xbf16>, vector<32x384xbf16>, vector<64x384xf32> -> vector<64x384xf32>
    %c0_12 = arith.constant 0 : index
    %c0_13 = arith.constant 0 : index
    %26 = vector.load %arg5[%c0_12, %c0_13] : memref<1x384xf32, #tpu.memory_space<vmem>>, vector<1x384xf32>
    %27 = vector.broadcast %26 : vector<1x384xf32> to vector<64x384xf32>
    %28 = arith.addf %25, %27 : vector<64x384xf32>
    %29 = vector.extract_strided_slice %28 {offsets = [0, 0], sizes = [64, 96], strides = [1, 1]} : vector<64x384xf32> to vector<64x96xf32>
    %c0_14 = arith.constant 0 : index
    %c0_15 = arith.constant 0 : index
    %30 = vector.load %arg6[%c0_14, %c0_15] : memref<64x64xf32, #tpu.memory_space<vmem>>, vector<64x64xf32>
    %31 = vector.extract_strided_slice %29 {offsets = [0, 0], sizes = [64, 8], strides = [1, 1]} : vector<64x96xf32> to vector<64x8xf32>
    %32 = vector.extract_strided_slice %29 {offsets = [0, 32], sizes = [64, 8], strides = [1, 1]} : vector<64x96xf32> to vector<64x8xf32>
    %33 = vector.extract_strided_slice %29 {offsets = [0, 64], sizes = [64, 8], strides = [1, 1]} : vector<64x96xf32> to vector<64x8xf32>
    %cst_16 = arith.constant dense<0.000000e+00> : vector<64x64xf32>
    %34 = tpu.matmul %31, %32, %cst_16 {dimension_numbers = #tpu.dot_dimension_numbers<[1], [1], [0], [0], [0, 0, 1, 0], [], []>} : vector<64x8xf32>, vector<64x8xf32>, vector<64x64xf32> -> vector<64x64xf32>
    %cst_17 = arith.constant 0.353553385 : f32
    %35 = vector.broadcast %cst_17 : f32 to vector<64x64xf32>
    %36 = arith.mulf %34, %35 : vector<64x64xf32>
    %37 = arith.addf %36, %30 : vector<64x64xf32>
    %cst_18 = arith.constant dense<0xFF800000> : vector<64xf32>
    %38 = vector.multi_reduction <maximumf>, %37, %cst_18 [1] : vector<64x64xf32> to vector<64xf32>
    %39 = vector.shape_cast %38 : vector<64xf32> to vector<64x1xf32>
    %40 = vector.broadcast %39 : vector<64x1xf32> to vector<64x64xf32>
    %41 = arith.subf %37, %40 : vector<64x64xf32>
    %42 = math.exp %41 : vector<64x64xf32>
    %cst_19 = arith.constant dense<0.000000e+00> : vector<64xf32>
    %43 = vector.multi_reduction <add>, %42, %cst_19 [1] : vector<64x64xf32> to vector<64xf32>
    %44 = vector.shape_cast %43 : vector<64xf32> to vector<64x1xf32>
    %45 = vector.broadcast %44 : vector<64x1xf32> to vector<64x64xf32>
    %46 = arith.divf %42, %45 : vector<64x64xf32>
    %cst_20 = arith.constant dense<0.000000e+00> : vector<64x8xf32>
    %47 = tpu.matmul %46, %33, %cst_20 {dimension_numbers = #tpu.dot_dimension_numbers<[1], [0], [0], [1], [0, 0, 1, 1], [], []>} : vector<64x64xf32>, vector<64x8xf32>, vector<64x8xf32> -> vector<64x8xf32>
    %48 = vector.extract_strided_slice %29 {offsets = [0, 8], sizes = [64, 8], strides = [1, 1]} : vector<64x96xf32> to vector<64x8xf32>
    %49 = vector.extract_strided_slice %29 {offsets = [0, 40], sizes = [64, 8], strides = [1, 1]} : vector<64x96xf32> to vector<64x8xf32>
    %50 = vector.extract_strided_slice %29 {offsets = [0, 72], sizes = [64, 8], strides = [1, 1]} : vector<64x96xf32> to vector<64x8xf32>
    %cst_21 = arith.constant dense<0.000000e+00> : vector<64x64xf32>
    %51 = tpu.matmul %48, %49, %cst_21 {dimension_numbers = #tpu.dot_dimension_numbers<[1], [1], [0], [0], [0, 0, 1, 0], [], []>} : vector<64x8xf32>, vector<64x8xf32>, vector<64x64xf32> -> vector<64x64xf32>
    %cst_22 = arith.constant 0.353553385 : f32
    %52 = vector.broadcast %cst_22 : f32 to vector<64x64xf32>
    %53 = arith.mulf %51, %52 : vector<64x64xf32>
    %54 = arith.addf %53, %30 : vector<64x64xf32>
    %cst_23 = arith.constant dense<0xFF800000> : vector<64xf32>
    %55 = vector.multi_reduction <maximumf>, %54, %cst_23 [1] : vector<64x64xf32> to vector<64xf32>
    %56 = vector.shape_cast %55 : vector<64xf32> to vector<64x1xf32>
    %57 = vector.broadcast %56 : vector<64x1xf32> to vector<64x64xf32>
    %58 = arith.subf %54, %57 : vector<64x64xf32>
    %59 = math.exp %58 : vector<64x64xf32>
    %cst_24 = arith.constant dense<0.000000e+00> : vector<64xf32>
    %60 = vector.multi_reduction <add>, %59, %cst_24 [1] : vector<64x64xf32> to vector<64xf32>
    %61 = vector.shape_cast %60 : vector<64xf32> to vector<64x1xf32>
    %62 = vector.broadcast %61 : vector<64x1xf32> to vector<64x64xf32>
    %63 = arith.divf %59, %62 : vector<64x64xf32>
    %cst_25 = arith.constant dense<0.000000e+00> : vector<64x8xf32>
    %64 = tpu.matmul %63, %50, %cst_25 {dimension_numbers = #tpu.dot_dimension_numbers<[1], [0], [0], [1], [0, 0, 1, 1], [], []>} : vector<64x64xf32>, vector<64x8xf32>, vector<64x8xf32> -> vector<64x8xf32>
    %65 = vector.extract_strided_slice %29 {offsets = [0, 16], sizes = [64, 8], strides = [1, 1]} : vector<64x96xf32> to vector<64x8xf32>
    %66 = vector.extract_strided_slice %29 {offsets = [0, 48], sizes = [64, 8], strides = [1, 1]} : vector<64x96xf32> to vector<64x8xf32>
    %67 = vector.extract_strided_slice %29 {offsets = [0, 80], sizes = [64, 8], strides = [1, 1]} : vector<64x96xf32> to vector<64x8xf32>
    %cst_26 = arith.constant dense<0.000000e+00> : vector<64x64xf32>
    %68 = tpu.matmul %65, %66, %cst_26 {dimension_numbers = #tpu.dot_dimension_numbers<[1], [1], [0], [0], [0, 0, 1, 0], [], []>} : vector<64x8xf32>, vector<64x8xf32>, vector<64x64xf32> -> vector<64x64xf32>
    %cst_27 = arith.constant 0.353553385 : f32
    %69 = vector.broadcast %cst_27 : f32 to vector<64x64xf32>
    %70 = arith.mulf %68, %69 : vector<64x64xf32>
    %71 = arith.addf %70, %30 : vector<64x64xf32>
    %cst_28 = arith.constant dense<0xFF800000> : vector<64xf32>
    %72 = vector.multi_reduction <maximumf>, %71, %cst_28 [1] : vector<64x64xf32> to vector<64xf32>
    %73 = vector.shape_cast %72 : vector<64xf32> to vector<64x1xf32>
    %74 = vector.broadcast %73 : vector<64x1xf32> to vector<64x64xf32>
    %75 = arith.subf %71, %74 : vector<64x64xf32>
    %76 = math.exp %75 : vector<64x64xf32>
    %cst_29 = arith.constant dense<0.000000e+00> : vector<64xf32>
    %77 = vector.multi_reduction <add>, %76, %cst_29 [1] : vector<64x64xf32> to vector<64xf32>
    %78 = vector.shape_cast %77 : vector<64xf32> to vector<64x1xf32>
    %79 = vector.broadcast %78 : vector<64x1xf32> to vector<64x64xf32>
    %80 = arith.divf %76, %79 : vector<64x64xf32>
    %cst_30 = arith.constant dense<0.000000e+00> : vector<64x8xf32>
    %81 = tpu.matmul %80, %67, %cst_30 {dimension_numbers = #tpu.dot_dimension_numbers<[1], [0], [0], [1], [0, 0, 1, 1], [], []>} : vector<64x64xf32>, vector<64x8xf32>, vector<64x8xf32> -> vector<64x8xf32>
    %82 = vector.extract_strided_slice %29 {offsets = [0, 24], sizes = [64, 8], strides = [1, 1]} : vector<64x96xf32> to vector<64x8xf32>
    %83 = vector.extract_strided_slice %29 {offsets = [0, 56], sizes = [64, 8], strides = [1, 1]} : vector<64x96xf32> to vector<64x8xf32>
    %84 = vector.extract_strided_slice %29 {offsets = [0, 88], sizes = [64, 8], strides = [1, 1]} : vector<64x96xf32> to vector<64x8xf32>
    %cst_31 = arith.constant dense<0.000000e+00> : vector<64x64xf32>
    %85 = tpu.matmul %82, %83, %cst_31 {dimension_numbers = #tpu.dot_dimension_numbers<[1], [1], [0], [0], [0, 0, 1, 0], [], []>} : vector<64x8xf32>, vector<64x8xf32>, vector<64x64xf32> -> vector<64x64xf32>
    %cst_32 = arith.constant 0.353553385 : f32
    %86 = vector.broadcast %cst_32 : f32 to vector<64x64xf32>
    %87 = arith.mulf %85, %86 : vector<64x64xf32>
    %88 = arith.addf %87, %30 : vector<64x64xf32>
    %cst_33 = arith.constant dense<0xFF800000> : vector<64xf32>
    %89 = vector.multi_reduction <maximumf>, %88, %cst_33 [1] : vector<64x64xf32> to vector<64xf32>
    %90 = vector.shape_cast %89 : vector<64xf32> to vector<64x1xf32>
    %91 = vector.broadcast %90 : vector<64x1xf32> to vector<64x64xf32>
    %92 = arith.subf %88, %91 : vector<64x64xf32>
    %93 = math.exp %92 : vector<64x64xf32>
    %cst_34 = arith.constant dense<0.000000e+00> : vector<64xf32>
    %94 = vector.multi_reduction <add>, %93, %cst_34 [1] : vector<64x64xf32> to vector<64xf32>
    %95 = vector.shape_cast %94 : vector<64xf32> to vector<64x1xf32>
    %96 = vector.broadcast %95 : vector<64x1xf32> to vector<64x64xf32>
    %97 = arith.divf %93, %96 : vector<64x64xf32>
    %cst_35 = arith.constant dense<0.000000e+00> : vector<64x8xf32>
    %98 = tpu.matmul %97, %84, %cst_35 {dimension_numbers = #tpu.dot_dimension_numbers<[1], [0], [0], [1], [0, 0, 1, 1], [], []>} : vector<64x64xf32>, vector<64x8xf32>, vector<64x8xf32> -> vector<64x8xf32>
    %99 = tpu.concatenate %47, %64, %81, %98 in 1 : vector<64x8xf32>, vector<64x8xf32>, vector<64x8xf32>, vector<64x8xf32> -> vector<64x32xf32>
    %100 = vector.extract_strided_slice %28 {offsets = [0, 96], sizes = [64, 96], strides = [1, 1]} : vector<64x384xf32> to vector<64x96xf32>
    %c0_36 = arith.constant 0 : index
    %c0_37 = arith.constant 0 : index
    %101 = vector.load %arg7[%c0_36, %c0_37] : memref<64x64xf32, #tpu.memory_space<vmem>>, vector<64x64xf32>
    %102 = vector.extract_strided_slice %100 {offsets = [0, 0], sizes = [64, 8], strides = [1, 1]} : vector<64x96xf32> to vector<64x8xf32>
    %103 = vector.extract_strided_slice %100 {offsets = [0, 32], sizes = [64, 8], strides = [1, 1]} : vector<64x96xf32> to vector<64x8xf32>
    %104 = vector.extract_strided_slice %100 {offsets = [0, 64], sizes = [64, 8], strides = [1, 1]} : vector<64x96xf32> to vector<64x8xf32>
    %cst_38 = arith.constant dense<0.000000e+00> : vector<64x64xf32>
    %105 = tpu.matmul %102, %103, %cst_38 {dimension_numbers = #tpu.dot_dimension_numbers<[1], [1], [0], [0], [0, 0, 1, 0], [], []>} : vector<64x8xf32>, vector<64x8xf32>, vector<64x64xf32> -> vector<64x64xf32>
    %cst_39 = arith.constant 0.353553385 : f32
    %106 = vector.broadcast %cst_39 : f32 to vector<64x64xf32>
    %107 = arith.mulf %105, %106 : vector<64x64xf32>
    %108 = arith.addf %107, %101 : vector<64x64xf32>
    %cst_40 = arith.constant dense<0xFF800000> : vector<64xf32>
    %109 = vector.multi_reduction <maximumf>, %108, %cst_40 [1] : vector<64x64xf32> to vector<64xf32>
    %110 = vector.shape_cast %109 : vector<64xf32> to vector<64x1xf32>
    %111 = vector.broadcast %110 : vector<64x1xf32> to vector<64x64xf32>
    %112 = arith.subf %108, %111 : vector<64x64xf32>
    %113 = math.exp %112 : vector<64x64xf32>
    %cst_41 = arith.constant dense<0.000000e+00> : vector<64xf32>
    %114 = vector.multi_reduction <add>, %113, %cst_41 [1] : vector<64x64xf32> to vector<64xf32>
    %115 = vector.shape_cast %114 : vector<64xf32> to vector<64x1xf32>
    %116 = vector.broadcast %115 : vector<64x1xf32> to vector<64x64xf32>
    %117 = arith.divf %113, %116 : vector<64x64xf32>
    %cst_42 = arith.constant dense<0.000000e+00> : vector<64x8xf32>
    %118 = tpu.matmul %117, %104, %cst_42 {dimension_numbers = #tpu.dot_dimension_numbers<[1], [0], [0], [1], [0, 0, 1, 1], [], []>} : vector<64x64xf32>, vector<64x8xf32>, vector<64x8xf32> -> vector<64x8xf32>
    %119 = vector.extract_strided_slice %100 {offsets = [0, 8], sizes = [64, 8], strides = [1, 1]} : vector<64x96xf32> to vector<64x8xf32>
    %120 = vector.extract_strided_slice %100 {offsets = [0, 40], sizes = [64, 8], strides = [1, 1]} : vector<64x96xf32> to vector<64x8xf32>
    %121 = vector.extract_strided_slice %100 {offsets = [0, 72], sizes = [64, 8], strides = [1, 1]} : vector<64x96xf32> to vector<64x8xf32>
    %cst_43 = arith.constant dense<0.000000e+00> : vector<64x64xf32>
    %122 = tpu.matmul %119, %120, %cst_43 {dimension_numbers = #tpu.dot_dimension_numbers<[1], [1], [0], [0], [0, 0, 1, 0], [], []>} : vector<64x8xf32>, vector<64x8xf32>, vector<64x64xf32> -> vector<64x64xf32>
    %cst_44 = arith.constant 0.353553385 : f32
    %123 = vector.broadcast %cst_44 : f32 to vector<64x64xf32>
    %124 = arith.mulf %122, %123 : vector<64x64xf32>
    %125 = arith.addf %124, %101 : vector<64x64xf32>
    %cst_45 = arith.constant dense<0xFF800000> : vector<64xf32>
    %126 = vector.multi_reduction <maximumf>, %125, %cst_45 [1] : vector<64x64xf32> to vector<64xf32>
    %127 = vector.shape_cast %126 : vector<64xf32> to vector<64x1xf32>
    %128 = vector.broadcast %127 : vector<64x1xf32> to vector<64x64xf32>
    %129 = arith.subf %125, %128 : vector<64x64xf32>
    %130 = math.exp %129 : vector<64x64xf32>
    %cst_46 = arith.constant dense<0.000000e+00> : vector<64xf32>
    %131 = vector.multi_reduction <add>, %130, %cst_46 [1] : vector<64x64xf32> to vector<64xf32>
    %132 = vector.shape_cast %131 : vector<64xf32> to vector<64x1xf32>
    %133 = vector.broadcast %132 : vector<64x1xf32> to vector<64x64xf32>
    %134 = arith.divf %130, %133 : vector<64x64xf32>
    %cst_47 = arith.constant dense<0.000000e+00> : vector<64x8xf32>
    %135 = tpu.matmul %134, %121, %cst_47 {dimension_numbers = #tpu.dot_dimension_numbers<[1], [0], [0], [1], [0, 0, 1, 1], [], []>} : vector<64x64xf32>, vector<64x8xf32>, vector<64x8xf32> -> vector<64x8xf32>
    %136 = vector.extract_strided_slice %100 {offsets = [0, 16], sizes = [64, 8], strides = [1, 1]} : vector<64x96xf32> to vector<64x8xf32>
    %137 = vector.extract_strided_slice %100 {offsets = [0, 48], sizes = [64, 8], strides = [1, 1]} : vector<64x96xf32> to vector<64x8xf32>
    %138 = vector.extract_strided_slice %100 {offsets = [0, 80], sizes = [64, 8], strides = [1, 1]} : vector<64x96xf32> to vector<64x8xf32>
    %cst_48 = arith.constant dense<0.000000e+00> : vector<64x64xf32>
    %139 = tpu.matmul %136, %137, %cst_48 {dimension_numbers = #tpu.dot_dimension_numbers<[1], [1], [0], [0], [0, 0, 1, 0], [], []>} : vector<64x8xf32>, vector<64x8xf32>, vector<64x64xf32> -> vector<64x64xf32>
    %cst_49 = arith.constant 0.353553385 : f32
    %140 = vector.broadcast %cst_49 : f32 to vector<64x64xf32>
    %141 = arith.mulf %139, %140 : vector<64x64xf32>
    %142 = arith.addf %141, %101 : vector<64x64xf32>
    %cst_50 = arith.constant dense<0xFF800000> : vector<64xf32>
    %143 = vector.multi_reduction <maximumf>, %142, %cst_50 [1] : vector<64x64xf32> to vector<64xf32>
    %144 = vector.shape_cast %143 : vector<64xf32> to vector<64x1xf32>
    %145 = vector.broadcast %144 : vector<64x1xf32> to vector<64x64xf32>
    %146 = arith.subf %142, %145 : vector<64x64xf32>
    %147 = math.exp %146 : vector<64x64xf32>
    %cst_51 = arith.constant dense<0.000000e+00> : vector<64xf32>
    %148 = vector.multi_reduction <add>, %147, %cst_51 [1] : vector<64x64xf32> to vector<64xf32>
    %149 = vector.shape_cast %148 : vector<64xf32> to vector<64x1xf32>
    %150 = vector.broadcast %149 : vector<64x1xf32> to vector<64x64xf32>
    %151 = arith.divf %147, %150 : vector<64x64xf32>
    %cst_52 = arith.constant dense<0.000000e+00> : vector<64x8xf32>
    %152 = tpu.matmul %151, %138, %cst_52 {dimension_numbers = #tpu.dot_dimension_numbers<[1], [0], [0], [1], [0, 0, 1, 1], [], []>} : vector<64x64xf32>, vector<64x8xf32>, vector<64x8xf32> -> vector<64x8xf32>
    %153 = vector.extract_strided_slice %100 {offsets = [0, 24], sizes = [64, 8], strides = [1, 1]} : vector<64x96xf32> to vector<64x8xf32>
    %154 = vector.extract_strided_slice %100 {offsets = [0, 56], sizes = [64, 8], strides = [1, 1]} : vector<64x96xf32> to vector<64x8xf32>
    %155 = vector.extract_strided_slice %100 {offsets = [0, 88], sizes = [64, 8], strides = [1, 1]} : vector<64x96xf32> to vector<64x8xf32>
    %cst_53 = arith.constant dense<0.000000e+00> : vector<64x64xf32>
    %156 = tpu.matmul %153, %154, %cst_53 {dimension_numbers = #tpu.dot_dimension_numbers<[1], [1], [0], [0], [0, 0, 1, 0], [], []>} : vector<64x8xf32>, vector<64x8xf32>, vector<64x64xf32> -> vector<64x64xf32>
    %cst_54 = arith.constant 0.353553385 : f32
    %157 = vector.broadcast %cst_54 : f32 to vector<64x64xf32>
    %158 = arith.mulf %156, %157 : vector<64x64xf32>
    %159 = arith.addf %158, %101 : vector<64x64xf32>
    %cst_55 = arith.constant dense<0xFF800000> : vector<64xf32>
    %160 = vector.multi_reduction <maximumf>, %159, %cst_55 [1] : vector<64x64xf32> to vector<64xf32>
    %161 = vector.shape_cast %160 : vector<64xf32> to vector<64x1xf32>
    %162 = vector.broadcast %161 : vector<64x1xf32> to vector<64x64xf32>
    %163 = arith.subf %159, %162 : vector<64x64xf32>
    %164 = math.exp %163 : vector<64x64xf32>
    %cst_56 = arith.constant dense<0.000000e+00> : vector<64xf32>
    %165 = vector.multi_reduction <add>, %164, %cst_56 [1] : vector<64x64xf32> to vector<64xf32>
    %166 = vector.shape_cast %165 : vector<64xf32> to vector<64x1xf32>
    %167 = vector.broadcast %166 : vector<64x1xf32> to vector<64x64xf32>
    %168 = arith.divf %164, %167 : vector<64x64xf32>
    %cst_57 = arith.constant dense<0.000000e+00> : vector<64x8xf32>
    %169 = tpu.matmul %168, %155, %cst_57 {dimension_numbers = #tpu.dot_dimension_numbers<[1], [0], [0], [1], [0, 0, 1, 1], [], []>} : vector<64x64xf32>, vector<64x8xf32>, vector<64x8xf32> -> vector<64x8xf32>
    %170 = tpu.concatenate %118, %135, %152, %169 in 1 : vector<64x8xf32>, vector<64x8xf32>, vector<64x8xf32>, vector<64x8xf32> -> vector<64x32xf32>
    %171 = vector.extract_strided_slice %28 {offsets = [0, 192], sizes = [64, 96], strides = [1, 1]} : vector<64x384xf32> to vector<64x96xf32>
    %c0_58 = arith.constant 0 : index
    %c0_59 = arith.constant 0 : index
    %172 = vector.load %arg8[%c0_58, %c0_59] : memref<64x64xf32, #tpu.memory_space<vmem>>, vector<64x64xf32>
    %173 = vector.extract_strided_slice %171 {offsets = [0, 0], sizes = [64, 8], strides = [1, 1]} : vector<64x96xf32> to vector<64x8xf32>
    %174 = vector.extract_strided_slice %171 {offsets = [0, 32], sizes = [64, 8], strides = [1, 1]} : vector<64x96xf32> to vector<64x8xf32>
    %175 = vector.extract_strided_slice %171 {offsets = [0, 64], sizes = [64, 8], strides = [1, 1]} : vector<64x96xf32> to vector<64x8xf32>
    %cst_60 = arith.constant dense<0.000000e+00> : vector<64x64xf32>
    %176 = tpu.matmul %173, %174, %cst_60 {dimension_numbers = #tpu.dot_dimension_numbers<[1], [1], [0], [0], [0, 0, 1, 0], [], []>} : vector<64x8xf32>, vector<64x8xf32>, vector<64x64xf32> -> vector<64x64xf32>
    %cst_61 = arith.constant 0.353553385 : f32
    %177 = vector.broadcast %cst_61 : f32 to vector<64x64xf32>
    %178 = arith.mulf %176, %177 : vector<64x64xf32>
    %179 = arith.addf %178, %172 : vector<64x64xf32>
    %cst_62 = arith.constant dense<0xFF800000> : vector<64xf32>
    %180 = vector.multi_reduction <maximumf>, %179, %cst_62 [1] : vector<64x64xf32> to vector<64xf32>
    %181 = vector.shape_cast %180 : vector<64xf32> to vector<64x1xf32>
    %182 = vector.broadcast %181 : vector<64x1xf32> to vector<64x64xf32>
    %183 = arith.subf %179, %182 : vector<64x64xf32>
    %184 = math.exp %183 : vector<64x64xf32>
    %cst_63 = arith.constant dense<0.000000e+00> : vector<64xf32>
    %185 = vector.multi_reduction <add>, %184, %cst_63 [1] : vector<64x64xf32> to vector<64xf32>
    %186 = vector.shape_cast %185 : vector<64xf32> to vector<64x1xf32>
    %187 = vector.broadcast %186 : vector<64x1xf32> to vector<64x64xf32>
    %188 = arith.divf %184, %187 : vector<64x64xf32>
    %cst_64 = arith.constant dense<0.000000e+00> : vector<64x8xf32>
    %189 = tpu.matmul %188, %175, %cst_64 {dimension_numbers = #tpu.dot_dimension_numbers<[1], [0], [0], [1], [0, 0, 1, 1], [], []>} : vector<64x64xf32>, vector<64x8xf32>, vector<64x8xf32> -> vector<64x8xf32>
    %190 = vector.extract_strided_slice %171 {offsets = [0, 8], sizes = [64, 8], strides = [1, 1]} : vector<64x96xf32> to vector<64x8xf32>
    %191 = vector.extract_strided_slice %171 {offsets = [0, 40], sizes = [64, 8], strides = [1, 1]} : vector<64x96xf32> to vector<64x8xf32>
    %192 = vector.extract_strided_slice %171 {offsets = [0, 72], sizes = [64, 8], strides = [1, 1]} : vector<64x96xf32> to vector<64x8xf32>
    %cst_65 = arith.constant dense<0.000000e+00> : vector<64x64xf32>
    %193 = tpu.matmul %190, %191, %cst_65 {dimension_numbers = #tpu.dot_dimension_numbers<[1], [1], [0], [0], [0, 0, 1, 0], [], []>} : vector<64x8xf32>, vector<64x8xf32>, vector<64x64xf32> -> vector<64x64xf32>
    %cst_66 = arith.constant 0.353553385 : f32
    %194 = vector.broadcast %cst_66 : f32 to vector<64x64xf32>
    %195 = arith.mulf %193, %194 : vector<64x64xf32>
    %196 = arith.addf %195, %172 : vector<64x64xf32>
    %cst_67 = arith.constant dense<0xFF800000> : vector<64xf32>
    %197 = vector.multi_reduction <maximumf>, %196, %cst_67 [1] : vector<64x64xf32> to vector<64xf32>
    %198 = vector.shape_cast %197 : vector<64xf32> to vector<64x1xf32>
    %199 = vector.broadcast %198 : vector<64x1xf32> to vector<64x64xf32>
    %200 = arith.subf %196, %199 : vector<64x64xf32>
    %201 = math.exp %200 : vector<64x64xf32>
    %cst_68 = arith.constant dense<0.000000e+00> : vector<64xf32>
    %202 = vector.multi_reduction <add>, %201, %cst_68 [1] : vector<64x64xf32> to vector<64xf32>
    %203 = vector.shape_cast %202 : vector<64xf32> to vector<64x1xf32>
    %204 = vector.broadcast %203 : vector<64x1xf32> to vector<64x64xf32>
    %205 = arith.divf %201, %204 : vector<64x64xf32>
    %cst_69 = arith.constant dense<0.000000e+00> : vector<64x8xf32>
    %206 = tpu.matmul %205, %192, %cst_69 {dimension_numbers = #tpu.dot_dimension_numbers<[1], [0], [0], [1], [0, 0, 1, 1], [], []>} : vector<64x64xf32>, vector<64x8xf32>, vector<64x8xf32> -> vector<64x8xf32>
    %207 = vector.extract_strided_slice %171 {offsets = [0, 16], sizes = [64, 8], strides = [1, 1]} : vector<64x96xf32> to vector<64x8xf32>
    %208 = vector.extract_strided_slice %171 {offsets = [0, 48], sizes = [64, 8], strides = [1, 1]} : vector<64x96xf32> to vector<64x8xf32>
    %209 = vector.extract_strided_slice %171 {offsets = [0, 80], sizes = [64, 8], strides = [1, 1]} : vector<64x96xf32> to vector<64x8xf32>
    %cst_70 = arith.constant dense<0.000000e+00> : vector<64x64xf32>
    %210 = tpu.matmul %207, %208, %cst_70 {dimension_numbers = #tpu.dot_dimension_numbers<[1], [1], [0], [0], [0, 0, 1, 0], [], []>} : vector<64x8xf32>, vector<64x8xf32>, vector<64x64xf32> -> vector<64x64xf32>
    %cst_71 = arith.constant 0.353553385 : f32
    %211 = vector.broadcast %cst_71 : f32 to vector<64x64xf32>
    %212 = arith.mulf %210, %211 : vector<64x64xf32>
    %213 = arith.addf %212, %172 : vector<64x64xf32>
    %cst_72 = arith.constant dense<0xFF800000> : vector<64xf32>
    %214 = vector.multi_reduction <maximumf>, %213, %cst_72 [1] : vector<64x64xf32> to vector<64xf32>
    %215 = vector.shape_cast %214 : vector<64xf32> to vector<64x1xf32>
    %216 = vector.broadcast %215 : vector<64x1xf32> to vector<64x64xf32>
    %217 = arith.subf %213, %216 : vector<64x64xf32>
    %218 = math.exp %217 : vector<64x64xf32>
    %cst_73 = arith.constant dense<0.000000e+00> : vector<64xf32>
    %219 = vector.multi_reduction <add>, %218, %cst_73 [1] : vector<64x64xf32> to vector<64xf32>
    %220 = vector.shape_cast %219 : vector<64xf32> to vector<64x1xf32>
    %221 = vector.broadcast %220 : vector<64x1xf32> to vector<64x64xf32>
    %222 = arith.divf %218, %221 : vector<64x64xf32>
    %cst_74 = arith.constant dense<0.000000e+00> : vector<64x8xf32>
    %223 = tpu.matmul %222, %209, %cst_74 {dimension_numbers = #tpu.dot_dimension_numbers<[1], [0], [0], [1], [0, 0, 1, 1], [], []>} : vector<64x64xf32>, vector<64x8xf32>, vector<64x8xf32> -> vector<64x8xf32>
    %224 = vector.extract_strided_slice %171 {offsets = [0, 24], sizes = [64, 8], strides = [1, 1]} : vector<64x96xf32> to vector<64x8xf32>
    %225 = vector.extract_strided_slice %171 {offsets = [0, 56], sizes = [64, 8], strides = [1, 1]} : vector<64x96xf32> to vector<64x8xf32>
    %226 = vector.extract_strided_slice %171 {offsets = [0, 88], sizes = [64, 8], strides = [1, 1]} : vector<64x96xf32> to vector<64x8xf32>
    %cst_75 = arith.constant dense<0.000000e+00> : vector<64x64xf32>
    %227 = tpu.matmul %224, %225, %cst_75 {dimension_numbers = #tpu.dot_dimension_numbers<[1], [1], [0], [0], [0, 0, 1, 0], [], []>} : vector<64x8xf32>, vector<64x8xf32>, vector<64x64xf32> -> vector<64x64xf32>
    %cst_76 = arith.constant 0.353553385 : f32
    %228 = vector.broadcast %cst_76 : f32 to vector<64x64xf32>
    %229 = arith.mulf %227, %228 : vector<64x64xf32>
    %230 = arith.addf %229, %172 : vector<64x64xf32>
    %cst_77 = arith.constant dense<0xFF800000> : vector<64xf32>
    %231 = vector.multi_reduction <maximumf>, %230, %cst_77 [1] : vector<64x64xf32> to vector<64xf32>
    %232 = vector.shape_cast %231 : vector<64xf32> to vector<64x1xf32>
    %233 = vector.broadcast %232 : vector<64x1xf32> to vector<64x64xf32>
    %234 = arith.subf %230, %233 : vector<64x64xf32>
    %235 = math.exp %234 : vector<64x64xf32>
    %cst_78 = arith.constant dense<0.000000e+00> : vector<64xf32>
    %236 = vector.multi_reduction <add>, %235, %cst_78 [1] : vector<64x64xf32> to vector<64xf32>
    %237 = vector.shape_cast %236 : vector<64xf32> to vector<64x1xf32>
    %238 = vector.broadcast %237 : vector<64x1xf32> to vector<64x64xf32>
    %239 = arith.divf %235, %238 : vector<64x64xf32>
    %cst_79 = arith.constant dense<0.000000e+00> : vector<64x8xf32>
    %240 = tpu.matmul %239, %226, %cst_79 {dimension_numbers = #tpu.dot_dimension_numbers<[1], [0], [0], [1], [0, 0, 1, 1], [], []>} : vector<64x64xf32>, vector<64x8xf32>, vector<64x8xf32> -> vector<64x8xf32>
    %241 = tpu.concatenate %189, %206, %223, %240 in 1 : vector<64x8xf32>, vector<64x8xf32>, vector<64x8xf32>, vector<64x8xf32> -> vector<64x32xf32>
    %242 = tpu.concatenate %99, %170, %241 in 1 : vector<64x32xf32>, vector<64x32xf32>, vector<64x32xf32> -> vector<64x96xf32>
    %cst_80 = arith.constant dense<0.000000e+00> : vector<32xf32>
    %243 = vector.multi_reduction <add>, %22, %cst_80 [0] : vector<64x32xf32> to vector<32xf32>
    %244 = vector.shape_cast %243 : vector<32xf32> to vector<1x32xf32>
    %cst_81 = arith.constant 6.400000e+01 : f32
    %245 = vector.broadcast %cst_81 : f32 to vector<1x32xf32>
    %246 = arith.divf %244, %245 : vector<1x32xf32>
    %c0_82 = arith.constant 0 : index
    %c0_83 = arith.constant 0 : index
    %247 = vector.load %arg20[%c0_82, %c0_83] : memref<32x32xf32, #tpu.memory_space<vmem>>, vector<32x32xf32>
    %cst_84 = arith.constant dense<0.000000e+00> : vector<1x32xf32>
    %248 = tpu.matmul %246, %247, %cst_84 {dimension_numbers = #tpu.dot_dimension_numbers<[1], [0], [0], [1], [0, 0, 1, 1], [], []>} : vector<1x32xf32>, vector<32x32xf32>, vector<1x32xf32> -> vector<1x32xf32>
    %249 = arith.negf %248 : vector<1x32xf32>
    %250 = math.exp %249 : vector<1x32xf32>
    %cst_85 = arith.constant 1.000000e+00 : f32
    %251 = vector.broadcast %cst_85 : f32 to vector<1x32xf32>
    %252 = arith.addf %251, %250 : vector<1x32xf32>
    %253 = arith.divf %251, %252 : vector<1x32xf32>
    %254 = vector.broadcast %253 : vector<1x32xf32> to vector<64x32xf32>
    %255 = arith.mulf %22, %254 : vector<64x32xf32>
    %256 = arith.addf %0, %255 : vector<64x32xf32>
    %257 = vector.extract_strided_slice %28 {offsets = [0, 288], sizes = [64, 96], strides = [1, 1]} : vector<64x384xf32> to vector<64x96xf32>
    %c0_86 = arith.constant 0 : index
    %c0_87 = arith.constant 0 : index
    %258 = vector.load %arg9[%c0_86, %c0_87] : memref<1x96xf32, #tpu.memory_space<vmem>>, vector<1x96xf32>
    %259 = vector.shape_cast %258 : vector<1x96xf32> to vector<1x96xf32>
    %260 = vector.broadcast %259 : vector<1x96xf32> to vector<8x96xf32>
    %261 = tpu.concatenate %257, %260 in 0 : vector<64x96xf32>, vector<8x96xf32> -> vector<72x96xf32>
    %c0_88 = arith.constant 0 : index
    %c0_89 = arith.constant 0 : index
    %262 = vector.load %arg10[%c0_88, %c0_89] : memref<72x72xf32, #tpu.memory_space<vmem>>, vector<72x72xf32>
    %263 = vector.extract_strided_slice %261 {offsets = [0, 0], sizes = [72, 8], strides = [1, 1]} : vector<72x96xf32> to vector<72x8xf32>
    %264 = vector.extract_strided_slice %261 {offsets = [0, 32], sizes = [72, 8], strides = [1, 1]} : vector<72x96xf32> to vector<72x8xf32>
    %265 = vector.extract_strided_slice %261 {offsets = [0, 64], sizes = [72, 8], strides = [1, 1]} : vector<72x96xf32> to vector<72x8xf32>
    %cst_90 = arith.constant dense<0.000000e+00> : vector<72x72xf32>
    %266 = tpu.matmul %263, %264, %cst_90 {dimension_numbers = #tpu.dot_dimension_numbers<[1], [1], [0], [0], [0, 0, 1, 0], [], []>} : vector<72x8xf32>, vector<72x8xf32>, vector<72x72xf32> -> vector<72x72xf32>
    %cst_91 = arith.constant 0.353553385 : f32
    %267 = vector.broadcast %cst_91 : f32 to vector<72x72xf32>
    %268 = arith.mulf %266, %267 : vector<72x72xf32>
    %269 = arith.addf %268, %262 : vector<72x72xf32>
    %cst_92 = arith.constant dense<0xFF800000> : vector<72xf32>
    %270 = vector.multi_reduction <maximumf>, %269, %cst_92 [1] : vector<72x72xf32> to vector<72xf32>
    %271 = vector.shape_cast %270 : vector<72xf32> to vector<72x1xf32>
    %272 = vector.broadcast %271 : vector<72x1xf32> to vector<72x72xf32>
    %273 = arith.subf %269, %272 : vector<72x72xf32>
    %274 = math.exp %273 : vector<72x72xf32>
    %cst_93 = arith.constant dense<0.000000e+00> : vector<72xf32>
    %275 = vector.multi_reduction <add>, %274, %cst_93 [1] : vector<72x72xf32> to vector<72xf32>
    %276 = vector.shape_cast %275 : vector<72xf32> to vector<72x1xf32>
    %277 = vector.broadcast %276 : vector<72x1xf32> to vector<72x72xf32>
    %278 = arith.divf %274, %277 : vector<72x72xf32>
    %cst_94 = arith.constant dense<0.000000e+00> : vector<72x8xf32>
    %279 = tpu.matmul %278, %265, %cst_94 {dimension_numbers = #tpu.dot_dimension_numbers<[1], [0], [0], [1], [0, 0, 1, 1], [], []>} : vector<72x72xf32>, vector<72x8xf32>, vector<72x8xf32> -> vector<72x8xf32>
    %280 = vector.extract_strided_slice %261 {offsets = [0, 8], sizes = [72, 8], strides = [1, 1]} : vector<72x96xf32> to vector<72x8xf32>
    %281 = vector.extract_strided_slice %261 {offsets = [0, 40], sizes = [72, 8], strides = [1, 1]} : vector<72x96xf32> to vector<72x8xf32>
    %282 = vector.extract_strided_slice %261 {offsets = [0, 72], sizes = [72, 8], strides = [1, 1]} : vector<72x96xf32> to vector<72x8xf32>
    %cst_95 = arith.constant dense<0.000000e+00> : vector<72x72xf32>
    %283 = tpu.matmul %280, %281, %cst_95 {dimension_numbers = #tpu.dot_dimension_numbers<[1], [1], [0], [0], [0, 0, 1, 0], [], []>} : vector<72x8xf32>, vector<72x8xf32>, vector<72x72xf32> -> vector<72x72xf32>
    %cst_96 = arith.constant 0.353553385 : f32
    %284 = vector.broadcast %cst_96 : f32 to vector<72x72xf32>
    %285 = arith.mulf %283, %284 : vector<72x72xf32>
    %286 = arith.addf %285, %262 : vector<72x72xf32>
    %cst_97 = arith.constant dense<0xFF800000> : vector<72xf32>
    %287 = vector.multi_reduction <maximumf>, %286, %cst_97 [1] : vector<72x72xf32> to vector<72xf32>
    %288 = vector.shape_cast %287 : vector<72xf32> to vector<72x1xf32>
    %289 = vector.broadcast %288 : vector<72x1xf32> to vector<72x72xf32>
    %290 = arith.subf %286, %289 : vector<72x72xf32>
    %291 = math.exp %290 : vector<72x72xf32>
    %cst_98 = arith.constant dense<0.000000e+00> : vector<72xf32>
    %292 = vector.multi_reduction <add>, %291, %cst_98 [1] : vector<72x72xf32> to vector<72xf32>
    %293 = vector.shape_cast %292 : vector<72xf32> to vector<72x1xf32>
    %294 = vector.broadcast %293 : vector<72x1xf32> to vector<72x72xf32>
    %295 = arith.divf %291, %294 : vector<72x72xf32>
    %cst_99 = arith.constant dense<0.000000e+00> : vector<72x8xf32>
    %296 = tpu.matmul %295, %282, %cst_99 {dimension_numbers = #tpu.dot_dimension_numbers<[1], [0], [0], [1], [0, 0, 1, 1], [], []>} : vector<72x72xf32>, vector<72x8xf32>, vector<72x8xf32> -> vector<72x8xf32>
    %297 = vector.extract_strided_slice %261 {offsets = [0, 16], sizes = [72, 8], strides = [1, 1]} : vector<72x96xf32> to vector<72x8xf32>
    %298 = vector.extract_strided_slice %261 {offsets = [0, 48], sizes = [72, 8], strides = [1, 1]} : vector<72x96xf32> to vector<72x8xf32>
    %299 = vector.extract_strided_slice %261 {offsets = [0, 80], sizes = [72, 8], strides = [1, 1]} : vector<72x96xf32> to vector<72x8xf32>
    %cst_100 = arith.constant dense<0.000000e+00> : vector<72x72xf32>
    %300 = tpu.matmul %297, %298, %cst_100 {dimension_numbers = #tpu.dot_dimension_numbers<[1], [1], [0], [0], [0, 0, 1, 0], [], []>} : vector<72x8xf32>, vector<72x8xf32>, vector<72x72xf32> -> vector<72x72xf32>
    %cst_101 = arith.constant 0.353553385 : f32
    %301 = vector.broadcast %cst_101 : f32 to vector<72x72xf32>
    %302 = arith.mulf %300, %301 : vector<72x72xf32>
    %303 = arith.addf %302, %262 : vector<72x72xf32>
    %cst_102 = arith.constant dense<0xFF800000> : vector<72xf32>
    %304 = vector.multi_reduction <maximumf>, %303, %cst_102 [1] : vector<72x72xf32> to vector<72xf32>
    %305 = vector.shape_cast %304 : vector<72xf32> to vector<72x1xf32>
    %306 = vector.broadcast %305 : vector<72x1xf32> to vector<72x72xf32>
    %307 = arith.subf %303, %306 : vector<72x72xf32>
    %308 = math.exp %307 : vector<72x72xf32>
    %cst_103 = arith.constant dense<0.000000e+00> : vector<72xf32>
    %309 = vector.multi_reduction <add>, %308, %cst_103 [1] : vector<72x72xf32> to vector<72xf32>
    %310 = vector.shape_cast %309 : vector<72xf32> to vector<72x1xf32>
    %311 = vector.broadcast %310 : vector<72x1xf32> to vector<72x72xf32>
    %312 = arith.divf %308, %311 : vector<72x72xf32>
    %cst_104 = arith.constant dense<0.000000e+00> : vector<72x8xf32>
    %313 = tpu.matmul %312, %299, %cst_104 {dimension_numbers = #tpu.dot_dimension_numbers<[1], [0], [0], [1], [0, 0, 1, 1], [], []>} : vector<72x72xf32>, vector<72x8xf32>, vector<72x8xf32> -> vector<72x8xf32>
    %314 = vector.extract_strided_slice %261 {offsets = [0, 24], sizes = [72, 8], strides = [1, 1]} : vector<72x96xf32> to vector<72x8xf32>
    %315 = vector.extract_strided_slice %261 {offsets = [0, 56], sizes = [72, 8], strides = [1, 1]} : vector<72x96xf32> to vector<72x8xf32>
    %316 = vector.extract_strided_slice %261 {offsets = [0, 88], sizes = [72, 8], strides = [1, 1]} : vector<72x96xf32> to vector<72x8xf32>
    %cst_105 = arith.constant dense<0.000000e+00> : vector<72x72xf32>
    %317 = tpu.matmul %314, %315, %cst_105 {dimension_numbers = #tpu.dot_dimension_numbers<[1], [1], [0], [0], [0, 0, 1, 0], [], []>} : vector<72x8xf32>, vector<72x8xf32>, vector<72x72xf32> -> vector<72x72xf32>
    %cst_106 = arith.constant 0.353553385 : f32
    %318 = vector.broadcast %cst_106 : f32 to vector<72x72xf32>
    %319 = arith.mulf %317, %318 : vector<72x72xf32>
    %320 = arith.addf %319, %262 : vector<72x72xf32>
    %cst_107 = arith.constant dense<0xFF800000> : vector<72xf32>
    %321 = vector.multi_reduction <maximumf>, %320, %cst_107 [1] : vector<72x72xf32> to vector<72xf32>
    %322 = vector.shape_cast %321 : vector<72xf32> to vector<72x1xf32>
    %323 = vector.broadcast %322 : vector<72x1xf32> to vector<72x72xf32>
    %324 = arith.subf %320, %323 : vector<72x72xf32>
    %325 = math.exp %324 : vector<72x72xf32>
    %cst_108 = arith.constant dense<0.000000e+00> : vector<72xf32>
    %326 = vector.multi_reduction <add>, %325, %cst_108 [1] : vector<72x72xf32> to vector<72xf32>
    %327 = vector.shape_cast %326 : vector<72xf32> to vector<72x1xf32>
    %328 = vector.broadcast %327 : vector<72x1xf32> to vector<72x72xf32>
    %329 = arith.divf %325, %328 : vector<72x72xf32>
    %cst_109 = arith.constant dense<0.000000e+00> : vector<72x8xf32>
    %330 = tpu.matmul %329, %316, %cst_109 {dimension_numbers = #tpu.dot_dimension_numbers<[1], [0], [0], [1], [0, 0, 1, 1], [], []>} : vector<72x72xf32>, vector<72x8xf32>, vector<72x8xf32> -> vector<72x8xf32>
    %331 = tpu.concatenate %279, %296, %313, %330 in 1 : vector<72x8xf32>, vector<72x8xf32>, vector<72x8xf32>, vector<72x8xf32> -> vector<72x32xf32>
    %332 = vector.extract_strided_slice %331 {offsets = [0, 0], sizes = [64, 32], strides = [1, 1]} : vector<72x32xf32> to vector<64x32xf32>
    %333 = vector.extract_strided_slice %331 {offsets = [64, 0], sizes = [8, 32], strides = [1, 1]} : vector<72x32xf32> to vector<8x32xf32>
    %c0_110 = arith.constant 0 : index
    %c0_111 = arith.constant 0 : index
    %334 = vector.load %arg14[%c0_110, %c0_111] : memref<1x32xf32, #tpu.memory_space<vmem>>, vector<1x32xf32>
    %c0_112 = arith.constant 0 : index
    %c0_113 = arith.constant 0 : index
    %335 = vector.load %arg15[%c0_112, %c0_113] : memref<1x32xf32, #tpu.memory_space<vmem>>, vector<1x32xf32>
    %336 = vector.extract_strided_slice %333 {offsets = [0, 0], sizes = [8, 8], strides = [1, 1]} : vector<8x32xf32> to vector<8x8xf32>
    %cst_114 = arith.constant dense<0.000000e+00> : vector<8xf32>
    %337 = vector.multi_reduction <add>, %336, %cst_114 [1] : vector<8x8xf32> to vector<8xf32>
    %338 = vector.shape_cast %337 : vector<8xf32> to vector<8x1xf32>
    %cst_115 = arith.constant 8.000000e+00 : f32
    %339 = vector.broadcast %cst_115 : f32 to vector<8x1xf32>
    %340 = arith.divf %338, %339 : vector<8x1xf32>
    %341 = vector.broadcast %340 : vector<8x1xf32> to vector<8x8xf32>
    %342 = arith.subf %336, %341 : vector<8x8xf32>
    %343 = arith.mulf %342, %342 : vector<8x8xf32>
    %cst_116 = arith.constant dense<0.000000e+00> : vector<8xf32>
    %344 = vector.multi_reduction <add>, %343, %cst_116 [1] : vector<8x8xf32> to vector<8xf32>
    %345 = vector.shape_cast %344 : vector<8xf32> to vector<8x1xf32>
    %cst_117 = arith.constant 8.000000e+00 : f32
    %346 = vector.broadcast %cst_117 : f32 to vector<8x1xf32>
    %347 = arith.divf %345, %346 : vector<8x1xf32>
    %348 = vector.broadcast %340 : vector<8x1xf32> to vector<8x8xf32>
    %349 = arith.subf %336, %348 : vector<8x8xf32>
    %cst_118 = arith.constant 9.99999974E-6 : f32
    %350 = vector.broadcast %cst_118 : f32 to vector<8x1xf32>
    %351 = arith.addf %347, %350 : vector<8x1xf32>
    %352 = math.rsqrt %351 : vector<8x1xf32>
    %353 = vector.broadcast %352 : vector<8x1xf32> to vector<8x8xf32>
    %354 = arith.mulf %349, %353 : vector<8x8xf32>
    %355 = vector.extract_strided_slice %334 {offsets = [0, 0], sizes = [1, 8], strides = [1, 1]} : vector<1x32xf32> to vector<1x8xf32>
    %356 = vector.broadcast %355 : vector<1x8xf32> to vector<8x8xf32>
    %357 = arith.mulf %354, %356 : vector<8x8xf32>
    %358 = vector.extract_strided_slice %335 {offsets = [0, 0], sizes = [1, 8], strides = [1, 1]} : vector<1x32xf32> to vector<1x8xf32>
    %359 = vector.broadcast %358 : vector<1x8xf32> to vector<8x8xf32>
    %360 = arith.addf %357, %359 : vector<8x8xf32>
    %361 = vector.extract_strided_slice %333 {offsets = [0, 8], sizes = [8, 8], strides = [1, 1]} : vector<8x32xf32> to vector<8x8xf32>
    %cst_119 = arith.constant dense<0.000000e+00> : vector<8xf32>
    %362 = vector.multi_reduction <add>, %361, %cst_119 [1] : vector<8x8xf32> to vector<8xf32>
    %363 = vector.shape_cast %362 : vector<8xf32> to vector<8x1xf32>
    %cst_120 = arith.constant 8.000000e+00 : f32
    %364 = vector.broadcast %cst_120 : f32 to vector<8x1xf32>
    %365 = arith.divf %363, %364 : vector<8x1xf32>
    %366 = vector.broadcast %365 : vector<8x1xf32> to vector<8x8xf32>
    %367 = arith.subf %361, %366 : vector<8x8xf32>
    %368 = arith.mulf %367, %367 : vector<8x8xf32>
    %cst_121 = arith.constant dense<0.000000e+00> : vector<8xf32>
    %369 = vector.multi_reduction <add>, %368, %cst_121 [1] : vector<8x8xf32> to vector<8xf32>
    %370 = vector.shape_cast %369 : vector<8xf32> to vector<8x1xf32>
    %cst_122 = arith.constant 8.000000e+00 : f32
    %371 = vector.broadcast %cst_122 : f32 to vector<8x1xf32>
    %372 = arith.divf %370, %371 : vector<8x1xf32>
    %373 = vector.broadcast %365 : vector<8x1xf32> to vector<8x8xf32>
    %374 = arith.subf %361, %373 : vector<8x8xf32>
    %cst_123 = arith.constant 9.99999974E-6 : f32
    %375 = vector.broadcast %cst_123 : f32 to vector<8x1xf32>
    %376 = arith.addf %372, %375 : vector<8x1xf32>
    %377 = math.rsqrt %376 : vector<8x1xf32>
    %378 = vector.broadcast %377 : vector<8x1xf32> to vector<8x8xf32>
    %379 = arith.mulf %374, %378 : vector<8x8xf32>
    %380 = vector.extract_strided_slice %334 {offsets = [0, 8], sizes = [1, 8], strides = [1, 1]} : vector<1x32xf32> to vector<1x8xf32>
    %381 = vector.broadcast %380 : vector<1x8xf32> to vector<8x8xf32>
    %382 = arith.mulf %379, %381 : vector<8x8xf32>
    %383 = vector.extract_strided_slice %335 {offsets = [0, 8], sizes = [1, 8], strides = [1, 1]} : vector<1x32xf32> to vector<1x8xf32>
    %384 = vector.broadcast %383 : vector<1x8xf32> to vector<8x8xf32>
    %385 = arith.addf %382, %384 : vector<8x8xf32>
    %386 = vector.extract_strided_slice %333 {offsets = [0, 16], sizes = [8, 8], strides = [1, 1]} : vector<8x32xf32> to vector<8x8xf32>
    %cst_124 = arith.constant dense<0.000000e+00> : vector<8xf32>
    %387 = vector.multi_reduction <add>, %386, %cst_124 [1] : vector<8x8xf32> to vector<8xf32>
    %388 = vector.shape_cast %387 : vector<8xf32> to vector<8x1xf32>
    %cst_125 = arith.constant 8.000000e+00 : f32
    %389 = vector.broadcast %cst_125 : f32 to vector<8x1xf32>
    %390 = arith.divf %388, %389 : vector<8x1xf32>
    %391 = vector.broadcast %390 : vector<8x1xf32> to vector<8x8xf32>
    %392 = arith.subf %386, %391 : vector<8x8xf32>
    %393 = arith.mulf %392, %392 : vector<8x8xf32>
    %cst_126 = arith.constant dense<0.000000e+00> : vector<8xf32>
    %394 = vector.multi_reduction <add>, %393, %cst_126 [1] : vector<8x8xf32> to vector<8xf32>
    %395 = vector.shape_cast %394 : vector<8xf32> to vector<8x1xf32>
    %cst_127 = arith.constant 8.000000e+00 : f32
    %396 = vector.broadcast %cst_127 : f32 to vector<8x1xf32>
    %397 = arith.divf %395, %396 : vector<8x1xf32>
    %398 = vector.broadcast %390 : vector<8x1xf32> to vector<8x8xf32>
    %399 = arith.subf %386, %398 : vector<8x8xf32>
    %cst_128 = arith.constant 9.99999974E-6 : f32
    %400 = vector.broadcast %cst_128 : f32 to vector<8x1xf32>
    %401 = arith.addf %397, %400 : vector<8x1xf32>
    %402 = math.rsqrt %401 : vector<8x1xf32>
    %403 = vector.broadcast %402 : vector<8x1xf32> to vector<8x8xf32>
    %404 = arith.mulf %399, %403 : vector<8x8xf32>
    %405 = vector.extract_strided_slice %334 {offsets = [0, 16], sizes = [1, 8], strides = [1, 1]} : vector<1x32xf32> to vector<1x8xf32>
    %406 = vector.broadcast %405 : vector<1x8xf32> to vector<8x8xf32>
    %407 = arith.mulf %404, %406 : vector<8x8xf32>
    %408 = vector.extract_strided_slice %335 {offsets = [0, 16], sizes = [1, 8], strides = [1, 1]} : vector<1x32xf32> to vector<1x8xf32>
    %409 = vector.broadcast %408 : vector<1x8xf32> to vector<8x8xf32>
    %410 = arith.addf %407, %409 : vector<8x8xf32>
    %411 = vector.extract_strided_slice %333 {offsets = [0, 24], sizes = [8, 8], strides = [1, 1]} : vector<8x32xf32> to vector<8x8xf32>
    %cst_129 = arith.constant dense<0.000000e+00> : vector<8xf32>
    %412 = vector.multi_reduction <add>, %411, %cst_129 [1] : vector<8x8xf32> to vector<8xf32>
    %413 = vector.shape_cast %412 : vector<8xf32> to vector<8x1xf32>
    %cst_130 = arith.constant 8.000000e+00 : f32
    %414 = vector.broadcast %cst_130 : f32 to vector<8x1xf32>
    %415 = arith.divf %413, %414 : vector<8x1xf32>
    %416 = vector.broadcast %415 : vector<8x1xf32> to vector<8x8xf32>
    %417 = arith.subf %411, %416 : vector<8x8xf32>
    %418 = arith.mulf %417, %417 : vector<8x8xf32>
    %cst_131 = arith.constant dense<0.000000e+00> : vector<8xf32>
    %419 = vector.multi_reduction <add>, %418, %cst_131 [1] : vector<8x8xf32> to vector<8xf32>
    %420 = vector.shape_cast %419 : vector<8xf32> to vector<8x1xf32>
    %cst_132 = arith.constant 8.000000e+00 : f32
    %421 = vector.broadcast %cst_132 : f32 to vector<8x1xf32>
    %422 = arith.divf %420, %421 : vector<8x1xf32>
    %423 = vector.broadcast %415 : vector<8x1xf32> to vector<8x8xf32>
    %424 = arith.subf %411, %423 : vector<8x8xf32>
    %cst_133 = arith.constant 9.99999974E-6 : f32
    %425 = vector.broadcast %cst_133 : f32 to vector<8x1xf32>
    %426 = arith.addf %422, %425 : vector<8x1xf32>
    %427 = math.rsqrt %426 : vector<8x1xf32>
    %428 = vector.broadcast %427 : vector<8x1xf32> to vector<8x8xf32>
    %429 = arith.mulf %424, %428 : vector<8x8xf32>
    %430 = vector.extract_strided_slice %334 {offsets = [0, 24], sizes = [1, 8], strides = [1, 1]} : vector<1x32xf32> to vector<1x8xf32>
    %431 = vector.broadcast %430 : vector<1x8xf32> to vector<8x8xf32>
    %432 = arith.mulf %429, %431 : vector<8x8xf32>
    %433 = vector.extract_strided_slice %335 {offsets = [0, 24], sizes = [1, 8], strides = [1, 1]} : vector<1x32xf32> to vector<1x8xf32>
    %434 = vector.broadcast %433 : vector<1x8xf32> to vector<8x8xf32>
    %435 = arith.addf %432, %434 : vector<8x8xf32>
    %436 = tpu.concatenate %360, %385, %410, %435 in 1 : vector<8x8xf32>, vector<8x8xf32>, vector<8x8xf32>, vector<8x8xf32> -> vector<8x32xf32>
    %437 = arith.mulf %436, %436 : vector<8x32xf32>
    %438 = arith.mulf %436, %437 : vector<8x32xf32>
    %cst_134 = arith.constant 4.471500e-02 : f32
    %439 = vector.broadcast %cst_134 : f32 to vector<8x32xf32>
    %440 = arith.mulf %439, %438 : vector<8x32xf32>
    %441 = arith.addf %436, %440 : vector<8x32xf32>
    %cst_135 = arith.constant 0.797884583 : f32
    %442 = vector.broadcast %cst_135 : f32 to vector<8x32xf32>
    %443 = arith.mulf %442, %441 : vector<8x32xf32>
    %444 = math.tanh %443 : vector<8x32xf32>
    %cst_136 = arith.constant 1.000000e+00 : f32
    %445 = vector.broadcast %cst_136 : f32 to vector<8x32xf32>
    %446 = arith.addf %445, %444 : vector<8x32xf32>
    %cst_137 = arith.constant 5.000000e-01 : f32
    %447 = vector.broadcast %cst_137 : f32 to vector<8x32xf32>
    %448 = arith.mulf %447, %446 : vector<8x32xf32>
    %449 = arith.mulf %436, %448 : vector<8x32xf32>
    %c0_138 = arith.constant 0 : index
    %c0_139 = arith.constant 0 : index
    %450 = vector.load %arg16[%c0_138, %c0_139] : memref<32x64xbf16, #tpu.memory_space<vmem>>, vector<32x64xbf16>
    %451 = arith.truncf %449 : vector<8x32xf32> to vector<8x32xbf16>
    %cst_140 = arith.constant dense<0.000000e+00> : vector<8x64xf32>
    %452 = tpu.matmul %451, %450, %cst_140 {dimension_numbers = #tpu.dot_dimension_numbers<[1], [0], [0], [1], [0, 0, 1, 1], [], []>} : vector<8x32xbf16>, vector<32x64xbf16>, vector<8x64xf32> -> vector<8x64xf32>
    %c0_141 = arith.constant 0 : index
    %c0_142 = arith.constant 0 : index
    %453 = vector.load %arg17[%c0_141, %c0_142] : memref<1x64xf32, #tpu.memory_space<vmem>>, vector<1x64xf32>
    %454 = vector.broadcast %453 : vector<1x64xf32> to vector<8x64xf32>
    %455 = arith.addf %452, %454 : vector<8x64xf32>
    %c0_143 = arith.constant 0 : index
    %c0_144 = arith.constant 0 : index
    %456 = vector.load %arg11[%c0_143, %c0_144] : memref<64x8xf32, #tpu.memory_space<vmem>>, vector<64x8xf32>
    %c0_145 = arith.constant 0 : index
    %c0_146 = arith.constant 0 : index
    %457 = vector.load %arg12[%c0_145, %c0_146] : memref<8x64xf32, #tpu.memory_space<vmem>>, vector<8x64xf32>
    %c0_147 = arith.constant 0 : index
    %c0_148 = arith.constant 0 : index
    %458 = vector.load %arg13[%c0_147, %c0_148] : memref<64x64xf32, #tpu.memory_space<vmem>>, vector<64x64xf32>
    %459 = vector.extract_strided_slice %455 {offsets = [0, 0], sizes = [8, 8], strides = [1, 1]} : vector<8x64xf32> to vector<8x8xf32>
    %cst_149 = arith.constant 0.353553385 : f32
    %460 = vector.broadcast %cst_149 : f32 to vector<8x8xf32>
    %461 = arith.mulf %459, %460 : vector<8x8xf32>
    %462 = vector.extract_strided_slice %455 {offsets = [0, 8], sizes = [8, 8], strides = [1, 1]} : vector<8x64xf32> to vector<8x8xf32>
    %cst_150 = arith.constant dense<0.000000e+00> : vector<8x8xf32>
    %463 = tpu.matmul %461, %462, %cst_150 {dimension_numbers = #tpu.dot_dimension_numbers<[1], [1], [0], [0], [0, 0, 1, 0], [], []>} : vector<8x8xf32>, vector<8x8xf32>, vector<8x8xf32> -> vector<8x8xf32>
    %cst_151 = arith.constant dense<0xFF800000> : vector<8xf32>
    %464 = vector.multi_reduction <maximumf>, %463, %cst_151 [1] : vector<8x8xf32> to vector<8xf32>
    %465 = vector.shape_cast %464 : vector<8xf32> to vector<8x1xf32>
    %466 = vector.broadcast %465 : vector<8x1xf32> to vector<8x8xf32>
    %467 = arith.subf %463, %466 : vector<8x8xf32>
    %468 = math.exp %467 : vector<8x8xf32>
    %cst_152 = arith.constant dense<0.000000e+00> : vector<8xf32>
    %469 = vector.multi_reduction <add>, %468, %cst_152 [1] : vector<8x8xf32> to vector<8xf32>
    %470 = vector.shape_cast %469 : vector<8xf32> to vector<8x1xf32>
    %471 = vector.broadcast %470 : vector<8x1xf32> to vector<8x8xf32>
    %472 = arith.divf %468, %471 : vector<8x8xf32>
    %cst_153 = arith.constant dense<0.000000e+00> : vector<64x8xf32>
    %473 = tpu.matmul %456, %472, %cst_153 {dimension_numbers = #tpu.dot_dimension_numbers<[1], [0], [0], [1], [0, 0, 1, 1], [], []>} : vector<64x8xf32>, vector<8x8xf32>, vector<64x8xf32> -> vector<64x8xf32>
    %cst_154 = arith.constant dense<0.000000e+00> : vector<64x64xf32>
    %474 = tpu.matmul %473, %457, %cst_154 {dimension_numbers = #tpu.dot_dimension_numbers<[1], [0], [0], [1], [0, 0, 1, 1], [], []>} : vector<64x8xf32>, vector<8x64xf32>, vector<64x64xf32> -> vector<64x64xf32>
    %475 = arith.mulf %474, %458 : vector<64x64xf32>
    %476 = vector.extract_strided_slice %332 {offsets = [0, 0], sizes = [64, 8], strides = [1, 1]} : vector<64x32xf32> to vector<64x8xf32>
    %cst_155 = arith.constant dense<0.000000e+00> : vector<64x8xf32>
    %477 = tpu.matmul %475, %476, %cst_155 {dimension_numbers = #tpu.dot_dimension_numbers<[1], [0], [0], [1], [0, 0, 1, 1], [], []>} : vector<64x64xf32>, vector<64x8xf32>, vector<64x8xf32> -> vector<64x8xf32>
    %478 = vector.extract_strided_slice %455 {offsets = [0, 16], sizes = [8, 8], strides = [1, 1]} : vector<8x64xf32> to vector<8x8xf32>
    %cst_156 = arith.constant 0.353553385 : f32
    %479 = vector.broadcast %cst_156 : f32 to vector<8x8xf32>
    %480 = arith.mulf %478, %479 : vector<8x8xf32>
    %481 = vector.extract_strided_slice %455 {offsets = [0, 24], sizes = [8, 8], strides = [1, 1]} : vector<8x64xf32> to vector<8x8xf32>
    %cst_157 = arith.constant dense<0.000000e+00> : vector<8x8xf32>
    %482 = tpu.matmul %480, %481, %cst_157 {dimension_numbers = #tpu.dot_dimension_numbers<[1], [1], [0], [0], [0, 0, 1, 0], [], []>} : vector<8x8xf32>, vector<8x8xf32>, vector<8x8xf32> -> vector<8x8xf32>
    %cst_158 = arith.constant dense<0xFF800000> : vector<8xf32>
    %483 = vector.multi_reduction <maximumf>, %482, %cst_158 [1] : vector<8x8xf32> to vector<8xf32>
    %484 = vector.shape_cast %483 : vector<8xf32> to vector<8x1xf32>
    %485 = vector.broadcast %484 : vector<8x1xf32> to vector<8x8xf32>
    %486 = arith.subf %482, %485 : vector<8x8xf32>
    %487 = math.exp %486 : vector<8x8xf32>
    %cst_159 = arith.constant dense<0.000000e+00> : vector<8xf32>
    %488 = vector.multi_reduction <add>, %487, %cst_159 [1] : vector<8x8xf32> to vector<8xf32>
    %489 = vector.shape_cast %488 : vector<8xf32> to vector<8x1xf32>
    %490 = vector.broadcast %489 : vector<8x1xf32> to vector<8x8xf32>
    %491 = arith.divf %487, %490 : vector<8x8xf32>
    %cst_160 = arith.constant dense<0.000000e+00> : vector<64x8xf32>
    %492 = tpu.matmul %456, %491, %cst_160 {dimension_numbers = #tpu.dot_dimension_numbers<[1], [0], [0], [1], [0, 0, 1, 1], [], []>} : vector<64x8xf32>, vector<8x8xf32>, vector<64x8xf32> -> vector<64x8xf32>
    %cst_161 = arith.constant dense<0.000000e+00> : vector<64x64xf32>
    %493 = tpu.matmul %492, %457, %cst_161 {dimension_numbers = #tpu.dot_dimension_numbers<[1], [0], [0], [1], [0, 0, 1, 1], [], []>} : vector<64x8xf32>, vector<8x64xf32>, vector<64x64xf32> -> vector<64x64xf32>
    %494 = arith.mulf %493, %458 : vector<64x64xf32>
    %495 = vector.extract_strided_slice %332 {offsets = [0, 8], sizes = [64, 8], strides = [1, 1]} : vector<64x32xf32> to vector<64x8xf32>
    %cst_162 = arith.constant dense<0.000000e+00> : vector<64x8xf32>
    %496 = tpu.matmul %494, %495, %cst_162 {dimension_numbers = #tpu.dot_dimension_numbers<[1], [0], [0], [1], [0, 0, 1, 1], [], []>} : vector<64x64xf32>, vector<64x8xf32>, vector<64x8xf32> -> vector<64x8xf32>
    %497 = vector.extract_strided_slice %455 {offsets = [0, 32], sizes = [8, 8], strides = [1, 1]} : vector<8x64xf32> to vector<8x8xf32>
    %cst_163 = arith.constant 0.353553385 : f32
    %498 = vector.broadcast %cst_163 : f32 to vector<8x8xf32>
    %499 = arith.mulf %497, %498 : vector<8x8xf32>
    %500 = vector.extract_strided_slice %455 {offsets = [0, 40], sizes = [8, 8], strides = [1, 1]} : vector<8x64xf32> to vector<8x8xf32>
    %cst_164 = arith.constant dense<0.000000e+00> : vector<8x8xf32>
    %501 = tpu.matmul %499, %500, %cst_164 {dimension_numbers = #tpu.dot_dimension_numbers<[1], [1], [0], [0], [0, 0, 1, 0], [], []>} : vector<8x8xf32>, vector<8x8xf32>, vector<8x8xf32> -> vector<8x8xf32>
    %cst_165 = arith.constant dense<0xFF800000> : vector<8xf32>
    %502 = vector.multi_reduction <maximumf>, %501, %cst_165 [1] : vector<8x8xf32> to vector<8xf32>
    %503 = vector.shape_cast %502 : vector<8xf32> to vector<8x1xf32>
    %504 = vector.broadcast %503 : vector<8x1xf32> to vector<8x8xf32>
    %505 = arith.subf %501, %504 : vector<8x8xf32>
    %506 = math.exp %505 : vector<8x8xf32>
    %cst_166 = arith.constant dense<0.000000e+00> : vector<8xf32>
    %507 = vector.multi_reduction <add>, %506, %cst_166 [1] : vector<8x8xf32> to vector<8xf32>
    %508 = vector.shape_cast %507 : vector<8xf32> to vector<8x1xf32>
    %509 = vector.broadcast %508 : vector<8x1xf32> to vector<8x8xf32>
    %510 = arith.divf %506, %509 : vector<8x8xf32>
    %cst_167 = arith.constant dense<0.000000e+00> : vector<64x8xf32>
    %511 = tpu.matmul %456, %510, %cst_167 {dimension_numbers = #tpu.dot_dimension_numbers<[1], [0], [0], [1], [0, 0, 1, 1], [], []>} : vector<64x8xf32>, vector<8x8xf32>, vector<64x8xf32> -> vector<64x8xf32>
    %cst_168 = arith.constant dense<0.000000e+00> : vector<64x64xf32>
    %512 = tpu.matmul %511, %457, %cst_168 {dimension_numbers = #tpu.dot_dimension_numbers<[1], [0], [0], [1], [0, 0, 1, 1], [], []>} : vector<64x8xf32>, vector<8x64xf32>, vector<64x64xf32> -> vector<64x64xf32>
    %513 = arith.mulf %512, %458 : vector<64x64xf32>
    %514 = vector.extract_strided_slice %332 {offsets = [0, 16], sizes = [64, 8], strides = [1, 1]} : vector<64x32xf32> to vector<64x8xf32>
    %cst_169 = arith.constant dense<0.000000e+00> : vector<64x8xf32>
    %515 = tpu.matmul %513, %514, %cst_169 {dimension_numbers = #tpu.dot_dimension_numbers<[1], [0], [0], [1], [0, 0, 1, 1], [], []>} : vector<64x64xf32>, vector<64x8xf32>, vector<64x8xf32> -> vector<64x8xf32>
    %516 = vector.extract_strided_slice %455 {offsets = [0, 48], sizes = [8, 8], strides = [1, 1]} : vector<8x64xf32> to vector<8x8xf32>
    %cst_170 = arith.constant 0.353553385 : f32
    %517 = vector.broadcast %cst_170 : f32 to vector<8x8xf32>
    %518 = arith.mulf %516, %517 : vector<8x8xf32>
    %519 = vector.extract_strided_slice %455 {offsets = [0, 56], sizes = [8, 8], strides = [1, 1]} : vector<8x64xf32> to vector<8x8xf32>
    %cst_171 = arith.constant dense<0.000000e+00> : vector<8x8xf32>
    %520 = tpu.matmul %518, %519, %cst_171 {dimension_numbers = #tpu.dot_dimension_numbers<[1], [1], [0], [0], [0, 0, 1, 0], [], []>} : vector<8x8xf32>, vector<8x8xf32>, vector<8x8xf32> -> vector<8x8xf32>
    %cst_172 = arith.constant dense<0xFF800000> : vector<8xf32>
    %521 = vector.multi_reduction <maximumf>, %520, %cst_172 [1] : vector<8x8xf32> to vector<8xf32>
    %522 = vector.shape_cast %521 : vector<8xf32> to vector<8x1xf32>
    %523 = vector.broadcast %522 : vector<8x1xf32> to vector<8x8xf32>
    %524 = arith.subf %520, %523 : vector<8x8xf32>
    %525 = math.exp %524 : vector<8x8xf32>
    %cst_173 = arith.constant dense<0.000000e+00> : vector<8xf32>
    %526 = vector.multi_reduction <add>, %525, %cst_173 [1] : vector<8x8xf32> to vector<8xf32>
    %527 = vector.shape_cast %526 : vector<8xf32> to vector<8x1xf32>
    %528 = vector.broadcast %527 : vector<8x1xf32> to vector<8x8xf32>
    %529 = arith.divf %525, %528 : vector<8x8xf32>
    %cst_174 = arith.constant dense<0.000000e+00> : vector<64x8xf32>
    %530 = tpu.matmul %456, %529, %cst_174 {dimension_numbers = #tpu.dot_dimension_numbers<[1], [0], [0], [1], [0, 0, 1, 1], [], []>} : vector<64x8xf32>, vector<8x8xf32>, vector<64x8xf32> -> vector<64x8xf32>
    %cst_175 = arith.constant dense<0.000000e+00> : vector<64x64xf32>
    %531 = tpu.matmul %530, %457, %cst_175 {dimension_numbers = #tpu.dot_dimension_numbers<[1], [0], [0], [1], [0, 0, 1, 1], [], []>} : vector<64x8xf32>, vector<8x64xf32>, vector<64x64xf32> -> vector<64x64xf32>
    %532 = arith.mulf %531, %458 : vector<64x64xf32>
    %533 = vector.extract_strided_slice %332 {offsets = [0, 24], sizes = [64, 8], strides = [1, 1]} : vector<64x32xf32> to vector<64x8xf32>
    %cst_176 = arith.constant dense<0.000000e+00> : vector<64x8xf32>
    %534 = tpu.matmul %532, %533, %cst_176 {dimension_numbers = #tpu.dot_dimension_numbers<[1], [0], [0], [1], [0, 0, 1, 1], [], []>} : vector<64x64xf32>, vector<64x8xf32>, vector<64x8xf32> -> vector<64x8xf32>
    %535 = tpu.concatenate %477, %496, %515, %534 in 1 : vector<64x8xf32>, vector<64x8xf32>, vector<64x8xf32>, vector<64x8xf32> -> vector<64x32xf32>
    %536 = arith.addf %256, %535 : vector<64x32xf32>
    %c0_177 = arith.constant 0 : index
    %c0_178 = arith.constant 0 : index
    %537 = vector.load %arg18[%c0_177, %c0_178] : memref<96x32xbf16, #tpu.memory_space<vmem>>, vector<96x32xbf16>
    %538 = arith.truncf %242 : vector<64x96xf32> to vector<64x96xbf16>
    %cst_179 = arith.constant dense<0.000000e+00> : vector<64x32xf32>
    %539 = tpu.matmul %538, %537, %cst_179 {dimension_numbers = #tpu.dot_dimension_numbers<[1], [0], [0], [1], [0, 0, 1, 1], [], []>} : vector<64x96xbf16>, vector<96x32xbf16>, vector<64x32xf32> -> vector<64x32xf32>
    %c0_180 = arith.constant 0 : index
    %c0_181 = arith.constant 0 : index
    %540 = vector.load %arg19[%c0_180, %c0_181] : memref<1x32xf32, #tpu.memory_space<vmem>>, vector<1x32xf32>
    %541 = vector.broadcast %540 : vector<1x32xf32> to vector<64x32xf32>
    %542 = arith.addf %539, %541 : vector<64x32xf32>
    %543 = arith.addf %542, %536 : vector<64x32xf32>
    %c0_182 = arith.constant 0 : index
    %c0_183 = arith.constant 0 : index
    %544 = vector.load %arg21[%c0_182, %c0_183] : memref<1x32xf32, #tpu.memory_space<vmem>>, vector<1x32xf32>
    %c0_184 = arith.constant 0 : index
    %c0_185 = arith.constant 0 : index
    %545 = vector.load %arg22[%c0_184, %c0_185] : memref<1x32xf32, #tpu.memory_space<vmem>>, vector<1x32xf32>
    %cst_186 = arith.constant dense<0.000000e+00> : vector<64xf32>
    %546 = vector.multi_reduction <add>, %543, %cst_186 [1] : vector<64x32xf32> to vector<64xf32>
    %547 = vector.shape_cast %546 : vector<64xf32> to vector<64x1xf32>
    %cst_187 = arith.constant 3.200000e+01 : f32
    %548 = vector.broadcast %cst_187 : f32 to vector<64x1xf32>
    %549 = arith.divf %547, %548 : vector<64x1xf32>
    %550 = vector.broadcast %549 : vector<64x1xf32> to vector<64x32xf32>
    %551 = arith.subf %543, %550 : vector<64x32xf32>
    %552 = arith.mulf %551, %551 : vector<64x32xf32>
    %cst_188 = arith.constant dense<0.000000e+00> : vector<64xf32>
    %553 = vector.multi_reduction <add>, %552, %cst_188 [1] : vector<64x32xf32> to vector<64xf32>
    %554 = vector.shape_cast %553 : vector<64xf32> to vector<64x1xf32>
    %cst_189 = arith.constant 3.200000e+01 : f32
    %555 = vector.broadcast %cst_189 : f32 to vector<64x1xf32>
    %556 = arith.divf %554, %555 : vector<64x1xf32>
    %cst_190 = arith.constant 9.99999997E-7 : f32
    %557 = vector.broadcast %cst_190 : f32 to vector<64x1xf32>
    %558 = arith.addf %556, %557 : vector<64x1xf32>
    %559 = math.rsqrt %558 : vector<64x1xf32>
    %560 = vector.broadcast %559 : vector<64x1xf32> to vector<64x32xf32>
    %561 = arith.mulf %551, %560 : vector<64x32xf32>
    %562 = vector.broadcast %544 : vector<1x32xf32> to vector<64x32xf32>
    %563 = arith.mulf %561, %562 : vector<64x32xf32>
    %564 = vector.broadcast %545 : vector<1x32xf32> to vector<64x32xf32>
    %565 = arith.addf %563, %564 : vector<64x32xf32>
    %c0_191 = arith.constant 0 : index
    %c0_192 = arith.constant 0 : index
    %566 = vector.load %arg23[%c0_191, %c0_192] : memref<32x64xbf16, #tpu.memory_space<vmem>>, vector<32x64xbf16>
    %567 = arith.truncf %565 : vector<64x32xf32> to vector<64x32xbf16>
    %cst_193 = arith.constant dense<0.000000e+00> : vector<64x64xf32>
    %568 = tpu.matmul %567, %566, %cst_193 {dimension_numbers = #tpu.dot_dimension_numbers<[1], [0], [0], [1], [0, 0, 1, 1], [], []>} : vector<64x32xbf16>, vector<32x64xbf16>, vector<64x64xf32> -> vector<64x64xf32>
    %c0_194 = arith.constant 0 : index
    %c0_195 = arith.constant 0 : index
    %569 = vector.load %arg24[%c0_194, %c0_195] : memref<1x64xf32, #tpu.memory_space<vmem>>, vector<1x64xf32>
    %570 = vector.broadcast %569 : vector<1x64xf32> to vector<64x64xf32>
    %571 = arith.addf %568, %570 : vector<64x64xf32>
    %572 = arith.mulf %571, %571 : vector<64x64xf32>
    %573 = arith.mulf %571, %572 : vector<64x64xf32>
    %cst_196 = arith.constant 4.471500e-02 : f32
    %574 = vector.broadcast %cst_196 : f32 to vector<64x64xf32>
    %575 = arith.mulf %574, %573 : vector<64x64xf32>
    %576 = arith.addf %571, %575 : vector<64x64xf32>
    %cst_197 = arith.constant 0.797884583 : f32
    %577 = vector.broadcast %cst_197 : f32 to vector<64x64xf32>
    %578 = arith.mulf %577, %576 : vector<64x64xf32>
    %579 = math.tanh %578 : vector<64x64xf32>
    %cst_198 = arith.constant 1.000000e+00 : f32
    %580 = vector.broadcast %cst_198 : f32 to vector<64x64xf32>
    %581 = arith.addf %580, %579 : vector<64x64xf32>
    %cst_199 = arith.constant 5.000000e-01 : f32
    %582 = vector.broadcast %cst_199 : f32 to vector<64x64xf32>
    %583 = arith.mulf %582, %581 : vector<64x64xf32>
    %584 = arith.mulf %571, %583 : vector<64x64xf32>
    %c0_200 = arith.constant 0 : index
    %c0_201 = arith.constant 0 : index
    %585 = vector.load %arg25[%c0_200, %c0_201] : memref<64x32xbf16, #tpu.memory_space<vmem>>, vector<64x32xbf16>
    %586 = arith.truncf %584 : vector<64x64xf32> to vector<64x64xbf16>
    %cst_202 = arith.constant dense<0.000000e+00> : vector<64x32xf32>
    %587 = tpu.matmul %586, %585, %cst_202 {dimension_numbers = #tpu.dot_dimension_numbers<[1], [0], [0], [1], [0, 0, 1, 1], [], []>} : vector<64x64xbf16>, vector<64x32xbf16>, vector<64x32xf32> -> vector<64x32xf32>
    %c0_203 = arith.constant 0 : index
    %c0_204 = arith.constant 0 : index
    %588 = vector.load %arg26[%c0_203, %c0_204] : memref<1x32xf32, #tpu.memory_space<vmem>>, vector<1x32xf32>
    %589 = vector.broadcast %588 : vector<1x32xf32> to vector<64x32xf32>
    %590 = arith.addf %587, %589 : vector<64x32xf32>
    %591 = arith.addf %590, %543 : vector<64x32xf32>
    %c0_205 = arith.constant 0 : index
    %c0_206 = arith.constant 0 : index
    %592 = vector.load %arg27[%c0_205, %c0_206] : memref<64x32xf32, #tpu.memory_space<vmem>>, vector<64x32xf32>
    tpu.vector_store %arg27[%c0_205, %c0_206], %591 {strides = array<i32>} : memref<64x32xf32, #tpu.memory_space<vmem>>, vector<64x32xf32>,
    return
  }
  func.func @transform_0(%arg0: i32) -> (i32, i32) {
    %c0_i32 = arith.constant 0 : i32
    %c0_i32_0 = arith.constant 0 : i32
    return %arg0, %c0_i32 : i32, i32
  }
  func.func @transform_1(%arg0: i32) -> (i32, i32) {
    %c0_i32 = arith.constant 0 : i32
    %c0_i32_0 = arith.constant 0 : i32
    %c0_i32_1 = arith.constant 0 : i32
    return %c0_i32, %c0_i32_0 : i32, i32
  }
  func.func @transform_2(%arg0: i32) -> (i32, i32) {
    %c0_i32 = arith.constant 0 : i32
    %c0_i32_0 = arith.constant 0 : i32
    %c0_i32_1 = arith.constant 0 : i32
    return %c0_i32, %c0_i32_0 : i32, i32
  }
  func.func @transform_3(%arg0: i32) -> (i32, i32) {
    %c0_i32 = arith.constant 0 : i32
    %c0_i32_0 = arith.constant 0 : i32
    %c0_i32_1 = arith.constant 0 : i32
    return %c0_i32, %c0_i32_0 : i32, i32
  }
  func.func @transform_4(%arg0: i32) -> (i32, i32) {
    %c0_i32 = arith.constant 0 : i32
    %c0_i32_0 = arith.constant 0 : i32
    %c0_i32_1 = arith.constant 0 : i32
    return %c0_i32, %c0_i32_0 : i32, i32
  }
  func.func @transform_5(%arg0: i32) -> (i32, i32) {
    %c0_i32 = arith.constant 0 : i32
    %c0_i32_0 = arith.constant 0 : i32
    %c0_i32_1 = arith.constant 0 : i32
    return %c0_i32, %c0_i32_0 : i32, i32
  }
  func.func @transform_6(%arg0: i32) -> (i32, i32) {
    %c0_i32 = arith.constant 0 : i32
    %c0_i32_0 = arith.constant 0 : i32
    %c0_i32_1 = arith.constant 0 : i32
    return %c0_i32, %c0_i32_0 : i32, i32
  }
  func.func @transform_7(%arg0: i32) -> (i32, i32) {
    %c0_i32 = arith.constant 0 : i32
    %c0_i32_0 = arith.constant 0 : i32
    %c0_i32_1 = arith.constant 0 : i32
    return %c0_i32, %c0_i32_0 : i32, i32
  }
  func.func @transform_8(%arg0: i32) -> (i32, i32) {
    %c0_i32 = arith.constant 0 : i32
    %c0_i32_0 = arith.constant 0 : i32
    %c0_i32_1 = arith.constant 0 : i32
    return %c0_i32, %c0_i32_0 : i32, i32
  }
  func.func @transform_9(%arg0: i32) -> (i32, i32) {
    %c0_i32 = arith.constant 0 : i32
    %c0_i32_0 = arith.constant 0 : i32
    %c0_i32_1 = arith.constant 0 : i32
    return %c0_i32, %c0_i32_0 : i32, i32
  }
  func.func @transform_10(%arg0: i32) -> (i32, i32) {
    %c0_i32 = arith.constant 0 : i32
    %c0_i32_0 = arith.constant 0 : i32
    %c0_i32_1 = arith.constant 0 : i32
    return %c0_i32, %c0_i32_0 : i32, i32
  }
  func.func @transform_11(%arg0: i32) -> (i32, i32) {
    %c0_i32 = arith.constant 0 : i32
    %c0_i32_0 = arith.constant 0 : i32
    %c0_i32_1 = arith.constant 0 : i32
    return %c0_i32, %c0_i32_0 : i32, i32
  }
  func.func @transform_12(%arg0: i32) -> (i32, i32) {
    %c0_i32 = arith.constant 0 : i32
    %c0_i32_0 = arith.constant 0 : i32
    %c0_i32_1 = arith.constant 0 : i32
    return %c0_i32, %c0_i32_0 : i32, i32
  }
  func.func @transform_13(%arg0: i32) -> (i32, i32) {
    %c0_i32 = arith.constant 0 : i32
    %c0_i32_0 = arith.constant 0 : i32
    %c0_i32_1 = arith.constant 0 : i32
    return %c0_i32, %c0_i32_0 : i32, i32
  }
  func.func @transform_14(%arg0: i32) -> (i32, i32) {
    %c0_i32 = arith.constant 0 : i32
    %c0_i32_0 = arith.constant 0 : i32
    %c0_i32_1 = arith.constant 0 : i32
    return %c0_i32, %c0_i32_0 : i32, i32
  }
  func.func @transform_15(%arg0: i32) -> (i32, i32) {
    %c0_i32 = arith.constant 0 : i32
    %c0_i32_0 = arith.constant 0 : i32
    %c0_i32_1 = arith.constant 0 : i32
    return %c0_i32, %c0_i32_0 : i32, i32
  }
  func.func @transform_16(%arg0: i32) -> (i32, i32) {
    %c0_i32 = arith.constant 0 : i32
    %c0_i32_0 = arith.constant 0 : i32
    %c0_i32_1 = arith.constant 0 : i32
    return %c0_i32, %c0_i32_0 : i32, i32
  }
  func.func @transform_17(%arg0: i32) -> (i32, i32) {
    %c0_i32 = arith.constant 0 : i32
    %c0_i32_0 = arith.constant 0 : i32
    %c0_i32_1 = arith.constant 0 : i32
    return %c0_i32, %c0_i32_0 : i32, i32
  }
  func.func @transform_18(%arg0: i32) -> (i32, i32) {
    %c0_i32 = arith.constant 0 : i32
    %c0_i32_0 = arith.constant 0 : i32
    %c0_i32_1 = arith.constant 0 : i32
    return %c0_i32, %c0_i32_0 : i32, i32
  }
  func.func @transform_19(%arg0: i32) -> (i32, i32) {
    %c0_i32 = arith.constant 0 : i32
    %c0_i32_0 = arith.constant 0 : i32
    %c0_i32_1 = arith.constant 0 : i32
    return %c0_i32, %c0_i32_0 : i32, i32
  }
  func.func @transform_20(%arg0: i32) -> (i32, i32) {
    %c0_i32 = arith.constant 0 : i32
    %c0_i32_0 = arith.constant 0 : i32
    %c0_i32_1 = arith.constant 0 : i32
    return %c0_i32, %c0_i32_0 : i32, i32
  }
  func.func @transform_21(%arg0: i32) -> (i32, i32) {
    %c0_i32 = arith.constant 0 : i32
    %c0_i32_0 = arith.constant 0 : i32
    %c0_i32_1 = arith.constant 0 : i32
    return %c0_i32, %c0_i32_0 : i32, i32
  }
  func.func @transform_22(%arg0: i32) -> (i32, i32) {
    %c0_i32 = arith.constant 0 : i32
    %c0_i32_0 = arith.constant 0 : i32
    %c0_i32_1 = arith.constant 0 : i32
    return %c0_i32, %c0_i32_0 : i32, i32
  }
  func.func @transform_23(%arg0: i32) -> (i32, i32) {
    %c0_i32 = arith.constant 0 : i32
    %c0_i32_0 = arith.constant 0 : i32
    %c0_i32_1 = arith.constant 0 : i32
    return %c0_i32, %c0_i32_0 : i32, i32
  }
  func.func @transform_24(%arg0: i32) -> (i32, i32) {
    %c0_i32 = arith.constant 0 : i32
    %c0_i32_0 = arith.constant 0 : i32
    %c0_i32_1 = arith.constant 0 : i32
    return %c0_i32, %c0_i32_0 : i32, i32
  }
  func.func @transform_25(%arg0: i32) -> (i32, i32) {
    %c0_i32 = arith.constant 0 : i32
    %c0_i32_0 = arith.constant 0 : i32
    %c0_i32_1 = arith.constant 0 : i32
    return %c0_i32, %c0_i32_0 : i32, i32
  }
  func.func @transform_26(%arg0: i32) -> (i32, i32) {
    %c0_i32 = arith.constant 0 : i32
    %c0_i32_0 = arith.constant 0 : i32
    return %arg0, %c0_i32 : i32, i32
  }
}

module attributes {stable_mosaic.version = 11 : i64} {
  func.func @_multi_att_block_kernel(%arg0: i32, %arg1: memref<64x32xf32, #tpu.memory_space<vmem>>, %arg2: memref<1x32xf32, #tpu.memory_space<vmem>>, %arg3: memref<1x32xf32, #tpu.memory_space<vmem>>, %arg4: memref<32x384xbf16, #tpu.memory_space<vmem>>, %arg5: memref<1x384xf32, #tpu.memory_space<vmem>>, %arg6: memref<64x64xf32, #tpu.memory_space<vmem>>, %arg7: memref<64x64xf32, #tpu.memory_space<vmem>>, %arg8: memref<64x64xf32, #tpu.memory_space<vmem>>, %arg9: memref<1x96xf32, #tpu.memory_space<vmem>>, %arg10: memref<72x72xf32, #tpu.memory_space<vmem>>, %arg11: memref<64x8xf32, #tpu.memory_space<vmem>>, %arg12: memref<8x64xf32, #tpu.memory_space<vmem>>, %arg13: memref<64x64xf32, #tpu.memory_space<vmem>>, %arg14: memref<1x32xf32, #tpu.memory_space<vmem>>, %arg15: memref<1x32xf32, #tpu.memory_space<vmem>>, %arg16: memref<32x64xbf16, #tpu.memory_space<vmem>>, %arg17: memref<1x64xf32, #tpu.memory_space<vmem>>, %arg18: memref<96x32xbf16, #tpu.memory_space<vmem>>, %arg19: memref<1x32xf32, #tpu.memory_space<vmem>>, %arg20: memref<32x32xf32, #tpu.memory_space<vmem>>, %arg21: memref<1x32xf32, #tpu.memory_space<vmem>>, %arg22: memref<1x32xf32, #tpu.memory_space<vmem>>, %arg23: memref<32x64xbf16, #tpu.memory_space<vmem>>, %arg24: memref<1x64xf32, #tpu.memory_space<vmem>>, %arg25: memref<64x32xbf16, #tpu.memory_space<vmem>>, %arg26: memref<1x32xf32, #tpu.memory_space<vmem>>, %arg27: memref<64x32xf32, #tpu.memory_space<vmem>>) attributes {dimension_semantics = [#tpu.dimension_semantics<parallel>], iteration_bounds = array<i64: 2>, scalar_prefetch = 0 : i64, scratch_operands = 0 : i64, tpu.core_type = #tpu.core_type<tc>, window_params = [{transform_indices = @transform_0, window_bounds = array<i64: 64, 32>}, {pipeline_mode = #tpu.pipeline_mode<synchronous>, transform_indices = @transform_1, window_bounds = array<i64: 1, 32>}, {pipeline_mode = #tpu.pipeline_mode<synchronous>, transform_indices = @transform_2, window_bounds = array<i64: 1, 32>}, {pipeline_mode = #tpu.pipeline_mode<synchronous>, transform_indices = @transform_3, window_bounds = array<i64: 32, 384>}, {pipeline_mode = #tpu.pipeline_mode<synchronous>, transform_indices = @transform_4, window_bounds = array<i64: 1, 384>}, {pipeline_mode = #tpu.pipeline_mode<synchronous>, transform_indices = @transform_5, window_bounds = array<i64: 64, 64>}, {pipeline_mode = #tpu.pipeline_mode<synchronous>, transform_indices = @transform_6, window_bounds = array<i64: 64, 64>}, {pipeline_mode = #tpu.pipeline_mode<synchronous>, transform_indices = @transform_7, window_bounds = array<i64: 64, 64>}, {pipeline_mode = #tpu.pipeline_mode<synchronous>, transform_indices = @transform_8, window_bounds = array<i64: 1, 96>}, {pipeline_mode = #tpu.pipeline_mode<synchronous>, transform_indices = @transform_9, window_bounds = array<i64: 72, 72>}, {pipeline_mode = #tpu.pipeline_mode<synchronous>, transform_indices = @transform_10, window_bounds = array<i64: 64, 8>}, {pipeline_mode = #tpu.pipeline_mode<synchronous>, transform_indices = @transform_11, window_bounds = array<i64: 8, 64>}, {pipeline_mode = #tpu.pipeline_mode<synchronous>, transform_indices = @transform_12, window_bounds = array<i64: 64, 64>}, {pipeline_mode = #tpu.pipeline_mode<synchronous>, transform_indices = @transform_13, window_bounds = array<i64: 1, 32>}, {pipeline_mode = #tpu.pipeline_mode<synchronous>, transform_indices = @transform_14, window_bounds = array<i64: 1, 32>}, {pipeline_mode = #tpu.pipeline_mode<synchronous>, transform_indices = @transform_15, window_bounds = array<i64: 32, 64>}, {pipeline_mode = #tpu.pipeline_mode<synchronous>, transform_indices = @transform_16, window_bounds = array<i64: 1, 64>}, {pipeline_mode = #tpu.pipeline_mode<synchronous>, transform_indices = @transform_17, window_bounds = array<i64: 96, 32>}, {pipeline_mode = #tpu.pipeline_mode<synchronous>, transform_indices = @transform_18, window_bounds = array<i64: 1, 32>}, {pipeline_mode = #tpu.pipeline_mode<synchronous>, transform_indices = @transform_19, window_bounds = array<i64: 32, 32>}, {pipeline_mode = #tpu.pipeline_mode<synchronous>, transform_indices = @transform_20, window_bounds = array<i64: 1, 32>}, {pipeline_mode = #tpu.pipeline_mode<synchronous>, transform_indices = @transform_21, window_bounds = array<i64: 1, 32>}, {pipeline_mode = #tpu.pipeline_mode<synchronous>, transform_indices = @transform_22, window_bounds = array<i64: 32, 64>}, {pipeline_mode = #tpu.pipeline_mode<synchronous>, transform_indices = @transform_23, window_bounds = array<i64: 1, 64>}, {pipeline_mode = #tpu.pipeline_mode<synchronous>, transform_indices = @transform_24, window_bounds = array<i64: 64, 32>}, {pipeline_mode = #tpu.pipeline_mode<synchronous>, transform_indices = @transform_25, window_bounds = array<i64: 1, 32>}, {transform_indices = @transform_26, window_bounds = array<i64: 64, 32>}]} {
    %c0 = arith.constant 0 : index
    %c0_0 = arith.constant 0 : index
    %0 = vector.load %arg1[%c0, %c0_0] : memref<64x32xf32, #tpu.memory_space<vmem>>, vector<64x32xf32>
    %c0_1 = arith.constant 0 : index
    %c0_2 = arith.constant 0 : index
    %1 = vector.load %arg2[%c0_1, %c0_2] : memref<1x32xf32, #tpu.memory_space<vmem>>, vector<1x32xf32>
    %c0_3 = arith.constant 0 : index
    %c0_4 = arith.constant 0 : index
    %2 = vector.load %arg3[%c0_3, %c0_4] : memref<1x32xf32, #tpu.memory_space<vmem>>, vector<1x32xf32>
    %cst = arith.constant dense<0.000000e+00> : vector<64xf32>
    %3 = vector.multi_reduction <add>, %0, %cst [1] : vector<64x32xf32> to vector<64xf32>
    %4 = vector.shape_cast %3 : vector<64xf32> to vector<64x1xf32>
    %cst_5 = arith.constant 3.200000e+01 : f32
    %5 = vector.broadcast %cst_5 : f32 to vector<64x1xf32>
    %6 = arith.divf %4, %5 : vector<64x1xf32>
    %7 = vector.broadcast %6 : vector<64x1xf32> to vector<64x32xf32>
    %8 = arith.subf %0, %7 : vector<64x32xf32>
    %9 = arith.mulf %8, %8 : vector<64x32xf32>
    %cst_6 = arith.constant dense<0.000000e+00> : vector<64xf32>
    %10 = vector.multi_reduction <add>, %9, %cst_6 [1] : vector<64x32xf32> to vector<64xf32>
    %11 = vector.shape_cast %10 : vector<64xf32> to vector<64x1xf32>
    %cst_7 = arith.constant 3.200000e+01 : f32
    %12 = vector.broadcast %cst_7 : f32 to vector<64x1xf32>
    %13 = arith.divf %11, %12 : vector<64x1xf32>
    %cst_8 = arith.constant 9.99999997E-7 : f32
    %14 = vector.broadcast %cst_8 : f32 to vector<64x1xf32>
    %15 = arith.addf %13, %14 : vector<64x1xf32>
    %16 = math.rsqrt %15 : vector<64x1xf32>
    %17 = vector.broadcast %16 : vector<64x1xf32> to vector<64x32xf32>
    %18 = arith.mulf %8, %17 : vector<64x32xf32>
    %19 = vector.broadcast %1 : vector<1x32xf32> to vector<64x32xf32>
    %20 = arith.mulf %18, %19 : vector<64x32xf32>
    %21 = vector.broadcast %2 : vector<1x32xf32> to vector<64x32xf32>
    %22 = arith.addf %20, %21 : vector<64x32xf32>
    %c0_9 = arith.constant 0 : index
    %c0_10 = arith.constant 0 : index
    %23 = vector.load %arg4[%c0_9, %c0_10] : memref<32x384xbf16, #tpu.memory_space<vmem>>, vector<32x384xbf16>
    %24 = arith.truncf %22 : vector<64x32xf32> to vector<64x32xbf16>
    %cst_11 = arith.constant dense<0.000000e+00> : vector<64x384xf32>
    %25 = tpu.matmul %24, %23, %cst_11 {dimension_numbers = #tpu.dot_dimension_numbers<[1], [0], [0], [1], [0, 0, 1, 1], [], []>} : vector<64x32xbf16>, vector<32x384xbf16>, vector<64x384xf32> -> vector<64x384xf32>
    %c0_12 = arith.constant 0 : index
    %c0_13 = arith.constant 0 : index
    %26 = vector.load %arg5[%c0_12, %c0_13] : memref<1x384xf32, #tpu.memory_space<vmem>>, vector<1x384xf32>
    %27 = vector.broadcast %26 : vector<1x384xf32> to vector<64x384xf32>
    %28 = arith.addf %25, %27 : vector<64x384xf32>
    %29 = vector.extract_strided_slice %28 {offsets = [0, 0], sizes = [64, 96], strides = [1, 1]} : vector<64x384xf32> to vector<64x96xf32>
    %c0_14 = arith.constant 0 : index
    %c0_15 = arith.constant 0 : index
    %30 = vector.load %arg6[%c0_14, %c0_15] : memref<64x64xf32, #tpu.memory_space<vmem>>, vector<64x64xf32>
    %31 = vector.extract_strided_slice %29 {offsets = [0, 0], sizes = [64, 8], strides = [1, 1]} : vector<64x96xf32> to vector<64x8xf32>
    %32 = vector.extract_strided_slice %29 {offsets = [0, 32], sizes = [64, 8], strides = [1, 1]} : vector<64x96xf32> to vector<64x8xf32>
    %33 = vector.extract_strided_slice %29 {offsets = [0, 64], sizes = [64, 8], strides = [1, 1]} : vector<64x96xf32> to vector<64x8xf32>
    %cst_16 = arith.constant dense<0.000000e+00> : vector<64x64xf32>
    %34 = tpu.matmul %31, %32, %cst_16 {dimension_numbers = #tpu.dot_dimension_numbers<[1], [1], [0], [0], [0, 0, 1, 0], [], []>} : vector<64x8xf32>, vector<64x8xf32>, vector<64x64xf32> -> vector<64x64xf32>
    %cst_17 = arith.constant 0.353553385 : f32
    %35 = vector.broadcast %cst_17 : f32 to vector<64x64xf32>
    %36 = arith.mulf %34, %35 : vector<64x64xf32>
    %37 = arith.addf %36, %30 : vector<64x64xf32>
    %cst_18 = arith.constant dense<0xFF800000> : vector<64xf32>
    %38 = vector.multi_reduction <maximumf>, %37, %cst_18 [1] : vector<64x64xf32> to vector<64xf32>
    %39 = vector.shape_cast %38 : vector<64xf32> to vector<64x1xf32>
    %40 = vector.broadcast %39 : vector<64x1xf32> to vector<64x64xf32>
    %41 = arith.subf %37, %40 : vector<64x64xf32>
    %42 = math.exp %41 : vector<64x64xf32>
    %cst_19 = arith.constant dense<0.000000e+00> : vector<64xf32>
    %43 = vector.multi_reduction <add>, %42, %cst_19 [1] : vector<64x64xf32> to vector<64xf32>
    %44 = vector.shape_cast %43 : vector<64xf32> to vector<64x1xf32>
    %45 = vector.broadcast %44 : vector<64x1xf32> to vector<64x64xf32>
    %46 = arith.divf %42, %45 : vector<64x64xf32>
    %cst_20 = arith.constant dense<0.000000e+00> : vector<64x8xf32>
    %47 = tpu.matmul %46, %33, %cst_20 {dimension_numbers = #tpu.dot_dimension_numbers<[1], [0], [0], [1], [0, 0, 1, 1], [], []>} : vector<64x64xf32>, vector<64x8xf32>, vector<64x8xf32> -> vector<64x8xf32>
    %48 = vector.extract_strided_slice %29 {offsets = [0, 8], sizes = [64, 8], strides = [1, 1]} : vector<64x96xf32> to vector<64x8xf32>
    %49 = vector.extract_strided_slice %29 {offsets = [0, 40], sizes = [64, 8], strides = [1, 1]} : vector<64x96xf32> to vector<64x8xf32>
    %50 = vector.extract_strided_slice %29 {offsets = [0, 72], sizes = [64, 8], strides = [1, 1]} : vector<64x96xf32> to vector<64x8xf32>
    %cst_21 = arith.constant dense<0.000000e+00> : vector<64x64xf32>
    %51 = tpu.matmul %48, %49, %cst_21 {dimension_numbers = #tpu.dot_dimension_numbers<[1], [1], [0], [0], [0, 0, 1, 0], [], []>} : vector<64x8xf32>, vector<64x8xf32>, vector<64x64xf32> -> vector<64x64xf32>
    %cst_22 = arith.constant 0.353553385 : f32
    %52 = vector.broadcast %cst_22 : f32 to vector<64x64xf32>
    %53 = arith.mulf %51, %52 : vector<64x64xf32>
    %54 = arith.addf %53, %30 : vector<64x64xf32>
    %cst_23 = arith.constant dense<0xFF800000> : vector<64xf32>
    %55 = vector.multi_reduction <maximumf>, %54, %cst_23 [1] : vector<64x64xf32> to vector<64xf32>
    %56 = vector.shape_cast %55 : vector<64xf32> to vector<64x1xf32>
    %57 = vector.broadcast %56 : vector<64x1xf32> to vector<64x64xf32>
    %58 = arith.subf %54, %57 : vector<64x64xf32>
    %59 = math.exp %58 : vector<64x64xf32>
    %cst_24 = arith.constant dense<0.000000e+00> : vector<64xf32>
    %60 = vector.multi_reduction <add>, %59, %cst_24 [1] : vector<64x64xf32> to vector<64xf32>
    %61 = vector.shape_cast %60 : vector<64xf32> to vector<64x1xf32>
    %62 = vector.broadcast %61 : vector<64x1xf32> to vector<64x64xf32>
    %63 = arith.divf %59, %62 : vector<64x64xf32>
    %cst_25 = arith.constant dense<0.000000e+00> : vector<64x8xf32>
    %64 = tpu.matmul %63, %50, %cst_25 {dimension_numbers = #tpu.dot_dimension_numbers<[1], [0], [0], [1], [0, 0, 1, 1], [], []>} : vector<64x64xf32>, vector<64x8xf32>, vector<64x8xf32> -> vector<64x8xf32>
    %65 = vector.extract_strided_slice %29 {offsets = [0, 16], sizes = [64, 8], strides = [1, 1]} : vector<64x96xf32> to vector<64x8xf32>
    %66 = vector.extract_strided_slice %29 {offsets = [0, 48], sizes = [64, 8], strides = [1, 1]} : vector<64x96xf32> to vector<64x8xf32>
    %67 = vector.extract_strided_slice %29 {offsets = [0, 80], sizes = [64, 8], strides = [1, 1]} : vector<64x96xf32> to vector<64x8xf32>
    %cst_26 = arith.constant dense<0.000000e+00> : vector<64x64xf32>
    %68 = tpu.matmul %65, %66, %cst_26 {dimension_numbers = #tpu.dot_dimension_numbers<[1], [1], [0], [0], [0, 0, 1, 0], [], []>} : vector<64x8xf32>, vector<64x8xf32>, vector<64x64xf32> -> vector<64x64xf32>
    %cst_27 = arith.constant 0.353553385 : f32
    %69 = vector.broadcast %cst_27 : f32 to vector<64x64xf32>
    %70 = arith.mulf %68, %69 : vector<64x64xf32>
    %71 = arith.addf %70, %30 : vector<64x64xf32>
    %cst_28 = arith.constant dense<0xFF800000> : vector<64xf32>
    %72 = vector.multi_reduction <maximumf>, %71, %cst_28 [1] : vector<64x64xf32> to vector<64xf32>
    %73 = vector.shape_cast %72 : vector<64xf32> to vector<64x1xf32>
    %74 = vector.broadcast %73 : vector<64x1xf32> to vector<64x64xf32>
    %75 = arith.subf %71, %74 : vector<64x64xf32>
    %76 = math.exp %75 : vector<64x64xf32>
    %cst_29 = arith.constant dense<0.000000e+00> : vector<64xf32>
    %77 = vector.multi_reduction <add>, %76, %cst_29 [1] : vector<64x64xf32> to vector<64xf32>
    %78 = vector.shape_cast %77 : vector<64xf32> to vector<64x1xf32>
    %79 = vector.broadcast %78 : vector<64x1xf32> to vector<64x64xf32>
    %80 = arith.divf %76, %79 : vector<64x64xf32>
    %cst_30 = arith.constant dense<0.000000e+00> : vector<64x8xf32>
    %81 = tpu.matmul %80, %67, %cst_30 {dimension_numbers = #tpu.dot_dimension_numbers<[1], [0], [0], [1], [0, 0, 1, 1], [], []>} : vector<64x64xf32>, vector<64x8xf32>, vector<64x8xf32> -> vector<64x8xf32>
    %82 = vector.extract_strided_slice %29 {offsets = [0, 24], sizes = [64, 8], strides = [1, 1]} : vector<64x96xf32> to vector<64x8xf32>
    %83 = vector.extract_strided_slice %29 {offsets = [0, 56], sizes = [64, 8], strides = [1, 1]} : vector<64x96xf32> to vector<64x8xf32>
    %84 = vector.extract_strided_slice %29 {offsets = [0, 88], sizes = [64, 8], strides = [1, 1]} : vector<64x96xf32> to vector<64x8xf32>
    %cst_31 = arith.constant dense<0.000000e+00> : vector<64x64xf32>
    %85 = tpu.matmul %82, %83, %cst_31 {dimension_numbers = #tpu.dot_dimension_numbers<[1], [1], [0], [0], [0, 0, 1, 0], [], []>} : vector<64x8xf32>, vector<64x8xf32>, vector<64x64xf32> -> vector<64x64xf32>
    %cst_32 = arith.constant 0.353553385 : f32
    %86 = vector.broadcast %cst_32 : f32 to vector<64x64xf32>
    %87 = arith.mulf %85, %86 : vector<64x64xf32>
    %88 = arith.addf %87, %30 : vector<64x64xf32>
    %cst_33 = arith.constant dense<0xFF800000> : vector<64xf32>
    %89 = vector.multi_reduction <maximumf>, %88, %cst_33 [1] : vector<64x64xf32> to vector<64xf32>
    %90 = vector.shape_cast %89 : vector<64xf32> to vector<64x1xf32>
    %91 = vector.broadcast %90 : vector<64x1xf32> to vector<64x64xf32>
    %92 = arith.subf %88, %91 : vector<64x64xf32>
    %93 = math.exp %92 : vector<64x64xf32>
    %cst_34 = arith.constant dense<0.000000e+00> : vector<64xf32>
    %94 = vector.multi_reduction <add>, %93, %cst_34 [1] : vector<64x64xf32> to vector<64xf32>
    %95 = vector.shape_cast %94 : vector<64xf32> to vector<64x1xf32>
    %96 = vector.broadcast %95 : vector<64x1xf32> to vector<64x64xf32>
    %97 = arith.divf %93, %96 : vector<64x64xf32>
    %cst_35 = arith.constant dense<0.000000e+00> : vector<64x8xf32>
    %98 = tpu.matmul %97, %84, %cst_35 {dimension_numbers = #tpu.dot_dimension_numbers<[1], [0], [0], [1], [0, 0, 1, 1], [], []>} : vector<64x64xf32>, vector<64x8xf32>, vector<64x8xf32> -> vector<64x8xf32>
    %99 = tpu.concatenate %47, %64, %81, %98 in 1 : vector<64x8xf32>, vector<64x8xf32>, vector<64x8xf32>, vector<64x8xf32> -> vector<64x32xf32>
    %100 = vector.extract_strided_slice %28 {offsets = [0, 96], sizes = [64, 96], strides = [1, 1]} : vector<64x384xf32> to vector<64x96xf32>
    %c0_36 = arith.constant 0 : index
    %c0_37 = arith.constant 0 : index
    %101 = vector.load %arg7[%c0_36, %c0_37] : memref<64x64xf32, #tpu.memory_space<vmem>>, vector<64x64xf32>
    %102 = vector.extract_strided_slice %100 {offsets = [0, 0], sizes = [64, 8], strides = [1, 1]} : vector<64x96xf32> to vector<64x8xf32>
    %103 = vector.extract_strided_slice %100 {offsets = [0, 32], sizes = [64, 8], strides = [1, 1]} : vector<64x96xf32> to vector<64x8xf32>
    %104 = vector.extract_strided_slice %100 {offsets = [0, 64], sizes = [64, 8], strides = [1, 1]} : vector<64x96xf32> to vector<64x8xf32>
    %cst_38 = arith.constant dense<0.000000e+00> : vector<64x64xf32>
    %105 = tpu.matmul %102, %103, %cst_38 {dimension_numbers = #tpu.dot_dimension_numbers<[1], [1], [0], [0], [0, 0, 1, 0], [], []>} : vector<64x8xf32>, vector<64x8xf32>, vector<64x64xf32> -> vector<64x64xf32>
    %cst_39 = arith.constant 0.353553385 : f32
    %106 = vector.broadcast %cst_39 : f32 to vector<64x64xf32>
    %107 = arith.mulf %105, %106 : vector<64x64xf32>
    %108 = arith.addf %107, %101 : vector<64x64xf32>
    %cst_40 = arith.constant dense<0xFF800000> : vector<64xf32>
    %109 = vector.multi_reduction <maximumf>, %108, %cst_40 [1] : vector<64x64xf32> to vector<64xf32>
    %110 = vector.shape_cast %109 : vector<64xf32> to vector<64x1xf32>
    %111 = vector.broadcast %110 : vector<64x1xf32> to vector<64x64xf32>
    %112 = arith.subf %108, %111 : vector<64x64xf32>
    %113 = math.exp %112 : vector<64x64xf32>
    %cst_41 = arith.constant dense<0.000000e+00> : vector<64xf32>
    %114 = vector.multi_reduction <add>, %113, %cst_41 [1] : vector<64x64xf32> to vector<64xf32>
    %115 = vector.shape_cast %114 : vector<64xf32> to vector<64x1xf32>
    %116 = vector.broadcast %115 : vector<64x1xf32> to vector<64x64xf32>
    %117 = arith.divf %113, %116 : vector<64x64xf32>
    %cst_42 = arith.constant dense<0.000000e+00> : vector<64x8xf32>
    %118 = tpu.matmul %117, %104, %cst_42 {dimension_numbers = #tpu.dot_dimension_numbers<[1], [0], [0], [1], [0, 0, 1, 1], [], []>} : vector<64x64xf32>, vector<64x8xf32>, vector<64x8xf32> -> vector<64x8xf32>
    %119 = vector.extract_strided_slice %100 {offsets = [0, 8], sizes = [64, 8], strides = [1, 1]} : vector<64x96xf32> to vector<64x8xf32>
    %120 = vector.extract_strided_slice %100 {offsets = [0, 40], sizes = [64, 8], strides = [1, 1]} : vector<64x96xf32> to vector<64x8xf32>
    %121 = vector.extract_strided_slice %100 {offsets = [0, 72], sizes = [64, 8], strides = [1, 1]} : vector<64x96xf32> to vector<64x8xf32>
    %cst_43 = arith.constant dense<0.000000e+00> : vector<64x64xf32>
    %122 = tpu.matmul %119, %120, %cst_43 {dimension_numbers = #tpu.dot_dimension_numbers<[1], [1], [0], [0], [0, 0, 1, 0], [], []>} : vector<64x8xf32>, vector<64x8xf32>, vector<64x64xf32> -> vector<64x64xf32>
    %cst_44 = arith.constant 0.353553385 : f32
    %123 = vector.broadcast %cst_44 : f32 to vector<64x64xf32>
    %124 = arith.mulf %122, %123 : vector<64x64xf32>
    %125 = arith.addf %124, %101 : vector<64x64xf32>
    %cst_45 = arith.constant dense<0xFF800000> : vector<64xf32>
    %126 = vector.multi_reduction <maximumf>, %125, %cst_45 [1] : vector<64x64xf32> to vector<64xf32>
    %127 = vector.shape_cast %126 : vector<64xf32> to vector<64x1xf32>
    %128 = vector.broadcast %127 : vector<64x1xf32> to vector<64x64xf32>
    %129 = arith.subf %125, %128 : vector<64x64xf32>
    %130 = math.exp %129 : vector<64x64xf32>
    %cst_46 = arith.constant dense<0.000000e+00> : vector<64xf32>
    %131 = vector.multi_reduction <add>, %130, %cst_46 [1] : vector<64x64xf32> to vector<64xf32>
    %132 = vector.shape_cast %131 : vector<64xf32> to vector<64x1xf32>
    %133 = vector.broadcast %132 : vector<64x1xf32> to vector<64x64xf32>
    %134 = arith.divf %130, %133 : vector<64x64xf32>
    %cst_47 = arith.constant dense<0.000000e+00> : vector<64x8xf32>
    %135 = tpu.matmul %134, %121, %cst_47 {dimension_numbers = #tpu.dot_dimension_numbers<[1], [0], [0], [1], [0, 0, 1, 1], [], []>} : vector<64x64xf32>, vector<64x8xf32>, vector<64x8xf32> -> vector<64x8xf32>
    %136 = vector.extract_strided_slice %100 {offsets = [0, 16], sizes = [64, 8], strides = [1, 1]} : vector<64x96xf32> to vector<64x8xf32>
    %137 = vector.extract_strided_slice %100 {offsets = [0, 48], sizes = [64, 8], strides = [1, 1]} : vector<64x96xf32> to vector<64x8xf32>
    %138 = vector.extract_strided_slice %100 {offsets = [0, 80], sizes = [64, 8], strides = [1, 1]} : vector<64x96xf32> to vector<64x8xf32>
    %cst_48 = arith.constant dense<0.000000e+00> : vector<64x64xf32>
    %139 = tpu.matmul %136, %137, %cst_48 {dimension_numbers = #tpu.dot_dimension_numbers<[1], [1], [0], [0], [0, 0, 1, 0], [], []>} : vector<64x8xf32>, vector<64x8xf32>, vector<64x64xf32> -> vector<64x64xf32>
    %cst_49 = arith.constant 0.353553385 : f32
    %140 = vector.broadcast %cst_49 : f32 to vector<64x64xf32>
    %141 = arith.mulf %139, %140 : vector<64x64xf32>
    %142 = arith.addf %141, %101 : vector<64x64xf32>
    %cst_50 = arith.constant dense<0xFF800000> : vector<64xf32>
    %143 = vector.multi_reduction <maximumf>, %142, %cst_50 [1] : vector<64x64xf32> to vector<64xf32>
    %144 = vector.shape_cast %143 : vector<64xf32> to vector<64x1xf32>
    %145 = vector.broadcast %144 : vector<64x1xf32> to vector<64x64xf32>
    %146 = arith.subf %142, %145 : vector<64x64xf32>
    %147 = math.exp %146 : vector<64x64xf32>
    %cst_51 = arith.constant dense<0.000000e+00> : vector<64xf32>
    %148 = vector.multi_reduction <add>, %147, %cst_51 [1] : vector<64x64xf32> to vector<64xf32>
    %149 = vector.shape_cast %148 : vector<64xf32> to vector<64x1xf32>
    %150 = vector.broadcast %149 : vector<64x1xf32> to vector<64x64xf32>
    %151 = arith.divf %147, %150 : vector<64x64xf32>
    %cst_52 = arith.constant dense<0.000000e+00> : vector<64x8xf32>
    %152 = tpu.matmul %151, %138, %cst_52 {dimension_numbers = #tpu.dot_dimension_numbers<[1], [0], [0], [1], [0, 0, 1, 1], [], []>} : vector<64x64xf32>, vector<64x8xf32>, vector<64x8xf32> -> vector<64x8xf32>
    %153 = vector.extract_strided_slice %100 {offsets = [0, 24], sizes = [64, 8], strides = [1, 1]} : vector<64x96xf32> to vector<64x8xf32>
    %154 = vector.extract_strided_slice %100 {offsets = [0, 56], sizes = [64, 8], strides = [1, 1]} : vector<64x96xf32> to vector<64x8xf32>
    %155 = vector.extract_strided_slice %100 {offsets = [0, 88], sizes = [64, 8], strides = [1, 1]} : vector<64x96xf32> to vector<64x8xf32>
    %cst_53 = arith.constant dense<0.000000e+00> : vector<64x64xf32>
    %156 = tpu.matmul %153, %154, %cst_53 {dimension_numbers = #tpu.dot_dimension_numbers<[1], [1], [0], [0], [0, 0, 1, 0], [], []>} : vector<64x8xf32>, vector<64x8xf32>, vector<64x64xf32> -> vector<64x64xf32>
    %cst_54 = arith.constant 0.353553385 : f32
    %157 = vector.broadcast %cst_54 : f32 to vector<64x64xf32>
    %158 = arith.mulf %156, %157 : vector<64x64xf32>
    %159 = arith.addf %158, %101 : vector<64x64xf32>
    %cst_55 = arith.constant dense<0xFF800000> : vector<64xf32>
    %160 = vector.multi_reduction <maximumf>, %159, %cst_55 [1] : vector<64x64xf32> to vector<64xf32>
    %161 = vector.shape_cast %160 : vector<64xf32> to vector<64x1xf32>
    %162 = vector.broadcast %161 : vector<64x1xf32> to vector<64x64xf32>
    %163 = arith.subf %159, %162 : vector<64x64xf32>
    %164 = math.exp %163 : vector<64x64xf32>
    %cst_56 = arith.constant dense<0.000000e+00> : vector<64xf32>
    %165 = vector.multi_reduction <add>, %164, %cst_56 [1] : vector<64x64xf32> to vector<64xf32>
    %166 = vector.shape_cast %165 : vector<64xf32> to vector<64x1xf32>
    %167 = vector.broadcast %166 : vector<64x1xf32> to vector<64x64xf32>
    %168 = arith.divf %164, %167 : vector<64x64xf32>
    %cst_57 = arith.constant dense<0.000000e+00> : vector<64x8xf32>
    %169 = tpu.matmul %168, %155, %cst_57 {dimension_numbers = #tpu.dot_dimension_numbers<[1], [0], [0], [1], [0, 0, 1, 1], [], []>} : vector<64x64xf32>, vector<64x8xf32>, vector<64x8xf32> -> vector<64x8xf32>
    %170 = tpu.concatenate %118, %135, %152, %169 in 1 : vector<64x8xf32>, vector<64x8xf32>, vector<64x8xf32>, vector<64x8xf32> -> vector<64x32xf32>
    %171 = vector.extract_strided_slice %28 {offsets = [0, 192], sizes = [64, 96], strides = [1, 1]} : vector<64x384xf32> to vector<64x96xf32>
    %c0_58 = arith.constant 0 : index
    %c0_59 = arith.constant 0 : index
    %172 = vector.load %arg8[%c0_58, %c0_59] : memref<64x64xf32, #tpu.memory_space<vmem>>, vector<64x64xf32>
    %173 = vector.extract_strided_slice %171 {offsets = [0, 0], sizes = [64, 8], strides = [1, 1]} : vector<64x96xf32> to vector<64x8xf32>
    %174 = vector.extract_strided_slice %171 {offsets = [0, 32], sizes = [64, 8], strides = [1, 1]} : vector<64x96xf32> to vector<64x8xf32>
    %175 = vector.extract_strided_slice %171 {offsets = [0, 64], sizes = [64, 8], strides = [1, 1]} : vector<64x96xf32> to vector<64x8xf32>
    %cst_60 = arith.constant dense<0.000000e+00> : vector<64x64xf32>
    %176 = tpu.matmul %173, %174, %cst_60 {dimension_numbers = #tpu.dot_dimension_numbers<[1], [1], [0], [0], [0, 0, 1, 0], [], []>} : vector<64x8xf32>, vector<64x8xf32>, vector<64x64xf32> -> vector<64x64xf32>
    %cst_61 = arith.constant 0.353553385 : f32
    %177 = vector.broadcast %cst_61 : f32 to vector<64x64xf32>
    %178 = arith.mulf %176, %177 : vector<64x64xf32>
    %179 = arith.addf %178, %172 : vector<64x64xf32>
    %cst_62 = arith.constant dense<0xFF800000> : vector<64xf32>
    %180 = vector.multi_reduction <maximumf>, %179, %cst_62 [1] : vector<64x64xf32> to vector<64xf32>
    %181 = vector.shape_cast %180 : vector<64xf32> to vector<64x1xf32>
    %182 = vector.broadcast %181 : vector<64x1xf32> to vector<64x64xf32>
    %183 = arith.subf %179, %182 : vector<64x64xf32>
    %184 = math.exp %183 : vector<64x64xf32>
    %cst_63 = arith.constant dense<0.000000e+00> : vector<64xf32>
    %185 = vector.multi_reduction <add>, %184, %cst_63 [1] : vector<64x64xf32> to vector<64xf32>
    %186 = vector.shape_cast %185 : vector<64xf32> to vector<64x1xf32>
    %187 = vector.broadcast %186 : vector<64x1xf32> to vector<64x64xf32>
    %188 = arith.divf %184, %187 : vector<64x64xf32>
    %cst_64 = arith.constant dense<0.000000e+00> : vector<64x8xf32>
    %189 = tpu.matmul %188, %175, %cst_64 {dimension_numbers = #tpu.dot_dimension_numbers<[1], [0], [0], [1], [0, 0, 1, 1], [], []>} : vector<64x64xf32>, vector<64x8xf32>, vector<64x8xf32> -> vector<64x8xf32>
    %190 = vector.extract_strided_slice %171 {offsets = [0, 8], sizes = [64, 8], strides = [1, 1]} : vector<64x96xf32> to vector<64x8xf32>
    %191 = vector.extract_strided_slice %171 {offsets = [0, 40], sizes = [64, 8], strides = [1, 1]} : vector<64x96xf32> to vector<64x8xf32>
    %192 = vector.extract_strided_slice %171 {offsets = [0, 72], sizes = [64, 8], strides = [1, 1]} : vector<64x96xf32> to vector<64x8xf32>
    %cst_65 = arith.constant dense<0.000000e+00> : vector<64x64xf32>
    %193 = tpu.matmul %190, %191, %cst_65 {dimension_numbers = #tpu.dot_dimension_numbers<[1], [1], [0], [0], [0, 0, 1, 0], [], []>} : vector<64x8xf32>, vector<64x8xf32>, vector<64x64xf32> -> vector<64x64xf32>
    %cst_66 = arith.constant 0.353553385 : f32
    %194 = vector.broadcast %cst_66 : f32 to vector<64x64xf32>
    %195 = arith.mulf %193, %194 : vector<64x64xf32>
    %196 = arith.addf %195, %172 : vector<64x64xf32>
    %cst_67 = arith.constant dense<0xFF800000> : vector<64xf32>
    %197 = vector.multi_reduction <maximumf>, %196, %cst_67 [1] : vector<64x64xf32> to vector<64xf32>
    %198 = vector.shape_cast %197 : vector<64xf32> to vector<64x1xf32>
    %199 = vector.broadcast %198 : vector<64x1xf32> to vector<64x64xf32>
    %200 = arith.subf %196, %199 : vector<64x64xf32>
    %201 = math.exp %200 : vector<64x64xf32>
    %cst_68 = arith.constant dense<0.000000e+00> : vector<64xf32>
    %202 = vector.multi_reduction <add>, %201, %cst_68 [1] : vector<64x64xf32> to vector<64xf32>
    %203 = vector.shape_cast %202 : vector<64xf32> to vector<64x1xf32>
    %204 = vector.broadcast %203 : vector<64x1xf32> to vector<64x64xf32>
    %205 = arith.divf %201, %204 : vector<64x64xf32>
    %cst_69 = arith.constant dense<0.000000e+00> : vector<64x8xf32>
    %206 = tpu.matmul %205, %192, %cst_69 {dimension_numbers = #tpu.dot_dimension_numbers<[1], [0], [0], [1], [0, 0, 1, 1], [], []>} : vector<64x64xf32>, vector<64x8xf32>, vector<64x8xf32> -> vector<64x8xf32>
    %207 = vector.extract_strided_slice %171 {offsets = [0, 16], sizes = [64, 8], strides = [1, 1]} : vector<64x96xf32> to vector<64x8xf32>
    %208 = vector.extract_strided_slice %171 {offsets = [0, 48], sizes = [64, 8], strides = [1, 1]} : vector<64x96xf32> to vector<64x8xf32>
    %209 = vector.extract_strided_slice %171 {offsets = [0, 80], sizes = [64, 8], strides = [1, 1]} : vector<64x96xf32> to vector<64x8xf32>
    %cst_70 = arith.constant dense<0.000000e+00> : vector<64x64xf32>
    %210 = tpu.matmul %207, %208, %cst_70 {dimension_numbers = #tpu.dot_dimension_numbers<[1], [1], [0], [0], [0, 0, 1, 0], [], []>} : vector<64x8xf32>, vector<64x8xf32>, vector<64x64xf32> -> vector<64x64xf32>
    %cst_71 = arith.constant 0.353553385 : f32
    %211 = vector.broadcast %cst_71 : f32 to vector<64x64xf32>
    %212 = arith.mulf %210, %211 : vector<64x64xf32>
    %213 = arith.addf %212, %172 : vector<64x64xf32>
    %cst_72 = arith.constant dense<0xFF800000> : vector<64xf32>
    %214 = vector.multi_reduction <maximumf>, %213, %cst_72 [1] : vector<64x64xf32> to vector<64xf32>
    %215 = vector.shape_cast %214 : vector<64xf32> to vector<64x1xf32>
    %216 = vector.broadcast %215 : vector<64x1xf32> to vector<64x64xf32>
    %217 = arith.subf %213, %216 : vector<64x64xf32>
    %218 = math.exp %217 : vector<64x64xf32>
    %cst_73 = arith.constant dense<0.000000e+00> : vector<64xf32>
    %219 = vector.multi_reduction <add>, %218, %cst_73 [1] : vector<64x64xf32> to vector<64xf32>
    %220 = vector.shape_cast %219 : vector<64xf32> to vector<64x1xf32>
    %221 = vector.broadcast %220 : vector<64x1xf32> to vector<64x64xf32>
    %222 = arith.divf %218, %221 : vector<64x64xf32>
    %cst_74 = arith.constant dense<0.000000e+00> : vector<64x8xf32>
    %223 = tpu.matmul %222, %209, %cst_74 {dimension_numbers = #tpu.dot_dimension_numbers<[1], [0], [0], [1], [0, 0, 1, 1], [], []>} : vector<64x64xf32>, vector<64x8xf32>, vector<64x8xf32> -> vector<64x8xf32>
    %224 = vector.extract_strided_slice %171 {offsets = [0, 24], sizes = [64, 8], strides = [1, 1]} : vector<64x96xf32> to vector<64x8xf32>
    %225 = vector.extract_strided_slice %171 {offsets = [0, 56], sizes = [64, 8], strides = [1, 1]} : vector<64x96xf32> to vector<64x8xf32>
    %226 = vector.extract_strided_slice %171 {offsets = [0, 88], sizes = [64, 8], strides = [1, 1]} : vector<64x96xf32> to vector<64x8xf32>
    %cst_75 = arith.constant dense<0.000000e+00> : vector<64x64xf32>
    %227 = tpu.matmul %224, %225, %cst_75 {dimension_numbers = #tpu.dot_dimension_numbers<[1], [1], [0], [0], [0, 0, 1, 0], [], []>} : vector<64x8xf32>, vector<64x8xf32>, vector<64x64xf32> -> vector<64x64xf32>
    %cst_76 = arith.constant 0.353553385 : f32
    %228 = vector.broadcast %cst_76 : f32 to vector<64x64xf32>
    %229 = arith.mulf %227, %228 : vector<64x64xf32>
    %230 = arith.addf %229, %172 : vector<64x64xf32>
    %cst_77 = arith.constant dense<0xFF800000> : vector<64xf32>
    %231 = vector.multi_reduction <maximumf>, %230, %cst_77 [1] : vector<64x64xf32> to vector<64xf32>
    %232 = vector.shape_cast %231 : vector<64xf32> to vector<64x1xf32>
    %233 = vector.broadcast %232 : vector<64x1xf32> to vector<64x64xf32>
    %234 = arith.subf %230, %233 : vector<64x64xf32>
    %235 = math.exp %234 : vector<64x64xf32>
    %cst_78 = arith.constant dense<0.000000e+00> : vector<64xf32>
    %236 = vector.multi_reduction <add>, %235, %cst_78 [1] : vector<64x64xf32> to vector<64xf32>
    %237 = vector.shape_cast %236 : vector<64xf32> to vector<64x1xf32>
    %238 = vector.broadcast %237 : vector<64x1xf32> to vector<64x64xf32>
    %239 = arith.divf %235, %238 : vector<64x64xf32>
    %cst_79 = arith.constant dense<0.000000e+00> : vector<64x8xf32>
    %240 = tpu.matmul %239, %226, %cst_79 {dimension_numbers = #tpu.dot_dimension_numbers<[1], [0], [0], [1], [0, 0, 1, 1], [], []>} : vector<64x64xf32>, vector<64x8xf32>, vector<64x8xf32> -> vector<64x8xf32>
    %241 = tpu.concatenate %189, %206, %223, %240 in 1 : vector<64x8xf32>, vector<64x8xf32>, vector<64x8xf32>, vector<64x8xf32> -> vector<64x32xf32>
    %242 = tpu.concatenate %99, %170, %241 in 1 : vector<64x32xf32>, vector<64x32xf32>, vector<64x32xf32> -> vector<64x96xf32>
    %cst_80 = arith.constant dense<0.000000e+00> : vector<32xf32>
    %243 = vector.multi_reduction <add>, %22, %cst_80 [0] : vector<64x32xf32> to vector<32xf32>
    %244 = vector.shape_cast %243 : vector<32xf32> to vector<1x32xf32>
    %cst_81 = arith.constant 6.400000e+01 : f32
    %245 = vector.broadcast %cst_81 : f32 to vector<1x32xf32>
    %246 = arith.divf %244, %245 : vector<1x32xf32>
    %c0_82 = arith.constant 0 : index
    %c0_83 = arith.constant 0 : index
    %247 = vector.load %arg20[%c0_82, %c0_83] : memref<32x32xf32, #tpu.memory_space<vmem>>, vector<32x32xf32>
    %cst_84 = arith.constant dense<0.000000e+00> : vector<1x32xf32>
    %248 = tpu.matmul %246, %247, %cst_84 {dimension_numbers = #tpu.dot_dimension_numbers<[1], [0], [0], [1], [0, 0, 1, 1], [], []>} : vector<1x32xf32>, vector<32x32xf32>, vector<1x32xf32> -> vector<1x32xf32>
    %249 = arith.negf %248 : vector<1x32xf32>
    %250 = math.exp %249 : vector<1x32xf32>
    %cst_85 = arith.constant 1.000000e+00 : f32
    %251 = vector.broadcast %cst_85 : f32 to vector<1x32xf32>
    %252 = arith.addf %251, %250 : vector<1x32xf32>
    %253 = arith.divf %251, %252 : vector<1x32xf32>
    %254 = vector.broadcast %253 : vector<1x32xf32> to vector<64x32xf32>
    %255 = arith.mulf %22, %254 : vector<64x32xf32>
    %256 = arith.addf %0, %255 : vector<64x32xf32>
    %257 = vector.extract_strided_slice %28 {offsets = [0, 288], sizes = [64, 96], strides = [1, 1]} : vector<64x384xf32> to vector<64x96xf32>
    %c0_86 = arith.constant 0 : index
    %c0_87 = arith.constant 0 : index
    %258 = vector.load %arg9[%c0_86, %c0_87] : memref<1x96xf32, #tpu.memory_space<vmem>>, vector<1x96xf32>
    %259 = vector.shape_cast %258 : vector<1x96xf32> to vector<1x96xf32>
    %260 = vector.broadcast %259 : vector<1x96xf32> to vector<8x96xf32>
    %261 = tpu.concatenate %257, %260 in 0 : vector<64x96xf32>, vector<8x96xf32> -> vector<72x96xf32>
    %c0_88 = arith.constant 0 : index
    %c0_89 = arith.constant 0 : index
    %262 = vector.load %arg10[%c0_88, %c0_89] : memref<72x72xf32, #tpu.memory_space<vmem>>, vector<72x72xf32>
    %263 = vector.extract_strided_slice %261 {offsets = [0, 0], sizes = [72, 8], strides = [1, 1]} : vector<72x96xf32> to vector<72x8xf32>
    %264 = vector.extract_strided_slice %261 {offsets = [0, 32], sizes = [72, 8], strides = [1, 1]} : vector<72x96xf32> to vector<72x8xf32>
    %265 = vector.extract_strided_slice %261 {offsets = [0, 64], sizes = [72, 8], strides = [1, 1]} : vector<72x96xf32> to vector<72x8xf32>
    %cst_90 = arith.constant dense<0.000000e+00> : vector<72x72xf32>
    %266 = tpu.matmul %263, %264, %cst_90 {dimension_numbers = #tpu.dot_dimension_numbers<[1], [1], [0], [0], [0, 0, 1, 0], [], []>} : vector<72x8xf32>, vector<72x8xf32>, vector<72x72xf32> -> vector<72x72xf32>
    %cst_91 = arith.constant 0.353553385 : f32
    %267 = vector.broadcast %cst_91 : f32 to vector<72x72xf32>
    %268 = arith.mulf %266, %267 : vector<72x72xf32>
    %269 = arith.addf %268, %262 : vector<72x72xf32>
    %cst_92 = arith.constant dense<0xFF800000> : vector<72xf32>
    %270 = vector.multi_reduction <maximumf>, %269, %cst_92 [1] : vector<72x72xf32> to vector<72xf32>
    %271 = vector.shape_cast %270 : vector<72xf32> to vector<72x1xf32>
    %272 = vector.broadcast %271 : vector<72x1xf32> to vector<72x72xf32>
    %273 = arith.subf %269, %272 : vector<72x72xf32>
    %274 = math.exp %273 : vector<72x72xf32>
    %cst_93 = arith.constant dense<0.000000e+00> : vector<72xf32>
    %275 = vector.multi_reduction <add>, %274, %cst_93 [1] : vector<72x72xf32> to vector<72xf32>
    %276 = vector.shape_cast %275 : vector<72xf32> to vector<72x1xf32>
    %277 = vector.broadcast %276 : vector<72x1xf32> to vector<72x72xf32>
    %278 = arith.divf %274, %277 : vector<72x72xf32>
    %cst_94 = arith.constant dense<0.000000e+00> : vector<72x8xf32>
    %279 = tpu.matmul %278, %265, %cst_94 {dimension_numbers = #tpu.dot_dimension_numbers<[1], [0], [0], [1], [0, 0, 1, 1], [], []>} : vector<72x72xf32>, vector<72x8xf32>, vector<72x8xf32> -> vector<72x8xf32>
    %280 = vector.extract_strided_slice %261 {offsets = [0, 8], sizes = [72, 8], strides = [1, 1]} : vector<72x96xf32> to vector<72x8xf32>
    %281 = vector.extract_strided_slice %261 {offsets = [0, 40], sizes = [72, 8], strides = [1, 1]} : vector<72x96xf32> to vector<72x8xf32>
    %282 = vector.extract_strided_slice %261 {offsets = [0, 72], sizes = [72, 8], strides = [1, 1]} : vector<72x96xf32> to vector<72x8xf32>
    %cst_95 = arith.constant dense<0.000000e+00> : vector<72x72xf32>
    %283 = tpu.matmul %280, %281, %cst_95 {dimension_numbers = #tpu.dot_dimension_numbers<[1], [1], [0], [0], [0, 0, 1, 0], [], []>} : vector<72x8xf32>, vector<72x8xf32>, vector<72x72xf32> -> vector<72x72xf32>
    %cst_96 = arith.constant 0.353553385 : f32
    %284 = vector.broadcast %cst_96 : f32 to vector<72x72xf32>
    %285 = arith.mulf %283, %284 : vector<72x72xf32>
    %286 = arith.addf %285, %262 : vector<72x72xf32>
    %cst_97 = arith.constant dense<0xFF800000> : vector<72xf32>
    %287 = vector.multi_reduction <maximumf>, %286, %cst_97 [1] : vector<72x72xf32> to vector<72xf32>
    %288 = vector.shape_cast %287 : vector<72xf32> to vector<72x1xf32>
    %289 = vector.broadcast %288 : vector<72x1xf32> to vector<72x72xf32>
    %290 = arith.subf %286, %289 : vector<72x72xf32>
    %291 = math.exp %290 : vector<72x72xf32>
    %cst_98 = arith.constant dense<0.000000e+00> : vector<72xf32>
    %292 = vector.multi_reduction <add>, %291, %cst_98 [1] : vector<72x72xf32> to vector<72xf32>
    %293 = vector.shape_cast %292 : vector<72xf32> to vector<72x1xf32>
    %294 = vector.broadcast %293 : vector<72x1xf32> to vector<72x72xf32>
    %295 = arith.divf %291, %294 : vector<72x72xf32>
    %cst_99 = arith.constant dense<0.000000e+00> : vector<72x8xf32>
    %296 = tpu.matmul %295, %282, %cst_99 {dimension_numbers = #tpu.dot_dimension_numbers<[1], [0], [0], [1], [0, 0, 1, 1], [], []>} : vector<72x72xf32>, vector<72x8xf32>, vector<72x8xf32> -> vector<72x8xf32>
    %297 = vector.extract_strided_slice %261 {offsets = [0, 16], sizes = [72, 8], strides = [1, 1]} : vector<72x96xf32> to vector<72x8xf32>
    %298 = vector.extract_strided_slice %261 {offsets = [0, 48], sizes = [72, 8], strides = [1, 1]} : vector<72x96xf32> to vector<72x8xf32>
    %299 = vector.extract_strided_slice %261 {offsets = [0, 80], sizes = [72, 8], strides = [1, 1]} : vector<72x96xf32> to vector<72x8xf32>
    %cst_100 = arith.constant dense<0.000000e+00> : vector<72x72xf32>
    %300 = tpu.matmul %297, %298, %cst_100 {dimension_numbers = #tpu.dot_dimension_numbers<[1], [1], [0], [0], [0, 0, 1, 0], [], []>} : vector<72x8xf32>, vector<72x8xf32>, vector<72x72xf32> -> vector<72x72xf32>
    %cst_101 = arith.constant 0.353553385 : f32
    %301 = vector.broadcast %cst_101 : f32 to vector<72x72xf32>
    %302 = arith.mulf %300, %301 : vector<72x72xf32>
    %303 = arith.addf %302, %262 : vector<72x72xf32>
    %cst_102 = arith.constant dense<0xFF800000> : vector<72xf32>
    %304 = vector.multi_reduction <maximumf>, %303, %cst_102 [1] : vector<72x72xf32> to vector<72xf32>
    %305 = vector.shape_cast %304 : vector<72xf32> to vector<72x1xf32>
    %306 = vector.broadcast %305 : vector<72x1xf32> to vector<72x72xf32>
    %307 = arith.subf %303, %306 : vector<72x72xf32>
    %308 = math.exp %307 : vector<72x72xf32>
    %cst_103 = arith.constant dense<0.000000e+00> : vector<72xf32>
    %309 = vector.multi_reduction <add>, %308, %cst_103 [1] : vector<72x72xf32> to vector<72xf32>
    %310 = vector.shape_cast %309 : vector<72xf32> to vector<72x1xf32>
    %311 = vector.broadcast %310 : vector<72x1xf32> to vector<72x72xf32>
    %312 = arith.divf %308, %311 : vector<72x72xf32>
    %cst_104 = arith.constant dense<0.000000e+00> : vector<72x8xf32>
    %313 = tpu.matmul %312, %299, %cst_104 {dimension_numbers = #tpu.dot_dimension_numbers<[1], [0], [0], [1], [0, 0, 1, 1], [], []>} : vector<72x72xf32>, vector<72x8xf32>, vector<72x8xf32> -> vector<72x8xf32>
    %314 = vector.extract_strided_slice %261 {offsets = [0, 24], sizes = [72, 8], strides = [1, 1]} : vector<72x96xf32> to vector<72x8xf32>
    %315 = vector.extract_strided_slice %261 {offsets = [0, 56], sizes = [72, 8], strides = [1, 1]} : vector<72x96xf32> to vector<72x8xf32>
    %316 = vector.extract_strided_slice %261 {offsets = [0, 88], sizes = [72, 8], strides = [1, 1]} : vector<72x96xf32> to vector<72x8xf32>
    %cst_105 = arith.constant dense<0.000000e+00> : vector<72x72xf32>
    %317 = tpu.matmul %314, %315, %cst_105 {dimension_numbers = #tpu.dot_dimension_numbers<[1], [1], [0], [0], [0, 0, 1, 0], [], []>} : vector<72x8xf32>, vector<72x8xf32>, vector<72x72xf32> -> vector<72x72xf32>
    %cst_106 = arith.constant 0.353553385 : f32
    %318 = vector.broadcast %cst_106 : f32 to vector<72x72xf32>
    %319 = arith.mulf %317, %318 : vector<72x72xf32>
    %320 = arith.addf %319, %262 : vector<72x72xf32>
    %cst_107 = arith.constant dense<0xFF800000> : vector<72xf32>
    %321 = vector.multi_reduction <maximumf>, %320, %cst_107 [1] : vector<72x72xf32> to vector<72xf32>
    %322 = vector.shape_cast %321 : vector<72xf32> to vector<72x1xf32>
    %323 = vector.broadcast %322 : vector<72x1xf32> to vector<72x72xf32>
    %324 = arith.subf %320, %323 : vector<72x72xf32>
    %325 = math.exp %324 : vector<72x72xf32>
    %cst_108 = arith.constant dense<0.000000e+00> : vector<72xf32>
    %326 = vector.multi_reduction <add>, %325, %cst_108 [1] : vector<72x72xf32> to vector<72xf32>
    %327 = vector.shape_cast %326 : vector<72xf32> to vector<72x1xf32>
    %328 = vector.broadcast %327 : vector<72x1xf32> to vector<72x72xf32>
    %329 = arith.divf %325, %328 : vector<72x72xf32>
    %cst_109 = arith.constant dense<0.000000e+00> : vector<72x8xf32>
    %330 = tpu.matmul %329, %316, %cst_109 {dimension_numbers = #tpu.dot_dimension_numbers<[1], [0], [0], [1], [0, 0, 1, 1], [], []>} : vector<72x72xf32>, vector<72x8xf32>, vector<72x8xf32> -> vector<72x8xf32>
    %331 = tpu.concatenate %279, %296, %313, %330 in 1 : vector<72x8xf32>, vector<72x8xf32>, vector<72x8xf32>, vector<72x8xf32> -> vector<72x32xf32>
    %332 = vector.extract_strided_slice %331 {offsets = [0, 0], sizes = [64, 32], strides = [1, 1]} : vector<72x32xf32> to vector<64x32xf32>
    %333 = vector.extract_strided_slice %331 {offsets = [64, 0], sizes = [8, 32], strides = [1, 1]} : vector<72x32xf32> to vector<8x32xf32>
    %c0_110 = arith.constant 0 : index
    %c0_111 = arith.constant 0 : index
    %334 = vector.load %arg14[%c0_110, %c0_111] : memref<1x32xf32, #tpu.memory_space<vmem>>, vector<1x32xf32>
    %c0_112 = arith.constant 0 : index
    %c0_113 = arith.constant 0 : index
    %335 = vector.load %arg15[%c0_112, %c0_113] : memref<1x32xf32, #tpu.memory_space<vmem>>, vector<1x32xf32>
    %336 = vector.extract_strided_slice %333 {offsets = [0, 0], sizes = [8, 8], strides = [1, 1]} : vector<8x32xf32> to vector<8x8xf32>
    %cst_114 = arith.constant dense<0.000000e+00> : vector<8xf32>
    %337 = vector.multi_reduction <add>, %336, %cst_114 [1] : vector<8x8xf32> to vector<8xf32>
    %338 = vector.shape_cast %337 : vector<8xf32> to vector<8x1xf32>
    %cst_115 = arith.constant 8.000000e+00 : f32
    %339 = vector.broadcast %cst_115 : f32 to vector<8x1xf32>
    %340 = arith.divf %338, %339 : vector<8x1xf32>
    %341 = vector.broadcast %340 : vector<8x1xf32> to vector<8x8xf32>
    %342 = arith.subf %336, %341 : vector<8x8xf32>
    %343 = arith.mulf %342, %342 : vector<8x8xf32>
    %cst_116 = arith.constant dense<0.000000e+00> : vector<8xf32>
    %344 = vector.multi_reduction <add>, %343, %cst_116 [1] : vector<8x8xf32> to vector<8xf32>
    %345 = vector.shape_cast %344 : vector<8xf32> to vector<8x1xf32>
    %cst_117 = arith.constant 8.000000e+00 : f32
    %346 = vector.broadcast %cst_117 : f32 to vector<8x1xf32>
    %347 = arith.divf %345, %346 : vector<8x1xf32>
    %348 = vector.broadcast %340 : vector<8x1xf32> to vector<8x8xf32>
    %349 = arith.subf %336, %348 : vector<8x8xf32>
    %cst_118 = arith.constant 9.99999974E-6 : f32
    %350 = vector.broadcast %cst_118 : f32 to vector<8x1xf32>
    %351 = arith.addf %347, %350 : vector<8x1xf32>
    %352 = math.rsqrt %351 : vector<8x1xf32>
    %353 = vector.broadcast %352 : vector<8x1xf32> to vector<8x8xf32>
    %354 = arith.mulf %349, %353 : vector<8x8xf32>
    %355 = vector.extract_strided_slice %334 {offsets = [0, 0], sizes = [1, 8], strides = [1, 1]} : vector<1x32xf32> to vector<1x8xf32>
    %356 = vector.broadcast %355 : vector<1x8xf32> to vector<8x8xf32>
    %357 = arith.mulf %354, %356 : vector<8x8xf32>
    %358 = vector.extract_strided_slice %335 {offsets = [0, 0], sizes = [1, 8], strides = [1, 1]} : vector<1x32xf32> to vector<1x8xf32>
    %359 = vector.broadcast %358 : vector<1x8xf32> to vector<8x8xf32>
    %360 = arith.addf %357, %359 : vector<8x8xf32>
    %361 = vector.extract_strided_slice %333 {offsets = [0, 8], sizes = [8, 8], strides = [1, 1]} : vector<8x32xf32> to vector<8x8xf32>
    %cst_119 = arith.constant dense<0.000000e+00> : vector<8xf32>
    %362 = vector.multi_reduction <add>, %361, %cst_119 [1] : vector<8x8xf32> to vector<8xf32>
    %363 = vector.shape_cast %362 : vector<8xf32> to vector<8x1xf32>
    %cst_120 = arith.constant 8.000000e+00 : f32
    %364 = vector.broadcast %cst_120 : f32 to vector<8x1xf32>
    %365 = arith.divf %363, %364 : vector<8x1xf32>
    %366 = vector.broadcast %365 : vector<8x1xf32> to vector<8x8xf32>
    %367 = arith.subf %361, %366 : vector<8x8xf32>
    %368 = arith.mulf %367, %367 : vector<8x8xf32>
    %cst_121 = arith.constant dense<0.000000e+00> : vector<8xf32>
    %369 = vector.multi_reduction <add>, %368, %cst_121 [1] : vector<8x8xf32> to vector<8xf32>
    %370 = vector.shape_cast %369 : vector<8xf32> to vector<8x1xf32>
    %cst_122 = arith.constant 8.000000e+00 : f32
    %371 = vector.broadcast %cst_122 : f32 to vector<8x1xf32>
    %372 = arith.divf %370, %371 : vector<8x1xf32>
    %373 = vector.broadcast %365 : vector<8x1xf32> to vector<8x8xf32>
    %374 = arith.subf %361, %373 : vector<8x8xf32>
    %cst_123 = arith.constant 9.99999974E-6 : f32
    %375 = vector.broadcast %cst_123 : f32 to vector<8x1xf32>
    %376 = arith.addf %372, %375 : vector<8x1xf32>
    %377 = math.rsqrt %376 : vector<8x1xf32>
    %378 = vector.broadcast %377 : vector<8x1xf32> to vector<8x8xf32>
    %379 = arith.mulf %374, %378 : vector<8x8xf32>
    %380 = vector.extract_strided_slice %334 {offsets = [0, 8], sizes = [1, 8], strides = [1, 1]} : vector<1x32xf32> to vector<1x8xf32>
    %381 = vector.broadcast %380 : vector<1x8xf32> to vector<8x8xf32>
    %382 = arith.mulf %379, %381 : vector<8x8xf32>
    %383 = vector.extract_strided_slice %335 {offsets = [0, 8], sizes = [1, 8], strides = [1, 1]} : vector<1x32xf32> to vector<1x8xf32>
    %384 = vector.broadcast %383 : vector<1x8xf32> to vector<8x8xf32>
    %385 = arith.addf %382, %384 : vector<8x8xf32>
    %386 = vector.extract_strided_slice %333 {offsets = [0, 16], sizes = [8, 8], strides = [1, 1]} : vector<8x32xf32> to vector<8x8xf32>
    %cst_124 = arith.constant dense<0.000000e+00> : vector<8xf32>
    %387 = vector.multi_reduction <add>, %386, %cst_124 [1] : vector<8x8xf32> to vector<8xf32>
    %388 = vector.shape_cast %387 : vector<8xf32> to vector<8x1xf32>
    %cst_125 = arith.constant 8.000000e+00 : f32
    %389 = vector.broadcast %cst_125 : f32 to vector<8x1xf32>
    %390 = arith.divf %388, %389 : vector<8x1xf32>
    %391 = vector.broadcast %390 : vector<8x1xf32> to vector<8x8xf32>
    %392 = arith.subf %386, %391 : vector<8x8xf32>
    %393 = arith.mulf %392, %392 : vector<8x8xf32>
    %cst_126 = arith.constant dense<0.000000e+00> : vector<8xf32>
    %394 = vector.multi_reduction <add>, %393, %cst_126 [1] : vector<8x8xf32> to vector<8xf32>
    %395 = vector.shape_cast %394 : vector<8xf32> to vector<8x1xf32>
    %cst_127 = arith.constant 8.000000e+00 : f32
    %396 = vector.broadcast %cst_127 : f32 to vector<8x1xf32>
    %397 = arith.divf %395, %396 : vector<8x1xf32>
    %398 = vector.broadcast %390 : vector<8x1xf32> to vector<8x8xf32>
    %399 = arith.subf %386, %398 : vector<8x8xf32>
    %cst_128 = arith.constant 9.99999974E-6 : f32
    %400 = vector.broadcast %cst_128 : f32 to vector<8x1xf32>
    %401 = arith.addf %397, %400 : vector<8x1xf32>
    %402 = math.rsqrt %401 : vector<8x1xf32>
    %403 = vector.broadcast %402 : vector<8x1xf32> to vector<8x8xf32>
    %404 = arith.mulf %399, %403 : vector<8x8xf32>
    %405 = vector.extract_strided_slice %334 {offsets = [0, 16], sizes = [1, 8], strides = [1, 1]} : vector<1x32xf32> to vector<1x8xf32>
    %406 = vector.broadcast %405 : vector<1x8xf32> to vector<8x8xf32>
    %407 = arith.mulf %404, %406 : vector<8x8xf32>
    %408 = vector.extract_strided_slice %335 {offsets = [0, 16], sizes = [1, 8], strides = [1, 1]} : vector<1x32xf32> to vector<1x8xf32>
    %409 = vector.broadcast %408 : vector<1x8xf32> to vector<8x8xf32>
    %410 = arith.addf %407, %409 : vector<8x8xf32>
    %411 = vector.extract_strided_slice %333 {offsets = [0, 24], sizes = [8, 8], strides = [1, 1]} : vector<8x32xf32> to vector<8x8xf32>
    %cst_129 = arith.constant dense<0.000000e+00> : vector<8xf32>
    %412 = vector.multi_reduction <add>, %411, %cst_129 [1] : vector<8x8xf32> to vector<8xf32>
    %413 = vector.shape_cast %412 : vector<8xf32> to vector<8x1xf32>
    %cst_130 = arith.constant 8.000000e+00 : f32
    %414 = vector.broadcast %cst_130 : f32 to vector<8x1xf32>
    %415 = arith.divf %413, %414 : vector<8x1xf32>
    %416 = vector.broadcast %415 : vector<8x1xf32> to vector<8x8xf32>
    %417 = arith.subf %411, %416 : vector<8x8xf32>
    %418 = arith.mulf %417, %417 : vector<8x8xf32>
    %cst_131 = arith.constant dense<0.000000e+00> : vector<8xf32>
    %419 = vector.multi_reduction <add>, %418, %cst_131 [1] : vector<8x8xf32> to vector<8xf32>
    %420 = vector.shape_cast %419 : vector<8xf32> to vector<8x1xf32>
    %cst_132 = arith.constant 8.000000e+00 : f32
    %421 = vector.broadcast %cst_132 : f32 to vector<8x1xf32>
    %422 = arith.divf %420, %421 : vector<8x1xf32>
    %423 = vector.broadcast %415 : vector<8x1xf32> to vector<8x8xf32>
    %424 = arith.subf %411, %423 : vector<8x8xf32>
    %cst_133 = arith.constant 9.99999974E-6 : f32
    %425 = vector.broadcast %cst_133 : f32 to vector<8x1xf32>
    %426 = arith.addf %422, %425 : vector<8x1xf32>
    %427 = math.rsqrt %426 : vector<8x1xf32>
    %428 = vector.broadcast %427 : vector<8x1xf32> to vector<8x8xf32>
    %429 = arith.mulf %424, %428 : vector<8x8xf32>
    %430 = vector.extract_strided_slice %334 {offsets = [0, 24], sizes = [1, 8], strides = [1, 1]} : vector<1x32xf32> to vector<1x8xf32>
    %431 = vector.broadcast %430 : vector<1x8xf32> to vector<8x8xf32>
    %432 = arith.mulf %429, %431 : vector<8x8xf32>
    %433 = vector.extract_strided_slice %335 {offsets = [0, 24], sizes = [1, 8], strides = [1, 1]} : vector<1x32xf32> to vector<1x8xf32>
    %434 = vector.broadcast %433 : vector<1x8xf32> to vector<8x8xf32>
    %435 = arith.addf %432, %434 : vector<8x8xf32>
    %436 = tpu.concatenate %360, %385, %410, %435 in 1 : vector<8x8xf32>, vector<8x8xf32>, vector<8x8xf32>, vector<8x8xf32> -> vector<8x32xf32>
    %437 = arith.mulf %436, %436 : vector<8x32xf32>
    %438 = arith.mulf %436, %437 : vector<8x32xf32>
    %cst_134 = arith.constant 4.471500e-02 : f32
    %439 = vector.broadcast %cst_134 : f32 to vector<8x32xf32>
    %440 = arith.mulf %439, %438 : vector<8x32xf32>
    %441 = arith.addf %436, %440 : vector<8x32xf32>
    %cst_135 = arith.constant 0.797884583 : f32
    %442 = vector.broadcast %cst_135 : f32 to vector<8x32xf32>
    %443 = arith.mulf %442, %441 : vector<8x32xf32>
    %444 = math.tanh %443 : vector<8x32xf32>
    %cst_136 = arith.constant 1.000000e+00 : f32
    %445 = vector.broadcast %cst_136 : f32 to vector<8x32xf32>
    %446 = arith.addf %445, %444 : vector<8x32xf32>
    %cst_137 = arith.constant 5.000000e-01 : f32
    %447 = vector.broadcast %cst_137 : f32 to vector<8x32xf32>
    %448 = arith.mulf %447, %446 : vector<8x32xf32>
    %449 = arith.mulf %436, %448 : vector<8x32xf32>
    %c0_138 = arith.constant 0 : index
    %c0_139 = arith.constant 0 : index
    %450 = vector.load %arg16[%c0_138, %c0_139] : memref<32x64xbf16, #tpu.memory_space<vmem>>, vector<32x64xbf16>
    %451 = arith.truncf %449 : vector<8x32xf32> to vector<8x32xbf16>
    %cst_140 = arith.constant dense<0.000000e+00> : vector<8x64xf32>
    %452 = tpu.matmul %451, %450, %cst_140 {dimension_numbers = #tpu.dot_dimension_numbers<[1], [0], [0], [1], [0, 0, 1, 1], [], []>} : vector<8x32xbf16>, vector<32x64xbf16>, vector<8x64xf32> -> vector<8x64xf32>
    %c0_141 = arith.constant 0 : index
    %c0_142 = arith.constant 0 : index
    %453 = vector.load %arg17[%c0_141, %c0_142] : memref<1x64xf32, #tpu.memory_space<vmem>>, vector<1x64xf32>
    %454 = vector.broadcast %453 : vector<1x64xf32> to vector<8x64xf32>
    %455 = arith.addf %452, %454 : vector<8x64xf32>
    %c0_143 = arith.constant 0 : index
    %c0_144 = arith.constant 0 : index
    %456 = vector.load %arg11[%c0_143, %c0_144] : memref<64x8xf32, #tpu.memory_space<vmem>>, vector<64x8xf32>
    %c0_145 = arith.constant 0 : index
    %c0_146 = arith.constant 0 : index
    %457 = vector.load %arg12[%c0_145, %c0_146] : memref<8x64xf32, #tpu.memory_space<vmem>>, vector<8x64xf32>
    %c0_147 = arith.constant 0 : index
    %c0_148 = arith.constant 0 : index
    %458 = vector.load %arg13[%c0_147, %c0_148] : memref<64x64xf32, #tpu.memory_space<vmem>>, vector<64x64xf32>
    %459 = vector.extract_strided_slice %455 {offsets = [0, 0], sizes = [8, 8], strides = [1, 1]} : vector<8x64xf32> to vector<8x8xf32>
    %cst_149 = arith.constant 0.353553385 : f32
    %460 = vector.broadcast %cst_149 : f32 to vector<8x8xf32>
    %461 = arith.mulf %459, %460 : vector<8x8xf32>
    %462 = vector.extract_strided_slice %455 {offsets = [0, 8], sizes = [8, 8], strides = [1, 1]} : vector<8x64xf32> to vector<8x8xf32>
    %cst_150 = arith.constant dense<0.000000e+00> : vector<8x8xf32>
    %463 = tpu.matmul %461, %462, %cst_150 {dimension_numbers = #tpu.dot_dimension_numbers<[1], [1], [0], [0], [0, 0, 1, 0], [], []>} : vector<8x8xf32>, vector<8x8xf32>, vector<8x8xf32> -> vector<8x8xf32>
    %cst_151 = arith.constant dense<0xFF800000> : vector<8xf32>
    %464 = vector.multi_reduction <maximumf>, %463, %cst_151 [1] : vector<8x8xf32> to vector<8xf32>
    %465 = vector.shape_cast %464 : vector<8xf32> to vector<8x1xf32>
    %466 = vector.broadcast %465 : vector<8x1xf32> to vector<8x8xf32>
    %467 = arith.subf %463, %466 : vector<8x8xf32>
    %468 = math.exp %467 : vector<8x8xf32>
    %cst_152 = arith.constant dense<0.000000e+00> : vector<8xf32>
    %469 = vector.multi_reduction <add>, %468, %cst_152 [1] : vector<8x8xf32> to vector<8xf32>
    %470 = vector.shape_cast %469 : vector<8xf32> to vector<8x1xf32>
    %471 = vector.broadcast %470 : vector<8x1xf32> to vector<8x8xf32>
    %472 = arith.divf %468, %471 : vector<8x8xf32>
    %cst_153 = arith.constant dense<0.000000e+00> : vector<64x8xf32>
    %473 = tpu.matmul %456, %472, %cst_153 {dimension_numbers = #tpu.dot_dimension_numbers<[1], [0], [0], [1], [0, 0, 1, 1], [], []>} : vector<64x8xf32>, vector<8x8xf32>, vector<64x8xf32> -> vector<64x8xf32>
    %cst_154 = arith.constant dense<0.000000e+00> : vector<64x64xf32>
    %474 = tpu.matmul %473, %457, %cst_154 {dimension_numbers = #tpu.dot_dimension_numbers<[1], [0], [0], [1], [0, 0, 1, 1], [], []>} : vector<64x8xf32>, vector<8x64xf32>, vector<64x64xf32> -> vector<64x64xf32>
    %475 = arith.mulf %474, %458 : vector<64x64xf32>
    %476 = vector.extract_strided_slice %332 {offsets = [0, 0], sizes = [64, 8], strides = [1, 1]} : vector<64x32xf32> to vector<64x8xf32>
    %cst_155 = arith.constant dense<0.000000e+00> : vector<64x8xf32>
    %477 = tpu.matmul %475, %476, %cst_155 {dimension_numbers = #tpu.dot_dimension_numbers<[1], [0], [0], [1], [0, 0, 1, 1], [], []>} : vector<64x64xf32>, vector<64x8xf32>, vector<64x8xf32> -> vector<64x8xf32>
    %478 = vector.extract_strided_slice %455 {offsets = [0, 16], sizes = [8, 8], strides = [1, 1]} : vector<8x64xf32> to vector<8x8xf32>
    %cst_156 = arith.constant 0.353553385 : f32
    %479 = vector.broadcast %cst_156 : f32 to vector<8x8xf32>
    %480 = arith.mulf %478, %479 : vector<8x8xf32>
    %481 = vector.extract_strided_slice %455 {offsets = [0, 24], sizes = [8, 8], strides = [1, 1]} : vector<8x64xf32> to vector<8x8xf32>
    %cst_157 = arith.constant dense<0.000000e+00> : vector<8x8xf32>
    %482 = tpu.matmul %480, %481, %cst_157 {dimension_numbers = #tpu.dot_dimension_numbers<[1], [1], [0], [0], [0, 0, 1, 0], [], []>} : vector<8x8xf32>, vector<8x8xf32>, vector<8x8xf32> -> vector<8x8xf32>
    %cst_158 = arith.constant dense<0xFF800000> : vector<8xf32>
    %483 = vector.multi_reduction <maximumf>, %482, %cst_158 [1] : vector<8x8xf32> to vector<8xf32>
    %484 = vector.shape_cast %483 : vector<8xf32> to vector<8x1xf32>
    %485 = vector.broadcast %484 : vector<8x1xf32> to vector<8x8xf32>
    %486 = arith.subf %482, %485 : vector<8x8xf32>
    %487 = math.exp %486 : vector<8x8xf32>
    %cst_159 = arith.constant dense<0.000000e+00> : vector<8xf32>
    %488 = vector.multi_reduction <add>, %487, %cst_159 [1] : vector<8x8xf32> to vector<8xf32>
    %489 = vector.shape_cast %488 : vector<8xf32> to vector<8x1xf32>
    %490 = vector.broadcast %489 : vector<8x1xf32> to vector<8x8xf32>
    %491 = arith.divf %487, %490 : vector<8x8xf32>
    %cst_160 = arith.constant dense<0.000000e+00> : vector<64x8xf32>
    %492 = tpu.matmul %456, %491, %cst_160 {dimension_numbers = #tpu.dot_dimension_numbers<[1], [0], [0], [1], [0, 0, 1, 1], [], []>} : vector<64x8xf32>, vector<8x8xf32>, vector<64x8xf32> -> vector<64x8xf32>
    %cst_161 = arith.constant dense<0.000000e+00> : vector<64x64xf32>
    %493 = tpu.matmul %492, %457, %cst_161 {dimension_numbers = #tpu.dot_dimension_numbers<[1], [0], [0], [1], [0, 0, 1, 1], [], []>} : vector<64x8xf32>, vector<8x64xf32>, vector<64x64xf32> -> vector<64x64xf32>
    %494 = arith.mulf %493, %458 : vector<64x64xf32>
    %495 = vector.extract_strided_slice %332 {offsets = [0, 8], sizes = [64, 8], strides = [1, 1]} : vector<64x32xf32> to vector<64x8xf32>
    %cst_162 = arith.constant dense<0.000000e+00> : vector<64x8xf32>
    %496 = tpu.matmul %494, %495, %cst_162 {dimension_numbers = #tpu.dot_dimension_numbers<[1], [0], [0], [1], [0, 0, 1, 1], [], []>} : vector<64x64xf32>, vector<64x8xf32>, vector<64x8xf32> -> vector<64x8xf32>
    %497 = vector.extract_strided_slice %455 {offsets = [0, 32], sizes = [8, 8], strides = [1, 1]} : vector<8x64xf32> to vector<8x8xf32>
    %cst_163 = arith.constant 0.353553385 : f32
    %498 = vector.broadcast %cst_163 : f32 to vector<8x8xf32>
    %499 = arith.mulf %497, %498 : vector<8x8xf32>
    %500 = vector.extract_strided_slice %455 {offsets = [0, 40], sizes = [8, 8], strides = [1, 1]} : vector<8x64xf32> to vector<8x8xf32>
    %cst_164 = arith.constant dense<0.000000e+00> : vector<8x8xf32>
    %501 = tpu.matmul %499, %500, %cst_164 {dimension_numbers = #tpu.dot_dimension_numbers<[1], [1], [0], [0], [0, 0, 1, 0], [], []>} : vector<8x8xf32>, vector<8x8xf32>, vector<8x8xf32> -> vector<8x8xf32>
    %cst_165 = arith.constant dense<0xFF800000> : vector<8xf32>
    %502 = vector.multi_reduction <maximumf>, %501, %cst_165 [1] : vector<8x8xf32> to vector<8xf32>
    %503 = vector.shape_cast %502 : vector<8xf32> to vector<8x1xf32>
    %504 = vector.broadcast %503 : vector<8x1xf32> to vector<8x8xf32>
    %505 = arith.subf %501, %504 : vector<8x8xf32>
    %506 = math.exp %505 : vector<8x8xf32>
    %cst_166 = arith.constant dense<0.000000e+00> : vector<8xf32>
    %507 = vector.multi_reduction <add>, %506, %cst_166 [1] : vector<8x8xf32> to vector<8xf32>
    %508 = vector.shape_cast %507 : vector<8xf32> to vector<8x1xf32>
    %509 = vector.broadcast %508 : vector<8x1xf32> to vector<8x8xf32>
    %510 = arith.divf %506, %509 : vector<8x8xf32>
    %cst_167 = arith.constant dense<0.000000e+00> : vector<64x8xf32>
    %511 = tpu.matmul %456, %510, %cst_167 {dimension_numbers = #tpu.dot_dimension_numbers<[1], [0], [0], [1], [0, 0, 1, 1], [], []>} : vector<64x8xf32>, vector<8x8xf32>, vector<64x8xf32> -> vector<64x8xf32>
    %cst_168 = arith.constant dense<0.000000e+00> : vector<64x64xf32>
    %512 = tpu.matmul %511, %457, %cst_168 {dimension_numbers = #tpu.dot_dimension_numbers<[1], [0], [0], [1], [0, 0, 1, 1], [], []>} : vector<64x8xf32>, vector<8x64xf32>, vector<64x64xf32> -> vector<64x64xf32>
    %513 = arith.mulf %512, %458 : vector<64x64xf32>
    %514 = vector.extract_strided_slice %332 {offsets = [0, 16], sizes = [64, 8], strides = [1, 1]} : vector<64x32xf32> to vector<64x8xf32>
    %cst_169 = arith.constant dense<0.000000e+00> : vector<64x8xf32>
    %515 = tpu.matmul %513, %514, %cst_169 {dimension_numbers = #tpu.dot_dimension_numbers<[1], [0], [0], [1], [0, 0, 1, 1], [], []>} : vector<64x64xf32>, vector<64x8xf32>, vector<64x8xf32> -> vector<64x8xf32>
    %516 = vector.extract_strided_slice %455 {offsets = [0, 48], sizes = [8, 8], strides = [1, 1]} : vector<8x64xf32> to vector<8x8xf32>
    %cst_170 = arith.constant 0.353553385 : f32
    %517 = vector.broadcast %cst_170 : f32 to vector<8x8xf32>
    %518 = arith.mulf %516, %517 : vector<8x8xf32>
    %519 = vector.extract_strided_slice %455 {offsets = [0, 56], sizes = [8, 8], strides = [1, 1]} : vector<8x64xf32> to vector<8x8xf32>
    %cst_171 = arith.constant dense<0.000000e+00> : vector<8x8xf32>
    %520 = tpu.matmul %518, %519, %cst_171 {dimension_numbers = #tpu.dot_dimension_numbers<[1], [1], [0], [0], [0, 0, 1, 0], [], []>} : vector<8x8xf32>, vector<8x8xf32>, vector<8x8xf32> -> vector<8x8xf32>
    %cst_172 = arith.constant dense<0xFF800000> : vector<8xf32>
    %521 = vector.multi_reduction <maximumf>, %520, %cst_172 [1] : vector<8x8xf32> to vector<8xf32>
    %522 = vector.shape_cast %521 : vector<8xf32> to vector<8x1xf32>
    %523 = vector.broadcast %522 : vector<8x1xf32> to vector<8x8xf32>
    %524 = arith.subf %520, %523 : vector<8x8xf32>
    %525 = math.exp %524 : vector<8x8xf32>
    %cst_173 = arith.constant dense<0.000000e+00> : vector<8xf32>
    %526 = vector.multi_reduction <add>, %525, %cst_173 [1] : vector<8x8xf32> to vector<8xf32>
    %527 = vector.shape_cast %526 : vector<8xf32> to vector<8x1xf32>
    %528 = vector.broadcast %527 : vector<8x1xf32> to vector<8x8xf32>
    %529 = arith.divf %525, %528 : vector<8x8xf32>
    %cst_174 = arith.constant dense<0.000000e+00> : vector<64x8xf32>
    %530 = tpu.matmul %456, %529, %cst_174 {dimension_numbers = #tpu.dot_dimension_numbers<[1], [0], [0], [1], [0, 0, 1, 1], [], []>} : vector<64x8xf32>, vector<8x8xf32>, vector<64x8xf32> -> vector<64x8xf32>
    %cst_175 = arith.constant dense<0.000000e+00> : vector<64x64xf32>
    %531 = tpu.matmul %530, %457, %cst_175 {dimension_numbers = #tpu.dot_dimension_numbers<[1], [0], [0], [1], [0, 0, 1, 1], [], []>} : vector<64x8xf32>, vector<8x64xf32>, vector<64x64xf32> -> vector<64x64xf32>
    %532 = arith.mulf %531, %458 : vector<64x64xf32>
    %533 = vector.extract_strided_slice %332 {offsets = [0, 24], sizes = [64, 8], strides = [1, 1]} : vector<64x32xf32> to vector<64x8xf32>
    %cst_176 = arith.constant dense<0.000000e+00> : vector<64x8xf32>
    %534 = tpu.matmul %532, %533, %cst_176 {dimension_numbers = #tpu.dot_dimension_numbers<[1], [0], [0], [1], [0, 0, 1, 1], [], []>} : vector<64x64xf32>, vector<64x8xf32>, vector<64x8xf32> -> vector<64x8xf32>
    %535 = tpu.concatenate %477, %496, %515, %534 in 1 : vector<64x8xf32>, vector<64x8xf32>, vector<64x8xf32>, vector<64x8xf32> -> vector<64x32xf32>
    %536 = arith.addf %256, %535 : vector<64x32xf32>
    %c0_177 = arith.constant 0 : index
    %c0_178 = arith.constant 0 : index
    %537 = vector.load %arg18[%c0_177, %c0_178] : memref<96x32xbf16, #tpu.memory_space<vmem>>, vector<96x32xbf16>
    %538 = arith.truncf %242 : vector<64x96xf32> to vector<64x96xbf16>
    %cst_179 = arith.constant dense<0.000000e+00> : vector<64x32xf32>
    %539 = tpu.matmul %538, %537, %cst_179 {dimension_numbers = #tpu.dot_dimension_numbers<[1], [0], [0], [1], [0, 0, 1, 1], [], []>} : vector<64x96xbf16>, vector<96x32xbf16>, vector<64x32xf32> -> vector<64x32xf32>
    %c0_180 = arith.constant 0 : index
    %c0_181 = arith.constant 0 : index
    %540 = vector.load %arg19[%c0_180, %c0_181] : memref<1x32xf32, #tpu.memory_space<vmem>>, vector<1x32xf32>
    %541 = vector.broadcast %540 : vector<1x32xf32> to vector<64x32xf32>
    %542 = arith.addf %539, %541 : vector<64x32xf32>
    %543 = arith.addf %542, %536 : vector<64x32xf32>
    %c0_182 = arith.constant 0 : index
    %c0_183 = arith.constant 0 : index
    %544 = vector.load %arg21[%c0_182, %c0_183] : memref<1x32xf32, #tpu.memory_space<vmem>>, vector<1x32xf32>
    %c0_184 = arith.constant 0 : index
    %c0_185 = arith.constant 0 : index
    %545 = vector.load %arg22[%c0_184, %c0_185] : memref<1x32xf32, #tpu.memory_space<vmem>>, vector<1x32xf32>
    %cst_186 = arith.constant dense<0.000000e+00> : vector<64xf32>
    %546 = vector.multi_reduction <add>, %543, %cst_186 [1] : vector<64x32xf32> to vector<64xf32>
    %547 = vector.shape_cast %546 : vector<64xf32> to vector<64x1xf32>
    %cst_187 = arith.constant 3.200000e+01 : f32
    %548 = vector.broadcast %cst_187 : f32 to vector<64x1xf32>
    %549 = arith.divf %547, %548 : vector<64x1xf32>
    %550 = vector.broadcast %549 : vector<64x1xf32> to vector<64x32xf32>
    %551 = arith.subf %543, %550 : vector<64x32xf32>
    %552 = arith.mulf %551, %551 : vector<64x32xf32>
    %cst_188 = arith.constant dense<0.000000e+00> : vector<64xf32>
    %553 = vector.multi_reduction <add>, %552, %cst_188 [1] : vector<64x32xf32> to vector<64xf32>
    %554 = vector.shape_cast %553 : vector<64xf32> to vector<64x1xf32>
    %cst_189 = arith.constant 3.200000e+01 : f32
    %555 = vector.broadcast %cst_189 : f32 to vector<64x1xf32>
    %556 = arith.divf %554, %555 : vector<64x1xf32>
    %cst_190 = arith.constant 9.99999997E-7 : f32
    %557 = vector.broadcast %cst_190 : f32 to vector<64x1xf32>
    %558 = arith.addf %556, %557 : vector<64x1xf32>
    %559 = math.rsqrt %558 : vector<64x1xf32>
    %560 = vector.broadcast %559 : vector<64x1xf32> to vector<64x32xf32>
    %561 = arith.mulf %551, %560 : vector<64x32xf32>
    %562 = vector.broadcast %544 : vector<1x32xf32> to vector<64x32xf32>
    %563 = arith.mulf %561, %562 : vector<64x32xf32>
    %564 = vector.broadcast %545 : vector<1x32xf32> to vector<64x32xf32>
    %565 = arith.addf %563, %564 : vector<64x32xf32>
    %c0_191 = arith.constant 0 : index
    %c0_192 = arith.constant 0 : index
    %566 = vector.load %arg23[%c0_191, %c0_192] : memref<32x64xbf16, #tpu.memory_space<vmem>>, vector<32x64xbf16>
    %567 = arith.truncf %565 : vector<64x32xf32> to vector<64x32xbf16>
    %cst_193 = arith.constant dense<0.000000e+00> : vector<64x64xf32>
    %568 = tpu.matmul %567, %566, %cst_193 {dimension_numbers = #tpu.dot_dimension_numbers<[1], [0], [0], [1], [0, 0, 1, 1], [], []>} : vector<64x32xbf16>, vector<32x64xbf16>, vector<64x64xf32> -> vector<64x64xf32>
    %c0_194 = arith.constant 0 : index
    %c0_195 = arith.constant 0 : index
    %569 = vector.load %arg24[%c0_194, %c0_195] : memref<1x64xf32, #tpu.memory_space<vmem>>, vector<1x64xf32>
    %570 = vector.broadcast %569 : vector<1x64xf32> to vector<64x64xf32>
    %571 = arith.addf %568, %570 : vector<64x64xf32>
    %572 = arith.mulf %571, %571 : vector<64x64xf32>
    %573 = arith.mulf %571, %572 : vector<64x64xf32>
    %cst_196 = arith.constant 4.471500e-02 : f32
    %574 = vector.broadcast %cst_196 : f32 to vector<64x64xf32>
    %575 = arith.mulf %574, %573 : vector<64x64xf32>
    %576 = arith.addf %571, %575 : vector<64x64xf32>
    %cst_197 = arith.constant 0.797884583 : f32
    %577 = vector.broadcast %cst_197 : f32 to vector<64x64xf32>
    %578 = arith.mulf %577, %576 : vector<64x64xf32>
    %579 = math.tanh %578 : vector<64x64xf32>
    %cst_198 = arith.constant 1.000000e+00 : f32
    %580 = vector.broadcast %cst_198 : f32 to vector<64x64xf32>
    %581 = arith.addf %580, %579 : vector<64x64xf32>
    %cst_199 = arith.constant 5.000000e-01 : f32
    %582 = vector.broadcast %cst_199 : f32 to vector<64x64xf32>
    %583 = arith.mulf %582, %581 : vector<64x64xf32>
    %584 = arith.mulf %571, %583 : vector<64x64xf32>
    %c0_200 = arith.constant 0 : index
    %c0_201 = arith.constant 0 : index
    %585 = vector.load %arg25[%c0_200, %c0_201] : memref<64x32xbf16, #tpu.memory_space<vmem>>, vector<64x32xbf16>
    %586 = arith.truncf %584 : vector<64x64xf32> to vector<64x64xbf16>
    %cst_202 = arith.constant dense<0.000000e+00> : vector<64x32xf32>
    %587 = tpu.matmul %586, %585, %cst_202 {dimension_numbers = #tpu.dot_dimension_numbers<[1], [0], [0], [1], [0, 0, 1, 1], [], []>} : vector<64x64xbf16>, vector<64x32xbf16>, vector<64x32xf32> -> vector<64x32xf32>
    %c0_203 = arith.constant 0 : index
    %c0_204 = arith.constant 0 : index
    %588 = vector.load %arg26[%c0_203, %c0_204] : memref<1x32xf32, #tpu.memory_space<vmem>>, vector<1x32xf32>
    %589 = vector.broadcast %588 : vector<1x32xf32> to vector<64x32xf32>
    %590 = arith.addf %587, %589 : vector<64x32xf32>
    %591 = arith.addf %590, %543 : vector<64x32xf32>
    %c0_205 = arith.constant 0 : index
    %c0_206 = arith.constant 0 : index
    %592 = vector.load %arg27[%c0_205, %c0_206] : memref<64x32xf32, #tpu.memory_space<vmem>>, vector<64x32xf32>
    tpu.vector_store %arg27[%c0_205, %c0_206], %591 {strides = array<i32>} : memref<64x32xf32, #tpu.memory_space<vmem>>, vector<64x32xf32>,
    return
  }
  func.func @transform_0(%arg0: i32) -> (i32, i32) {
    %c0_i32 = arith.constant 0 : i32
    %c0_i32_0 = arith.constant 0 : i32
    return %arg0, %c0_i32 : i32, i32
  }
  func.func @transform_1(%arg0: i32) -> (i32, i32) {
    %c0_i32 = arith.constant 0 : i32
    %c0_i32_0 = arith.constant 0 : i32
    %c0_i32_1 = arith.constant 0 : i32
    return %c0_i32, %c0_i32_0 : i32, i32
  }
  func.func @transform_2(%arg0: i32) -> (i32, i32) {
    %c0_i32 = arith.constant 0 : i32
    %c0_i32_0 = arith.constant 0 : i32
    %c0_i32_1 = arith.constant 0 : i32
    return %c0_i32, %c0_i32_0 : i32, i32
  }
  func.func @transform_3(%arg0: i32) -> (i32, i32) {
    %c0_i32 = arith.constant 0 : i32
    %c0_i32_0 = arith.constant 0 : i32
    %c0_i32_1 = arith.constant 0 : i32
    return %c0_i32, %c0_i32_0 : i32, i32
  }
  func.func @transform_4(%arg0: i32) -> (i32, i32) {
    %c0_i32 = arith.constant 0 : i32
    %c0_i32_0 = arith.constant 0 : i32
    %c0_i32_1 = arith.constant 0 : i32
    return %c0_i32, %c0_i32_0 : i32, i32
  }
  func.func @transform_5(%arg0: i32) -> (i32, i32) {
    %c0_i32 = arith.constant 0 : i32
    %c0_i32_0 = arith.constant 0 : i32
    %c0_i32_1 = arith.constant 0 : i32
    return %c0_i32, %c0_i32_0 : i32, i32
  }
  func.func @transform_6(%arg0: i32) -> (i32, i32) {
    %c0_i32 = arith.constant 0 : i32
    %c0_i32_0 = arith.constant 0 : i32
    %c0_i32_1 = arith.constant 0 : i32
    return %c0_i32, %c0_i32_0 : i32, i32
  }
  func.func @transform_7(%arg0: i32) -> (i32, i32) {
    %c0_i32 = arith.constant 0 : i32
    %c0_i32_0 = arith.constant 0 : i32
    %c0_i32_1 = arith.constant 0 : i32
    return %c0_i32, %c0_i32_0 : i32, i32
  }
  func.func @transform_8(%arg0: i32) -> (i32, i32) {
    %c0_i32 = arith.constant 0 : i32
    %c0_i32_0 = arith.constant 0 : i32
    %c0_i32_1 = arith.constant 0 : i32
    return %c0_i32, %c0_i32_0 : i32, i32
  }
  func.func @transform_9(%arg0: i32) -> (i32, i32) {
    %c0_i32 = arith.constant 0 : i32
    %c0_i32_0 = arith.constant 0 : i32
    %c0_i32_1 = arith.constant 0 : i32
    return %c0_i32, %c0_i32_0 : i32, i32
  }
  func.func @transform_10(%arg0: i32) -> (i32, i32) {
    %c0_i32 = arith.constant 0 : i32
    %c0_i32_0 = arith.constant 0 : i32
    %c0_i32_1 = arith.constant 0 : i32
    return %c0_i32, %c0_i32_0 : i32, i32
  }
  func.func @transform_11(%arg0: i32) -> (i32, i32) {
    %c0_i32 = arith.constant 0 : i32
    %c0_i32_0 = arith.constant 0 : i32
    %c0_i32_1 = arith.constant 0 : i32
    return %c0_i32, %c0_i32_0 : i32, i32
  }
  func.func @transform_12(%arg0: i32) -> (i32, i32) {
    %c0_i32 = arith.constant 0 : i32
    %c0_i32_0 = arith.constant 0 : i32
    %c0_i32_1 = arith.constant 0 : i32
    return %c0_i32, %c0_i32_0 : i32, i32
  }
  func.func @transform_13(%arg0: i32) -> (i32, i32) {
    %c0_i32 = arith.constant 0 : i32
    %c0_i32_0 = arith.constant 0 : i32
    %c0_i32_1 = arith.constant 0 : i32
    return %c0_i32, %c0_i32_0 : i32, i32
  }
  func.func @transform_14(%arg0: i32) -> (i32, i32) {
    %c0_i32 = arith.constant 0 : i32
    %c0_i32_0 = arith.constant 0 : i32
    %c0_i32_1 = arith.constant 0 : i32
    return %c0_i32, %c0_i32_0 : i32, i32
  }
  func.func @transform_15(%arg0: i32) -> (i32, i32) {
    %c0_i32 = arith.constant 0 : i32
    %c0_i32_0 = arith.constant 0 : i32
    %c0_i32_1 = arith.constant 0 : i32
    return %c0_i32, %c0_i32_0 : i32, i32
  }
  func.func @transform_16(%arg0: i32) -> (i32, i32) {
    %c0_i32 = arith.constant 0 : i32
    %c0_i32_0 = arith.constant 0 : i32
    %c0_i32_1 = arith.constant 0 : i32
    return %c0_i32, %c0_i32_0 : i32, i32
  }
  func.func @transform_17(%arg0: i32) -> (i32, i32) {
    %c0_i32 = arith.constant 0 : i32
    %c0_i32_0 = arith.constant 0 : i32
    %c0_i32_1 = arith.constant 0 : i32
    return %c0_i32, %c0_i32_0 : i32, i32
  }
  func.func @transform_18(%arg0: i32) -> (i32, i32) {
    %c0_i32 = arith.constant 0 : i32
    %c0_i32_0 = arith.constant 0 : i32
    %c0_i32_1 = arith.constant 0 : i32
    return %c0_i32, %c0_i32_0 : i32, i32
  }
  func.func @transform_19(%arg0: i32) -> (i32, i32) {
    %c0_i32 = arith.constant 0 : i32
    %c0_i32_0 = arith.constant 0 : i32
    %c0_i32_1 = arith.constant 0 : i32
    return %c0_i32, %c0_i32_0 : i32, i32
  }
  func.func @transform_20(%arg0: i32) -> (i32, i32) {
    %c0_i32 = arith.constant 0 : i32
    %c0_i32_0 = arith.constant 0 : i32
    %c0_i32_1 = arith.constant 0 : i32
    return %c0_i32, %c0_i32_0 : i32, i32
  }
  func.func @transform_21(%arg0: i32) -> (i32, i32) {
    %c0_i32 = arith.constant 0 : i32
    %c0_i32_0 = arith.constant 0 : i32
    %c0_i32_1 = arith.constant 0 : i32
    return %c0_i32, %c0_i32_0 : i32, i32
  }
  func.func @transform_22(%arg0: i32) -> (i32, i32) {
    %c0_i32 = arith.constant 0 : i32
    %c0_i32_0 = arith.constant 0 : i32
    %c0_i32_1 = arith.constant 0 : i32
    return %c0_i32, %c0_i32_0 : i32, i32
  }
  func.func @transform_23(%arg0: i32) -> (i32, i32) {
    %c0_i32 = arith.constant 0 : i32
    %c0_i32_0 = arith.constant 0 : i32
    %c0_i32_1 = arith.constant 0 : i32
    return %c0_i32, %c0_i32_0 : i32, i32
  }
  func.func @transform_24(%arg0: i32) -> (i32, i32) {
    %c0_i32 = arith.constant 0 : i32
    %c0_i32_0 = arith.constant 0 : i32
    %c0_i32_1 = arith.constant 0 : i32
    return %c0_i32, %c0_i32_0 : i32, i32
  }
  func.func @transform_25(%arg0: i32) -> (i32, i32) {
    %c0_i32 = arith.constant 0 : i32
    %c0_i32_0 = arith.constant 0 : i32
    %c0_i32_1 = arith.constant 0 : i32
    return %c0_i32, %c0_i32_0 : i32, i32
  }
  func.func @transform_26(%arg0: i32) -> (i32, i32) {
    %c0_i32 = arith.constant 0 : i32
    %c0_i32_0 = arith.constant 0 : i32
    return %arg0, %c0_i32 : i32, i32
  }
}

</mosaic_0001>

<llo_original>
// kernel: tile.23
$region0: #{tile.23}
  #allocation0 [shape = 's32[1]{0}', space=sflag, size = 0x4, scoped, tag = 'scoped memory for tile.23']
  %s0 = inlined_call_operand.vmem [shape: f32[8], index: 0, kind: input, shape index: {}]
  %s1 = inlined_call_operand.vmem [shape: f32[4,8], index: 1, kind: output, shape index: {}]
  // Predicated region
  $region2: #{tile.23} parent=0 // pred_check
    _
  $region3: #{tile.23} parent=0 // pred_check_branch
    %3 = sbr.rel (0) target = $region5
  $region4: #{tile.23} parent=0 // pred_region
    _
  $region5: #{tile.23} parent=0 // pred_fallthru
    _
  %v4 = vld [vmem:[%s0] ss:$0 sm:$0xff]
  %5 = vst [vmem:[%s1] sm:$0xf] %v4

// kernel: tile.24
$region0: #{tile.24}
  %s0 = inlined_call_operand.vmem [shape: f32[4,8], index: 0, kind: input, shape index: {}]
  %s1 = inlined_call_operand.vmem [shape: f32[1,32], index: 1, kind: output, shape index: {}]
  $region1: #{tile.24} parent=0
    #allocation0 [shape = 'u8[4096]{0}', space=vmem, size = 0x1000, scoped, tag = 'scoped mem for output reshape']
    #allocation1 [shape = 'u8[4096]{0}', space=vmem, size = 0x1000, scoped, tag = 'scoped mem for input reshape']
    %s3 = sshll.u32 1, 4
    %s4 = ssub.s32 %s3, 1
    %v5 = vld [vmem:[%s0] sm:%s4]
    %6 = vst [vmem:[#allocation1] sm:%s4] %v5
    %v7 = vld [vmem:[#allocation1] sm:$0x1]
    %vm8 = vcmask 64512
    %9 = vst.msk [vmem:[#allocation0] sm:$0x1] %vm8, %v7
    %s10 = scalar_lea.vmem [#allocation1], 3
    %v11 = vld [vmem:[%s10] sm:$0x1]
    %12 = vrot.lane.b32.xlu0 %v11, 24
    %v13 = vpop.permute.xlu0 %12
    %vm14 = vcmask 261312
    %15 = vst.msk [vmem:[#allocation0] sm:$0x1] %vm14, %v13
    %s16 = scalar_lea.vmem [#allocation1], 2
    %v17 = vld [vmem:[%s16] sm:$0x1]
    %18 = vrot.lane.b32.xlu0 %v17, 16
    %v19 = vpop.permute.xlu0 %18
    %vm20 = vcmask 195712
    %21 = vst.msk [vmem:[#allocation0] sm:$0x1] %vm20, %v19
    %s22 = scalar_lea.vmem [#allocation1], 1
    %v23 = vld [vmem:[%s22] sm:$0x1]
    %24 = vrot.lane.b32.xlu0 %v23, 8
    %v25 = vpop.permute.xlu0 %24
    %vm26 = vcmask 130112
    %27 = vst.msk [vmem:[#allocation0] sm:$0x1] %vm26, %v25
    %s29 = sshll.u32 1, 1
    %s30 = ssub.s32 %s29, 1
    %v32 = vld [vmem:[#allocation0] sm:%s30]
    %s33 = sshll.u32 1, 1
    %s34 = ssub.s32 %s33, 1
    %35 = vst [vmem:[%s1] sm:%s34] %v32

</llo_original>
